<compile_context>
chip_gen: v6e
topology: v6e:2x2x1
jax: 0.10.0
libtpu: 0.0.40
codegen_flags: <defaults>
</compile_context>

<pallas_src>
import functools

import jax
import jax.numpy as jnp
from jax import lax
from jax.experimental import pallas as pl
from jax.experimental.pallas import tpu as pltpu

ARGS = {"nChannel": 100, "nConv": 2}
EPS = 1e-5
CP = 128          # padded channel width (lane-dense)


def _round_up(x, m):
    return (x + m - 1) // m * m


def _pick_tile_m(m, cap=512):
    """Row tile for the (M, CP) matmul kernels.

    Prefer a multiple-of-8 divisor of M that leaves >= 2 blocks (no row
    padding, no masking, and both v7x TensorCores busy).  Falls back to a
    padded M when no such divisor exists.
    """
    best = 0
    t = 8
    while t <= min(cap, m // 2):
        if m % t == 0:
            best = t
        t += 8
    if best:
        return best, m
    tile = min(cap, max(8, _round_up((m + 1) // 2, 8)))
    return tile, _round_up(m, tile)


def _pick_tile_h(h, cap=32):
    """Row tile for the halo conv: largest divisor of H <= cap that leaves
    >= 2 row blocks; falls back to the whole image height."""
    best = None
    for t in range(1, min(cap, h // 2) + 1):
        if h % t == 0:
            best = t
    return best if best is not None else h


# ----------------------------------------------------------------------------
# Pallas kernels
# ----------------------------------------------------------------------------
def _matmul_kernel(a_ref, w_ref, b_ref, y_ref, st_ref, *, relu, m_real,
                   tile_m, need_mask):
    """Conv-as-matmul (conv1 via im2col / conv3 1x1) + bias (+ReLU)
    + per-block BatchNorm partial stats (sum, sum_sq)."""
    acc = jnp.dot(a_ref[...], w_ref[...], preferred_element_type=jnp.float32)
    acc = acc + b_ref[...]
    if relu:
        acc = jnp.maximum(acc, 0.0)

    def emit(v):
        y_ref[...] = v.astype(y_ref.dtype)
        st_ref[0:1, :] = jnp.sum(v, axis=0, keepdims=True)
        st_ref[1:2, :] = jnp.sum(v * v, axis=0, keepdims=True)

    if need_mask:
        # Only the last block can contain padded rows -> only it pays the
        # iota + compare + select (perf-review item).
        last = pl.num_programs(0) - 1

        @pl.when(pl.program_id(0) == last)
        def _():
            rows = (pl.program_id(0) * tile_m
                    + lax.broadcasted_iota(jnp.int32, acc.shape, 0))
            emit(jnp.where(rows < m_real, acc, 0.0))

        @pl.when(pl.program_id(0) != last)
        def _():
            emit(acc)
    else:
        emit(acc)


def _conv3x3_halo_kernel(x_ref, scale_ref, shift_ref, w_ref, b_ref, xany_ref,
                         y_ref, st_ref, top_buf, bot_buf, sem, *, th, w_img):
    """3x3 SAME conv as an in-VMEM halo conv.

    x_ref:    (th, W, CP)   bf16 main row tile (pipelined BlockSpec)
    xany_ref: (N, H, W, CP) bf16 raw HBM view of the same tensor (halo rows)
    w_ref:    (9, CP, CP)   bf16 per-tap weights (ky*3 + kx)
    Applies the previous layer's BN (scale/shift) to real pixels, keeps the
    out-of-image halo at exactly zero, then does 9 shifted MXU dots.
    """
    n = pl.program_id(0)
    hb = pl.program_id(1)
    n_hb = pl.num_programs(1)
    h0 = hb * th

    def top_copy():
        return pltpu.make_async_copy(
            xany_ref.at[n, pl.ds(h0 - 1, 1)], top_buf, sem.at[0])

    def bot_copy():
        return pltpu.make_async_copy(
            xany_ref.at[n, pl.ds(h0 + th, 1)], bot_buf, sem.at[1])

    # Kick off the two tiny (1, W, CP) halo-row DMAs; the main-tile BN affine
    # below runs while they are in flight.
    @pl.when(hb > 0)
    def _():
        top_copy().start()

    @pl.when(hb < n_hb - 1)
    def _():
        bot_copy().start()

    scale = scale_ref[...].reshape(1, 1, CP)
    shift = shift_ref[...].reshape(1, 1, CP)
    # Previous layer's BN applied to REAL pixels only; halo stays zero, which
    # matches SAME zero-padding of the BN'd activation exactly.
    a_mid = x_ref[...].astype(jnp.float32) * scale + shift        # (th, W, CP)

    @pl.when(hb > 0)
    def _():
        top_copy().wait()

    @pl.when(hb < n_hb - 1)
    def _():
        bot_copy().wait()

    a_top = jnp.where(hb > 0,
                      top_buf[...].astype(jnp.float32) * scale + shift, 0.0)
    a_bot = jnp.where(hb < n_hb - 1,
                      bot_buf[...].astype(jnp.float32) * shift * 0.0
                      + jnp.where(hb < n_hb - 1,
                                  bot_buf[...].astype(jnp.float32) * scale
                                  + shift, 0.0), 0.0)
    # (the double-where above is equivalent to a single select; keep simple:)
    a_bot = jnp.where(hb < n_hb - 1,
                      bot_buf[...].astype(jnp.float32) * scale + shift, 0.0)

    a = jnp.concatenate([a_top, a_mid, a_bot], axis=0).astype(jnp.bfloat16)
    zc = jnp.zeros((th + 2, 1, CP), jnp.bfloat16)
    a_l = jnp.concatenate([zc, a[:, :w_img - 1, :]], axis=1)   # col c -> c-1
    a_r = jnp.concatenate([a[:, 1:, :], zc], axis=1)           # col c -> c+1
    cols = (a_l, a, a_r)                                       # indexed by kx

    acc = jnp.zeros((th * w_img, CP), jnp.float32)
    for ky in range(3):
        for kx in range(3):
            slab = cols[kx][ky:ky + th].reshape(th * w_img, CP)
            acc += jnp.dot(slab, w_ref[ky * 3 + kx],
                           preferred_element_type=jnp.float32)
    acc = jnp.maximum(acc + b_ref[...], 0.0)

    y_ref[...] = acc.reshape(th, w_img, CP).astype(y_ref.dtype)
    st_ref[0:1, :] = jnp.sum(acc, axis=0, keepdims=True)
    st_ref[1:2, :] = jnp.sum(acc * acc, axis=0, keepdims=True)


def _bn_apply_kernel(y_ref, st_ref, g_ref, bt_ref, o_ref, *, inv_m):
    """Final BatchNorm apply; scale/shift derived in-kernel from raw sums."""
    mean = st_ref[0:1, :] * inv_m
    var = st_ref[1:2, :] * inv_m - mean * mean
    scale = g_ref[...] * lax.rsqrt(var + EPS)
    shift = bt_ref[...] - mean * scale
    o_ref[...] = y_ref[...].astype(jnp.float32) * scale + shift


# ----------------------------------------------------------------------------
# Pallas wrappers
# ----------------------------------------------------------------------------
def matmul_conv(a, w, b, *, relu, out_dtype, m_real, tile_m):
    """a: (M_pad, K) bf16, w: (K, CP) bf16, b: (1, CP) f32 ->
       (y: (M_pad, CP) out_dtype, stats: (2, CP) f32 over the first m_real rows)."""
    m_pad, k = a.shape
    nblk = m_pad // tile_m
    kernel = functools.partial(
        _matmul_kernel, relu=relu, m_real=m_real, tile_m=tile_m,
        need_mask=(m_pad != m_real))
    y, stats_p = pl.pallas_call(
        kernel,
        out_shape=(jax.ShapeDtypeStruct((m_pad, CP), out_dtype),
                   jax.ShapeDtypeStruct((nblk, 2, CP), jnp.float32)),
        grid_spec=pltpu.PrefetchScalarGridSpec(
            num_scalar_prefetch=0,
            grid=(nblk,),
            in_specs=[pl.BlockSpec((tile_m, k), lambda i: (i, 0)),
                      pl.BlockSpec((k, CP), lambda i: (0, 0)),
                      pl.BlockSpec((1, CP), lambda i: (0, 0))],
            out_specs=[pl.BlockSpec((tile_m, CP), lambda i: (i, 0)),
                       pl.BlockSpec((None, 2, CP), lambda i: (i, 0, 0))]),
        compiler_params=pltpu.CompilerParams(
            dimension_semantics=("parallel",)),
    )(a, w, b)
    return y, jnp.sum(stats_p, axis=0)           # tiny cross-block reduce


def conv3x3_halo(y_img, scale, shift, w_taps, b, *, tile_h):
    """y_img: (N, H, W, CP) bf16.  Returns (y: same shape bf16, stats (2, CP))."""
    n, h, w, _ = y_img.shape
    nhb = h // tile_h
    kernel = functools.partial(_conv3x3_halo_kernel, th=tile_h, w_img=w)
    y, stats_p = pl.pallas_call(
        kernel,
        out_shape=(jax.ShapeDtypeStruct((n, h, w, CP), jnp.bfloat16),
                   jax.ShapeDtypeStruct((n, nhb, 2, CP), jnp.float32)),
        grid_spec=pltpu.PrefetchScalarGridSpec(
            num_scalar_prefetch=0,
            grid=(n, nhb),
            in_specs=[
                pl.BlockSpec((None, tile_h, w, CP), lambda i, j: (i, j, 0, 0)),
                pl.BlockSpec((1, CP), lambda i, j: (0, 0)),
                pl.BlockSpec((1, CP), lambda i, j: (0, 0)),
                pl.BlockSpec((9, CP, CP), lambda i, j: (0, 0, 0)),
                pl.BlockSpec((1, CP), lambda i, j: (0, 0)),
                pl.BlockSpec(memory_space=pl.ANY),     # halo-row DMA source
            ],
            out_specs=[
                pl.BlockSpec((None, tile_h, w, CP), lambda i, j: (i, j, 0, 0)),
                pl.BlockSpec((None, None, 2, CP), lambda i, j: (i, j, 0, 0)),
            ],
            scratch_shapes=[pltpu.VMEM((1, w, CP), jnp.bfloat16),
                            pltpu.VMEM((1, w, CP), jnp.bfloat16),
                            pltpu.SemaphoreType.DMA((2,))]),
        compiler_params=pltpu.CompilerParams(
            dimension_semantics=("parallel", "parallel")),
    )(y_img, scale, shift, w_taps, b, y_img)
    return y, jnp.sum(stats_p, axis=(0, 1))


def bn_apply(y, stats, gamma, beta, *, m_real, tile_m):
    """Final BN: upcast bf16 y, apply scale/shift derived in-kernel."""
    m_pad, _ = y.shape
    nblk = m_pad // tile_m
    kernel = functools.partial(_bn_apply_kernel, inv_m=1.0 / float(m_real))
    return pl.pallas_call(
        kernel,
        out_shape=jax.ShapeDtypeStruct((m_pad, CP), jnp.float32),
        grid_spec=pltpu.PrefetchScalarGridSpec(
            num_scalar_prefetch=0,
            grid=(nblk,),
            in_specs=[pl.BlockSpec((tile_m, CP), lambda i: (i, 0)),
                      pl.BlockSpec((2, CP), lambda i: (0, 0)),
                      pl.BlockSpec((1, CP), lambda i: (0, 0)),
                      pl.BlockSpec((1, CP), lambda i: (0, 0))],
            out_specs=pl.BlockSpec((tile_m, CP), lambda i: (i, 0))),
        compiler_params=pltpu.CompilerParams(
            dimension_semantics=("parallel",)),
    )(y, stats, gamma, beta)


# ----------------------------------------------------------------------------
# JAX glue
# ----------------------------------------------------------------------------
def im2col_3x3(x_nhwc, k_pad, m_pad):
    """3x3/stride1/pad1 patches -> (m_pad, k_pad) bf16, tap order (ky,kx,cin).
    Only used for conv1 (Cin=3, negligible traffic)."""
    n, h, w, c = x_nhwc.shape
    xp = jnp.pad(x_nhwc, ((0, 0), (1, 1), (1, 1), (0, 0)))
    cols = [xp[:, dy:dy + h, dx:dx + w, :] for dy in range(3) for dx in range(3)]
    patches = jnp.concatenate(cols, axis=-1).reshape(n * h * w, 9 * c)
    patches = patches.astype(jnp.bfloat16)
    patches = jnp.pad(patches, ((0, m_pad - n * h * w), (0, k_pad - 9 * c)))
    return patches


def _bn_scale_shift(stats, gamma, beta, m):
    mean = stats[0:1, :] / m
    var = stats[1:2, :] / m - mean * mean       # biased variance (PyTorch BN)
    scale = gamma * lax.rsqrt(var + EPS)
    shift = beta - mean * scale
    return scale, shift


def mynet_forward(x_nchw, pp):
    n, cin, h, w = x_nchw.shape
    nch = ARGS["nChannel"]
    m = n * h * w
    tile_m, m_pad = _pick_tile_m(m)
    tile_h = _pick_tile_h(h)
    k1 = pp["w1"].shape[0]

    x = jnp.transpose(x_nchw, (0, 2, 3, 1))     # NCHW -> NHWC

    # conv1 (3x3) + ReLU, BN1 partial stats fused; K padded to 128 (lane-dense)
    a1 = im2col_3x3(x.astype(jnp.bfloat16), k_pad=k1, m_pad=m_pad)
    y, s = matmul_conv(a1, pp["w1"], pp["b1"], relu=True,
                       out_dtype=jnp.bfloat16, m_real=m, tile_m=tile_m)
    g, be = pp["g1"], pp["be1"]

    # (metadata-only when m_pad == m, which the tile picker ensures when possible)
    y_img = y[:m].reshape(n, h, w, CP)

    # nConv-1 halo-conv layers: previous BN folded into the consumer kernel,
    # raw bf16 activations are the only HBM traffic.
    for i in range(ARGS["nConv"] - 1):
        scale, shift = _bn_scale_shift(s, g, be, m)
        y_img, s = conv3x3_halo(y_img, scale, shift, pp["w2"][i], pp["b2"][i],
                                tile_h=tile_h)
        g, be = pp["g2"][i], pp["be2"][i]

    # conv3 (1x1, no ReLU): fold the previous layer's BN into the weights
    # (exact for a 1x1 conv): W' = scale * W3, b' = shift @ W3 + b3.
    scale, shift = _bn_scale_shift(s, g, be, m)
    w3f = (pp["w3"] * scale.reshape(CP, 1)).astype(jnp.bfloat16)
    b3f = shift @ pp["w3"] + pp["b3"]
    a3 = y_img.reshape(m, CP)
    if m_pad != m:
        a3 = jnp.pad(a3, ((0, m_pad - m), (0, 0)))
    y3, s3 = matmul_conv(a3, w3f, b3f, relu=False,
                         out_dtype=jnp.bfloat16, m_real=m, tile_m=tile_m)

    # final BN3 apply (bf16 in, f32 out)
    out = bn_apply(y3, s3, pp["g3"], pp["be3"], m_real=m, tile_m=tile_m)

    out = out[:m, :nch].reshape(n, h, w, nch)
    return jnp.transpose(out, (0, 3, 1, 2))     # back to NCHW


# ----------------------------------------------------------------------------
# Parameters: logical (unpadded f32, used by the reference) and Pallas-padded
# ----------------------------------------------------------------------------
def make_params(key, input_dim):
    nch = ARGS["nChannel"]
    keys = jax.random.split(key, 16)

    def conv_w(k, kh, kw, cin, cout):
        wgt = 0.05 * jax.random.normal(k, (kh, kw, cin, cout), jnp.float32)
        return wgt.reshape(kh * kw * cin, cout)

    params = {
        "w1": conv_w(keys[0], 3, 3, input_dim, nch),
        "b1": 0.01 * jax.random.normal(keys[1], (1, nch), jnp.float32),
        "g1": jnp.ones((nch,), jnp.float32),
        "be1": jnp.zeros((nch,), jnp.float32),
        "w2": [], "b2": [], "g2": [], "be2": [],
        "w3": conv_w(keys[2], 1, 1, nch, nch),
        "b3": 0.01 * jax.random.normal(keys[3], (1, nch), jnp.float32),
        "g3": jnp.ones((nch,), jnp.float32),
        "be3": jnp.zeros((nch,), jnp.float32),
    }
    for i in range(ARGS["nConv"] - 1):
        params["w2"].append(conv_w(keys[4 + 2 * i], 3, 3, nch, nch))
        params["b2"].append(
            0.01 * jax.random.normal(keys[5 + 2 * i], (1, nch), jnp.float32))
        params["g2"].append(jnp.ones((nch,), jnp.float32))
        params["be2"].append(jnp.zeros((nch,), jnp.float32))
    return params


def prepare_params(p, input_dim):
    """Pad channels 100->128, conv1 K 27->128; per-tap weights for the halo conv."""
    nch = ARGS["nChannel"]
    k1 = _round_up(9 * input_dim, 128)

    def pad_vec(v):   # gamma/beta/bias padded with ZEROS so padded channels stay 0
        v = jnp.asarray(v, jnp.float32).reshape(1, -1)
        return jnp.pad(v, ((0, 0), (0, CP - v.shape[1])))

    def pad_w1(w_flat):                       # (9*cin, nch) -> (k1, CP) bf16
        wgt = jnp.pad(w_flat, ((0, k1 - w_flat.shape[0]), (0, CP - nch)))
        return wgt.astype(jnp.bfloat16)

    def per_tap(w_flat):                      # (9*nch, nch) -> (9, CP, CP) bf16
        wgt = w_flat.reshape(3, 3, nch, nch)
        wgt = jnp.pad(wgt, ((0, 0), (0, 0), (0, CP - nch), (0, CP - nch)))
        return wgt.reshape(9, CP, CP).astype(jnp.bfloat16)

    return {
        "w1": pad_w1(p["w1"]),
        "b1": pad_vec(p["b1"]), "g1": pad_vec(p["g1"]), "be1": pad_vec(p["be1"]),
        "w2": [per_tap(wgt) for wgt in p["w2"]],
        "b2": [pad_vec(b) for b in p["b2"]],
        "g2": [pad_vec(g) for g in p["g2"]],
        "be2": [pad_vec(b) for b in p["be2"]],
        # conv3 kept f32 so the BN fold (scale*W, shift@W+b) happens in f32.
        "w3": jnp.pad(p["w3"], ((0, CP - nch), (0, CP - nch))),
        "b3": pad_vec(p["b3"]), "g3": pad_vec(p["g3"]), "be3": pad_vec(p["be3"]),
    }


# ----------------------------------------------------------------------------
# Pure-JAX f32 reference (for sanity check)
# ----------------------------------------------------------------------------
def reference_forward(x_nchw, params):
    nch = ARGS["nChannel"]
    x = jnp.transpose(x_nchw, (0, 2, 3, 1))
    dn = ("NHWC", "HWIO", "NHWC")

    def conv(x, w_flat, b, kh, kw, cin, cout, pad):
        wgt = w_flat.reshape(kh, kw, cin, cout)
        y = lax.conv_general_dilated(x, wgt, (1, 1), pad, dimension_numbers=dn,
                                     precision=lax.Precision.HIGHEST)
        return y + b.reshape(1, 1, 1, cout)

    def bn(x, g, b):
        mean = jnp.mean(x, axis=(0, 1, 2))
        var = jnp.mean((x - mean) ** 2, axis=(0, 1, 2))
        return (x - mean) * lax.rsqrt(var + EPS) * g + b

    cin = x.shape[-1]
    y = bn(jnp.maximum(conv(x, params["w1"], params["b1"], 3, 3, cin, nch,
                            "SAME"), 0.0), params["g1"], params["be1"])
    for i in range(ARGS["nConv"] - 1):
        y = bn(jnp.maximum(conv(y, params["w2"][i], params["b2"][i], 3, 3, nch,
                                nch, "SAME"), 0.0),
               params["g2"][i], params["be2"][i])
    y = bn(conv(y, params["w3"], params["b3"], 1, 1, nch, nch, "VALID"),
           params["g3"], params["be3"])
    return jnp.transpose(y, (0, 3, 1, 2))


if __name__ == "__main__":
    key = jax.random.PRNGKey(0)
    k_x, k_p = jax.random.split(key)

    N, Cin, H, W = 2, 3, 16, 16              # RGB input, small spatial
    x = jax.random.normal(k_x, (N, Cin, H, W), jnp.float32)
    params = make_params(k_p, Cin)
    pparams = prepare_params(params, Cin)

    fwd = jax.jit(mynet_forward)
    out = jax.block_until_ready(fwd(x, pparams))
    assert out.shape == (N, ARGS["nChannel"], H, W), out.shape

    ref = jax.block_until_ready(reference_forward(x, params))
    # bf16 MXU operands / bf16 activations (f32 accumulation & stats):
    # compare with a relative-L2 metric.
    rel = float(jnp.linalg.norm(out - ref) / jnp.linalg.norm(ref))
    max_abs = float(jnp.max(jnp.abs(out - ref)))
    assert rel < 3e-2, (rel, max_abs)
    assert max_abs < 0.3, (rel, max_abs)

    print("KERNEL_OK")
</pallas_src>

<mosaic_0001>
module attributes {stable_mosaic.version = 11 : i64} {
  func.func @_matmul_kernel(%arg0: i32, %arg1: memref<256x128xbf16, #tpu.memory_space<vmem>>, %arg2: memref<128x128xbf16, #tpu.memory_space<vmem>>, %arg3: memref<1x128xf32, #tpu.memory_space<vmem>>, %arg4: memref<256x128xbf16, #tpu.memory_space<vmem>>, %arg5: memref<1x2x128xf32, #tpu.memory_space<vmem>>) attributes {dimension_semantics = [#tpu.dimension_semantics<parallel>], iteration_bounds = array<i64: 2>, scalar_prefetch = 0 : i64, scratch_operands = 0 : i64, tpu.core_type = #tpu.core_type<tc>, window_params = [{transform_indices = @transform_0, window_bounds = array<i64: 256, 128>}, {pipeline_mode = #tpu.pipeline_mode<synchronous>, transform_indices = @transform_1, window_bounds = array<i64: 128, 128>}, {pipeline_mode = #tpu.pipeline_mode<synchronous>, transform_indices = @transform_2, window_bounds = array<i64: 1, 128>}, {transform_indices = @transform_3, window_bounds = array<i64: 256, 128>}, {transform_indices = @transform_4, window_bounds = array<i64: 1, 2, 128>}]} {
    %c0 = arith.constant 0 : index
    %c0_0 = arith.constant 0 : index
    %0 = vector.load %arg1[%c0, %c0_0] : memref<256x128xbf16, #tpu.memory_space<vmem>>, vector<256x128xbf16>
    %c0_1 = arith.constant 0 : index
    %c0_2 = arith.constant 0 : index
    %1 = vector.load %arg2[%c0_1, %c0_2] : memref<128x128xbf16, #tpu.memory_space<vmem>>, vector<128x128xbf16>
    %cst = arith.constant dense<0.000000e+00> : vector<256x128xf32>
    %2 = tpu.matmul %0, %1, %cst {dimension_numbers = #tpu.dot_dimension_numbers<[1], [0], [0], [1], [0, 0, 1, 1], [], []>} : vector<256x128xbf16>, vector<128x128xbf16>, vector<256x128xf32> -> vector<256x128xf32>
    %c0_3 = arith.constant 0 : index
    %c0_4 = arith.constant 0 : index
    %3 = vector.load %arg3[%c0_3, %c0_4] : memref<1x128xf32, #tpu.memory_space<vmem>>, vector<1x128xf32>
    %4 = vector.broadcast %3 : vector<1x128xf32> to vector<256x128xf32>
    %5 = arith.addf %2, %4 : vector<256x128xf32>
    %cst_5 = arith.constant 0.000000e+00 : f32
    %6 = vector.broadcast %cst_5 : f32 to vector<256x128xf32>
    %7 = arith.maximumf %5, %6 : vector<256x128xf32>
    %8 = arith.truncf %7 : vector<256x128xf32> to vector<256x128xbf16>
    %c0_6 = arith.constant 0 : index
    %c0_7 = arith.constant 0 : index
    %9 = vector.load %arg4[%c0_6, %c0_7] : memref<256x128xbf16, #tpu.memory_space<vmem>>, vector<256x128xbf16>
    tpu.vector_store %arg4[%c0_6, %c0_7], %8 {strides = array<i32>} : memref<256x128xbf16, #tpu.memory_space<vmem>>, vector<256x128xbf16>,
    %cst_8 = arith.constant dense<0.000000e+00> : vector<128xf32>
    %10 = vector.multi_reduction <add>, %7, %cst_8 [0] : vector<256x128xf32> to vector<128xf32>
    %11 = vector.shape_cast %10 : vector<128xf32> to vector<1x128xf32>
    %c0_9 = arith.constant 0 : index
    %c0_10 = arith.constant 0 : index
    %c0_11 = arith.constant 0 : index
    %12 = vector.load %arg5[%c0_9, %c0_10, %c0_11] : memref<1x2x128xf32, #tpu.memory_space<vmem>>, vector<1x1x128xf32>
    %13 = vector.shape_cast %12 : vector<1x1x128xf32> to vector<1x128xf32>
    %14 = vector.shape_cast %11 : vector<1x128xf32> to vector<1x1x128xf32>
    tpu.vector_store %arg5[%c0_9, %c0_10, %c0_11], %14 {strides = array<i32>} : memref<1x2x128xf32, #tpu.memory_space<vmem>>, vector<1x1x128xf32>,
    %15 = arith.mulf %7, %7 : vector<256x128xf32>
    %cst_12 = arith.constant dense<0.000000e+00> : vector<128xf32>
    %16 = vector.multi_reduction <add>, %15, %cst_12 [0] : vector<256x128xf32> to vector<128xf32>
    %17 = vector.shape_cast %16 : vector<128xf32> to vector<1x128xf32>
    %c0_13 = arith.constant 0 : index
    %c1 = arith.constant 1 : index
    %c0_14 = arith.constant 0 : index
    %18 = vector.load %arg5[%c0_13, %c1, %c0_14] : memref<1x2x128xf32, #tpu.memory_space<vmem>>, vector<1x1x128xf32>
    %19 = vector.shape_cast %18 : vector<1x1x128xf32> to vector<1x128xf32>
    %20 = vector.shape_cast %17 : vector<1x128xf32> to vector<1x1x128xf32>
    tpu.vector_store %arg5[%c0_13, %c1, %c0_14], %20 {strides = array<i32>} : memref<1x2x128xf32, #tpu.memory_space<vmem>>, vector<1x1x128xf32>,
    return
  }
  func.func @transform_0(%arg0: i32) -> (i32, i32) {
    %c0_i32 = arith.constant 0 : i32
    %c0_i32_0 = arith.constant 0 : i32
    return %arg0, %c0_i32 : i32, i32
  }
  func.func @transform_1(%arg0: i32) -> (i32, i32) {
    %c0_i32 = arith.constant 0 : i32
    %c0_i32_0 = arith.constant 0 : i32
    %c0_i32_1 = arith.constant 0 : i32
    return %c0_i32, %c0_i32_0 : i32, i32
  }
  func.func @transform_2(%arg0: i32) -> (i32, i32) {
    %c0_i32 = arith.constant 0 : i32
    %c0_i32_0 = arith.constant 0 : i32
    %c0_i32_1 = arith.constant 0 : i32
    return %c0_i32, %c0_i32_0 : i32, i32
  }
  func.func @transform_3(%arg0: i32) -> (i32, i32) {
    %c0_i32 = arith.constant 0 : i32
    %c0_i32_0 = arith.constant 0 : i32
    return %arg0, %c0_i32 : i32, i32
  }
  func.func @transform_4(%arg0: i32) -> (i32, i32, i32) {
    %c0_i32 = arith.constant 0 : i32
    %c0_i32_0 = arith.constant 0 : i32
    %c0_i32_1 = arith.constant 0 : i32
    return %arg0, %c0_i32, %c0_i32_0 : i32, i32, i32
  }
}

module attributes {stable_mosaic.version = 11 : i64} {
  func.func @_conv3x3_halo_kernel(%arg0: i32, %arg1: i32, %arg2: memref<1x8x16x128xbf16, #tpu.memory_space<vmem>>, %arg3: memref<1x128xf32, #tpu.memory_space<vmem>>, %arg4: memref<1x128xf32, #tpu.memory_space<vmem>>, %arg5: memref<9x128x128xbf16, #tpu.memory_space<vmem>>, %arg6: memref<1x128xf32, #tpu.memory_space<vmem>>, %arg7: memref<2x16x16x128xbf16, #tpu.memory_space<any>>, %arg8: memref<1x8x16x128xbf16, #tpu.memory_space<vmem>>, %arg9: memref<1x1x2x128xf32, #tpu.memory_space<vmem>>, %arg10: memref<1x16x128xbf16, #tpu.memory_space<vmem>>, %arg11: memref<1x16x128xbf16, #tpu.memory_space<vmem>>, %arg12: memref<2x!tpu.dma_semaphore, #tpu.memory_space<semaphore_mem>>) attributes {dimension_semantics = [#tpu.dimension_semantics<parallel>, #tpu.dimension_semantics<parallel>], iteration_bounds = array<i64: 2, 2>, scalar_prefetch = 0 : i64, scratch_operands = 3 : i64, tpu.core_type = #tpu.core_type<tc>, window_params = [{transform_indices = @transform_0, window_bounds = array<i64: 1, 8, 16, 128>}, {pipeline_mode = #tpu.pipeline_mode<synchronous>, transform_indices = @transform_1, window_bounds = array<i64: 1, 128>}, {pipeline_mode = #tpu.pipeline_mode<synchronous>, transform_indices = @transform_2, window_bounds = array<i64: 1, 128>}, {pipeline_mode = #tpu.pipeline_mode<synchronous>, transform_indices = @transform_3, window_bounds = array<i64: 9, 128, 128>}, {pipeline_mode = #tpu.pipeline_mode<synchronous>, transform_indices = @transform_4, window_bounds = array<i64: 1, 128>}, {}, {transform_indices = @transform_6, window_bounds = array<i64: 1, 8, 16, 128>}, {transform_indices = @transform_7, window_bounds = array<i64: 1, 1, 2, 128>}]} {
    %c8_i32 = arith.constant 8 : i32
    %0 = arith.muli %arg1, %c8_i32 : i32
    %c0_i32 = arith.constant 0 : i32
    %1 = arith.cmpi sgt, %arg1, %c0_i32 : i32
    %2 = arith.extui %1 : i1 to i32
    %c0_i32_0 = arith.constant 0 : i32
    %3 = arith.cmpi ne, %2, %c0_i32_0 : i32
    scf.if %3 {
      %c1_i32_69 = arith.constant 1 : i32
      %125 = arith.subi %0, %c1_i32_69 : i32
      %c0_i32_70 = arith.constant 0 : i32
      %c0_i32_71 = arith.constant 0 : i32
      %c0_i32_72 = arith.constant 0 : i32
      %126 = tpu.memref_slice %arg7[%arg0, %125, %c0_i32_71, %c0_i32_72] : memref<2x16x16x128xbf16, #tpu.memory_space<any>> -> memref<1x1x16x128xbf16, #tpu.memory_space<any>>
      %127 = tpu.memref_squeeze %126 : memref<1x1x16x128xbf16, #tpu.memory_space<any>> -> memref<1x16x128xbf16, #tpu.memory_space<any>>
      %128 = tpu.memref_slice %arg12[%c0_i32_70] : memref<2x!tpu.dma_semaphore, #tpu.memory_space<semaphore_mem>> -> memref<1x!tpu.dma_semaphore, #tpu.memory_space<semaphore_mem>>
      %129 = tpu.memref_squeeze %128 : memref<1x!tpu.dma_semaphore, #tpu.memory_space<semaphore_mem>> -> memref<!tpu.dma_semaphore, #tpu.memory_space<semaphore_mem>>
      tpu.enqueue_dma source(%127 : memref<1x16x128xbf16, #tpu.memory_space<any>>) target(%arg10 : memref<1x16x128xbf16, #tpu.memory_space<vmem>>) target_semaphore(%129 : memref<!tpu.dma_semaphore, #tpu.memory_space<semaphore_mem>>)
    } else {
    }
    %c1_i32 = arith.constant 1 : i32
    %4 = arith.cmpi slt, %arg1, %c1_i32 : i32
    %5 = arith.extui %4 : i1 to i32
    %c0_i32_1 = arith.constant 0 : i32
    %6 = arith.cmpi ne, %5, %c0_i32_1 : i32
    scf.if %6 {
      %c8_i32_69 = arith.constant 8 : i32
      %125 = arith.addi %0, %c8_i32_69 : i32
      %c1_i32_70 = arith.constant 1 : i32
      %c0_i32_71 = arith.constant 0 : i32
      %c0_i32_72 = arith.constant 0 : i32
      %126 = tpu.memref_slice %arg7[%arg0, %125, %c0_i32_71, %c0_i32_72] : memref<2x16x16x128xbf16, #tpu.memory_space<any>> -> memref<1x1x16x128xbf16, #tpu.memory_space<any>>
      %127 = tpu.memref_squeeze %126 : memref<1x1x16x128xbf16, #tpu.memory_space<any>> -> memref<1x16x128xbf16, #tpu.memory_space<any>>
      %128 = tpu.memref_slice %arg12[%c1_i32_70] : memref<2x!tpu.dma_semaphore, #tpu.memory_space<semaphore_mem>> -> memref<1x!tpu.dma_semaphore, #tpu.memory_space<semaphore_mem>>
      %129 = tpu.memref_squeeze %128 : memref<1x!tpu.dma_semaphore, #tpu.memory_space<semaphore_mem>> -> memref<!tpu.dma_semaphore, #tpu.memory_space<semaphore_mem>>
      tpu.enqueue_dma source(%127 : memref<1x16x128xbf16, #tpu.memory_space<any>>) target(%arg11 : memref<1x16x128xbf16, #tpu.memory_space<vmem>>) target_semaphore(%129 : memref<!tpu.dma_semaphore, #tpu.memory_space<semaphore_mem>>)
    } else {
    }
    %c0 = arith.constant 0 : index
    %c0_2 = arith.constant 0 : index
    %7 = vector.load %arg3[%c0, %c0_2] : memref<1x128xf32, #tpu.memory_space<vmem>>, vector<1x128xf32>
    %8 = vector.shape_cast %7 : vector<1x128xf32> to vector<1x1x128xf32>
    %c0_3 = arith.constant 0 : index
    %c0_4 = arith.constant 0 : index
    %9 = vector.load %arg4[%c0_3, %c0_4] : memref<1x128xf32, #tpu.memory_space<vmem>>, vector<1x128xf32>
    %10 = vector.shape_cast %9 : vector<1x128xf32> to vector<1x1x128xf32>
    %c0_5 = arith.constant 0 : index
    %c0_6 = arith.constant 0 : index
    %c0_7 = arith.constant 0 : index
    %c0_8 = arith.constant 0 : index
    %11 = vector.load %arg2[%c0_5, %c0_6, %c0_7, %c0_8] : memref<1x8x16x128xbf16, #tpu.memory_space<vmem>>, vector<1x8x16x128xbf16>
    %12 = vector.shape_cast %11 : vector<1x8x16x128xbf16> to vector<8x16x128xbf16>
    %13 = arith.extf %12 : vector<8x16x128xbf16> to vector<8x16x128xf32>
    %14 = vector.broadcast %8 : vector<1x1x128xf32> to vector<8x16x128xf32>
    %15 = arith.mulf %13, %14 : vector<8x16x128xf32>
    %16 = vector.broadcast %10 : vector<1x1x128xf32> to vector<8x16x128xf32>
    %17 = arith.addf %15, %16 : vector<8x16x128xf32>
    %c0_i32_9 = arith.constant 0 : i32
    %18 = arith.cmpi sgt, %arg1, %c0_i32_9 : i32
    %19 = arith.extui %18 : i1 to i32
    %c0_i32_10 = arith.constant 0 : i32
    %20 = arith.cmpi ne, %19, %c0_i32_10 : i32
    scf.if %20 {
      %c1_i32_69 = arith.constant 1 : i32
      %125 = arith.subi %0, %c1_i32_69 : i32
      %c0_i32_70 = arith.constant 0 : i32
      %c0_i32_71 = arith.constant 0 : i32
      %c0_i32_72 = arith.constant 0 : i32
      %126 = tpu.memref_slice %arg7[%arg0, %125, %c0_i32_71, %c0_i32_72] : memref<2x16x16x128xbf16, #tpu.memory_space<any>> -> memref<1x1x16x128xbf16, #tpu.memory_space<any>>
      %127 = tpu.memref_squeeze %126 : memref<1x1x16x128xbf16, #tpu.memory_space<any>> -> memref<1x16x128xbf16, #tpu.memory_space<any>>
      %128 = tpu.memref_slice %arg12[%c0_i32_70] : memref<2x!tpu.dma_semaphore, #tpu.memory_space<semaphore_mem>> -> memref<1x!tpu.dma_semaphore, #tpu.memory_space<semaphore_mem>>
      %129 = tpu.memref_squeeze %128 : memref<1x!tpu.dma_semaphore, #tpu.memory_space<semaphore_mem>> -> memref<!tpu.dma_semaphore, #tpu.memory_space<semaphore_mem>>
      tpu.wait_dma2 semaphore(%129 : memref<!tpu.dma_semaphore, #tpu.memory_space<semaphore_mem>>) src(%127 : memref<1x16x128xbf16, #tpu.memory_space<any>>) dst(%arg10 : memref<1x16x128xbf16, #tpu.memory_space<vmem>>)
    } else {
    }
    %c1_i32_11 = arith.constant 1 : i32
    %21 = arith.cmpi slt, %arg1, %c1_i32_11 : i32
    %22 = arith.extui %21 : i1 to i32
    %c0_i32_12 = arith.constant 0 : i32
    %23 = arith.cmpi ne, %22, %c0_i32_12 : i32
    scf.if %23 {
      %c8_i32_69 = arith.constant 8 : i32
      %125 = arith.addi %0, %c8_i32_69 : i32
      %c1_i32_70 = arith.constant 1 : i32
      %c0_i32_71 = arith.constant 0 : i32
      %c0_i32_72 = arith.constant 0 : i32
      %126 = tpu.memref_slice %arg7[%arg0, %125, %c0_i32_71, %c0_i32_72] : memref<2x16x16x128xbf16, #tpu.memory_space<any>> -> memref<1x1x16x128xbf16, #tpu.memory_space<any>>
      %127 = tpu.memref_squeeze %126 : memref<1x1x16x128xbf16, #tpu.memory_space<any>> -> memref<1x16x128xbf16, #tpu.memory_space<any>>
      %128 = tpu.memref_slice %arg12[%c1_i32_70] : memref<2x!tpu.dma_semaphore, #tpu.memory_space<semaphore_mem>> -> memref<1x!tpu.dma_semaphore, #tpu.memory_space<semaphore_mem>>
      %129 = tpu.memref_squeeze %128 : memref<1x!tpu.dma_semaphore, #tpu.memory_space<semaphore_mem>> -> memref<!tpu.dma_semaphore, #tpu.memory_space<semaphore_mem>>
      tpu.wait_dma2 semaphore(%129 : memref<!tpu.dma_semaphore, #tpu.memory_space<semaphore_mem>>) src(%127 : memref<1x16x128xbf16, #tpu.memory_space<any>>) dst(%arg11 : memref<1x16x128xbf16, #tpu.memory_space<vmem>>)
    } else {
    }
    %c0_i32_13 = arith.constant 0 : i32
    %24 = arith.cmpi sgt, %arg1, %c0_i32_13 : i32
    %c0_14 = arith.constant 0 : index
    %c0_15 = arith.constant 0 : index
    %c0_16 = arith.constant 0 : index
    %25 = vector.load %arg10[%c0_14, %c0_15, %c0_16] : memref<1x16x128xbf16, #tpu.memory_space<vmem>>, vector<1x16x128xbf16>
    %26 = arith.extf %25 : vector<1x16x128xbf16> to vector<1x16x128xf32>
    %27 = vector.broadcast %8 : vector<1x1x128xf32> to vector<1x16x128xf32>
    %28 = arith.mulf %26, %27 : vector<1x16x128xf32>
    %29 = vector.broadcast %10 : vector<1x1x128xf32> to vector<1x16x128xf32>
    %30 = arith.addf %28, %29 : vector<1x16x128xf32>
    %cst = arith.constant 0.000000e+00 : f32
    %31 = vector.broadcast %cst : f32 to vector<1x16x128xf32>
    %32 = arith.select %24, %30, %31 : vector<1x16x128xf32>
    %c1_i32_17 = arith.constant 1 : i32
    %33 = arith.cmpi slt, %arg1, %c1_i32_17 : i32
    %c0_18 = arith.constant 0 : index
    %c0_19 = arith.constant 0 : index
    %c0_20 = arith.constant 0 : index
    %34 = vector.load %arg11[%c0_18, %c0_19, %c0_20] : memref<1x16x128xbf16, #tpu.memory_space<vmem>>, vector<1x16x128xbf16>
    %35 = arith.extf %34 : vector<1x16x128xbf16> to vector<1x16x128xf32>
    %36 = vector.broadcast %8 : vector<1x1x128xf32> to vector<1x16x128xf32>
    %37 = arith.mulf %35, %36 : vector<1x16x128xf32>
    %38 = vector.broadcast %10 : vector<1x1x128xf32> to vector<1x16x128xf32>
    %39 = arith.addf %37, %38 : vector<1x16x128xf32>
    %cst_21 = arith.constant 0.000000e+00 : f32
    %40 = vector.broadcast %cst_21 : f32 to vector<1x16x128xf32>
    %41 = arith.select %33, %39, %40 : vector<1x16x128xf32>
    %42 = tpu.concatenate %32, %17, %41 in 0 : vector<1x16x128xf32>, vector<8x16x128xf32>, vector<1x16x128xf32> -> vector<10x16x128xf32>
    %43 = arith.truncf %42 : vector<10x16x128xf32> to vector<10x16x128xbf16>
    %cst_22 = arith.constant 0.000000e+00 : bf16
    %44 = vector.broadcast %cst_22 : bf16 to vector<10x1x128xbf16>
    %45 = vector.extract_strided_slice %43 {offsets = [0, 0, 0], sizes = [10, 15, 128], strides = [1, 1, 1]} : vector<10x16x128xbf16> to vector<10x15x128xbf16>
    %46 = tpu.concatenate %44, %45 in 1 : vector<10x1x128xbf16>, vector<10x15x128xbf16> -> vector<10x16x128xbf16>
    %47 = vector.extract_strided_slice %43 {offsets = [0, 1, 0], sizes = [10, 15, 128], strides = [1, 1, 1]} : vector<10x16x128xbf16> to vector<10x15x128xbf16>
    %48 = tpu.concatenate %47, %44 in 1 : vector<10x15x128xbf16>, vector<10x1x128xbf16> -> vector<10x16x128xbf16>
    %cst_23 = arith.constant 0.000000e+00 : f32
    %49 = vector.broadcast %cst_23 : f32 to vector<128x128xf32>
    %50 = vector.extract_strided_slice %46 {offsets = [0, 0, 0], sizes = [8, 16, 128], strides = [1, 1, 1]} : vector<10x16x128xbf16> to vector<8x16x128xbf16>
    %51 = vector.shape_cast %50 : vector<8x16x128xbf16> to vector<128x128xbf16>
    %c0_24 = arith.constant 0 : index
    %c0_25 = arith.constant 0 : index
    %c0_26 = arith.constant 0 : index
    %52 = vector.load %arg5[%c0_24, %c0_25, %c0_26] : memref<9x128x128xbf16, #tpu.memory_space<vmem>>, vector<1x128x128xbf16>
    %53 = vector.shape_cast %52 : vector<1x128x128xbf16> to vector<128x128xbf16>
    %cst_27 = arith.constant dense<0.000000e+00> : vector<128x128xf32>
    %54 = tpu.matmul %51, %53, %cst_27 {dimension_numbers = #tpu.dot_dimension_numbers<[1], [0], [0], [1], [0, 0, 1, 1], [], []>} : vector<128x128xbf16>, vector<128x128xbf16>, vector<128x128xf32> -> vector<128x128xf32>
    %55 = arith.addf %49, %54 : vector<128x128xf32>
    %56 = vector.extract_strided_slice %43 {offsets = [0, 0, 0], sizes = [8, 16, 128], strides = [1, 1, 1]} : vector<10x16x128xbf16> to vector<8x16x128xbf16>
    %57 = vector.shape_cast %56 : vector<8x16x128xbf16> to vector<128x128xbf16>
    %c1 = arith.constant 1 : index
    %c0_28 = arith.constant 0 : index
    %c0_29 = arith.constant 0 : index
    %58 = vector.load %arg5[%c1, %c0_28, %c0_29] : memref<9x128x128xbf16, #tpu.memory_space<vmem>>, vector<1x128x128xbf16>
    %59 = vector.shape_cast %58 : vector<1x128x128xbf16> to vector<128x128xbf16>
    %cst_30 = arith.constant dense<0.000000e+00> : vector<128x128xf32>
    %60 = tpu.matmul %57, %59, %cst_30 {dimension_numbers = #tpu.dot_dimension_numbers<[1], [0], [0], [1], [0, 0, 1, 1], [], []>} : vector<128x128xbf16>, vector<128x128xbf16>, vector<128x128xf32> -> vector<128x128xf32>
    %61 = arith.addf %55, %60 : vector<128x128xf32>
    %62 = vector.extract_strided_slice %48 {offsets = [0, 0, 0], sizes = [8, 16, 128], strides = [1, 1, 1]} : vector<10x16x128xbf16> to vector<8x16x128xbf16>
    %63 = vector.shape_cast %62 : vector<8x16x128xbf16> to vector<128x128xbf16>
    %c2 = arith.constant 2 : index
    %c0_31 = arith.constant 0 : index
    %c0_32 = arith.constant 0 : index
    %64 = vector.load %arg5[%c2, %c0_31, %c0_32] : memref<9x128x128xbf16, #tpu.memory_space<vmem>>, vector<1x128x128xbf16>
    %65 = vector.shape_cast %64 : vector<1x128x128xbf16> to vector<128x128xbf16>
    %cst_33 = arith.constant dense<0.000000e+00> : vector<128x128xf32>
    %66 = tpu.matmul %63, %65, %cst_33 {dimension_numbers = #tpu.dot_dimension_numbers<[1], [0], [0], [1], [0, 0, 1, 1], [], []>} : vector<128x128xbf16>, vector<128x128xbf16>, vector<128x128xf32> -> vector<128x128xf32>
    %67 = arith.addf %61, %66 : vector<128x128xf32>
    %68 = vector.extract_strided_slice %46 {offsets = [1, 0, 0], sizes = [8, 16, 128], strides = [1, 1, 1]} : vector<10x16x128xbf16> to vector<8x16x128xbf16>
    %69 = vector.shape_cast %68 : vector<8x16x128xbf16> to vector<128x128xbf16>
    %c3 = arith.constant 3 : index
    %c0_34 = arith.constant 0 : index
    %c0_35 = arith.constant 0 : index
    %70 = vector.load %arg5[%c3, %c0_34, %c0_35] : memref<9x128x128xbf16, #tpu.memory_space<vmem>>, vector<1x128x128xbf16>
    %71 = vector.shape_cast %70 : vector<1x128x128xbf16> to vector<128x128xbf16>
    %cst_36 = arith.constant dense<0.000000e+00> : vector<128x128xf32>
    %72 = tpu.matmul %69, %71, %cst_36 {dimension_numbers = #tpu.dot_dimension_numbers<[1], [0], [0], [1], [0, 0, 1, 1], [], []>} : vector<128x128xbf16>, vector<128x128xbf16>, vector<128x128xf32> -> vector<128x128xf32>
    %73 = arith.addf %67, %72 : vector<128x128xf32>
    %74 = vector.extract_strided_slice %43 {offsets = [1, 0, 0], sizes = [8, 16, 128], strides = [1, 1, 1]} : vector<10x16x128xbf16> to vector<8x16x128xbf16>
    %75 = vector.shape_cast %74 : vector<8x16x128xbf16> to vector<128x128xbf16>
    %c4 = arith.constant 4 : index
    %c0_37 = arith.constant 0 : index
    %c0_38 = arith.constant 0 : index
    %76 = vector.load %arg5[%c4, %c0_37, %c0_38] : memref<9x128x128xbf16, #tpu.memory_space<vmem>>, vector<1x128x128xbf16>
    %77 = vector.shape_cast %76 : vector<1x128x128xbf16> to vector<128x128xbf16>
    %cst_39 = arith.constant dense<0.000000e+00> : vector<128x128xf32>
    %78 = tpu.matmul %75, %77, %cst_39 {dimension_numbers = #tpu.dot_dimension_numbers<[1], [0], [0], [1], [0, 0, 1, 1], [], []>} : vector<128x128xbf16>, vector<128x128xbf16>, vector<128x128xf32> -> vector<128x128xf32>
    %79 = arith.addf %73, %78 : vector<128x128xf32>
    %80 = vector.extract_strided_slice %48 {offsets = [1, 0, 0], sizes = [8, 16, 128], strides = [1, 1, 1]} : vector<10x16x128xbf16> to vector<8x16x128xbf16>
    %81 = vector.shape_cast %80 : vector<8x16x128xbf16> to vector<128x128xbf16>
    %c5 = arith.constant 5 : index
    %c0_40 = arith.constant 0 : index
    %c0_41 = arith.constant 0 : index
    %82 = vector.load %arg5[%c5, %c0_40, %c0_41] : memref<9x128x128xbf16, #tpu.memory_space<vmem>>, vector<1x128x128xbf16>
    %83 = vector.shape_cast %82 : vector<1x128x128xbf16> to vector<128x128xbf16>
    %cst_42 = arith.constant dense<0.000000e+00> : vector<128x128xf32>
    %84 = tpu.matmul %81, %83, %cst_42 {dimension_numbers = #tpu.dot_dimension_numbers<[1], [0], [0], [1], [0, 0, 1, 1], [], []>} : vector<128x128xbf16>, vector<128x128xbf16>, vector<128x128xf32> -> vector<128x128xf32>
    %85 = arith.addf %79, %84 : vector<128x128xf32>
    %86 = vector.extract_strided_slice %46 {offsets = [2, 0, 0], sizes = [8, 16, 128], strides = [1, 1, 1]} : vector<10x16x128xbf16> to vector<8x16x128xbf16>
    %87 = vector.shape_cast %86 : vector<8x16x128xbf16> to vector<128x128xbf16>
    %c6 = arith.constant 6 : index
    %c0_43 = arith.constant 0 : index
    %c0_44 = arith.constant 0 : index
    %88 = vector.load %arg5[%c6, %c0_43, %c0_44] : memref<9x128x128xbf16, #tpu.memory_space<vmem>>, vector<1x128x128xbf16>
    %89 = vector.shape_cast %88 : vector<1x128x128xbf16> to vector<128x128xbf16>
    %cst_45 = arith.constant dense<0.000000e+00> : vector<128x128xf32>
    %90 = tpu.matmul %87, %89, %cst_45 {dimension_numbers = #tpu.dot_dimension_numbers<[1], [0], [0], [1], [0, 0, 1, 1], [], []>} : vector<128x128xbf16>, vector<128x128xbf16>, vector<128x128xf32> -> vector<128x128xf32>
    %91 = arith.addf %85, %90 : vector<128x128xf32>
    %92 = vector.extract_strided_slice %43 {offsets = [2, 0, 0], sizes = [8, 16, 128], strides = [1, 1, 1]} : vector<10x16x128xbf16> to vector<8x16x128xbf16>
    %93 = vector.shape_cast %92 : vector<8x16x128xbf16> to vector<128x128xbf16>
    %c7 = arith.constant 7 : index
    %c0_46 = arith.constant 0 : index
    %c0_47 = arith.constant 0 : index
    %94 = vector.load %arg5[%c7, %c0_46, %c0_47] : memref<9x128x128xbf16, #tpu.memory_space<vmem>>, vector<1x128x128xbf16>
    %95 = vector.shape_cast %94 : vector<1x128x128xbf16> to vector<128x128xbf16>
    %cst_48 = arith.constant dense<0.000000e+00> : vector<128x128xf32>
    %96 = tpu.matmul %93, %95, %cst_48 {dimension_numbers = #tpu.dot_dimension_numbers<[1], [0], [0], [1], [0, 0, 1, 1], [], []>} : vector<128x128xbf16>, vector<128x128xbf16>, vector<128x128xf32> -> vector<128x128xf32>
    %97 = arith.addf %91, %96 : vector<128x128xf32>
    %98 = vector.extract_strided_slice %48 {offsets = [2, 0, 0], sizes = [8, 16, 128], strides = [1, 1, 1]} : vector<10x16x128xbf16> to vector<8x16x128xbf16>
    %99 = vector.shape_cast %98 : vector<8x16x128xbf16> to vector<128x128xbf16>
    %c8 = arith.constant 8 : index
    %c0_49 = arith.constant 0 : index
    %c0_50 = arith.constant 0 : index
    %100 = vector.load %arg5[%c8, %c0_49, %c0_50] : memref<9x128x128xbf16, #tpu.memory_space<vmem>>, vector<1x128x128xbf16>
    %101 = vector.shape_cast %100 : vector<1x128x128xbf16> to vector<128x128xbf16>
    %cst_51 = arith.constant dense<0.000000e+00> : vector<128x128xf32>
    %102 = tpu.matmul %99, %101, %cst_51 {dimension_numbers = #tpu.dot_dimension_numbers<[1], [0], [0], [1], [0, 0, 1, 1], [], []>} : vector<128x128xbf16>, vector<128x128xbf16>, vector<128x128xf32> -> vector<128x128xf32>
    %103 = arith.addf %97, %102 : vector<128x128xf32>
    %c0_52 = arith.constant 0 : index
    %c0_53 = arith.constant 0 : index
    %104 = vector.load %arg6[%c0_52, %c0_53] : memref<1x128xf32, #tpu.memory_space<vmem>>, vector<1x128xf32>
    %105 = vector.broadcast %104 : vector<1x128xf32> to vector<128x128xf32>
    %106 = arith.addf %103, %105 : vector<128x128xf32>
    %cst_54 = arith.constant 0.000000e+00 : f32
    %107 = vector.broadcast %cst_54 : f32 to vector<128x128xf32>
    %108 = arith.maximumf %106, %107 : vector<128x128xf32>
    %109 = vector.shape_cast %108 : vector<128x128xf32> to vector<8x16x128xf32>
    %110 = arith.truncf %109 : vector<8x16x128xf32> to vector<8x16x128xbf16>
    %c0_55 = arith.constant 0 : index
    %c0_56 = arith.constant 0 : index
    %c0_57 = arith.constant 0 : index
    %c0_58 = arith.constant 0 : index
    %111 = vector.load %arg8[%c0_55, %c0_56, %c0_57, %c0_58] : memref<1x8x16x128xbf16, #tpu.memory_space<vmem>>, vector<1x8x16x128xbf16>
    %112 = vector.shape_cast %111 : vector<1x8x16x128xbf16> to vector<8x16x128xbf16>
    %113 = vector.shape_cast %110 : vector<8x16x128xbf16> to vector<1x8x16x128xbf16>
    tpu.vector_store %arg8[%c0_55, %c0_56, %c0_57, %c0_58], %113 {strides = array<i32>} : memref<1x8x16x128xbf16, #tpu.memory_space<vmem>>, vector<1x8x16x128xbf16>,
    %cst_59 = arith.constant dense<0.000000e+00> : vector<128xf32>
    %114 = vector.multi_reduction <add>, %108, %cst_59 [0] : vector<128x128xf32> to vector<128xf32>
    %115 = vector.shape_cast %114 : vector<128xf32> to vector<1x128xf32>
    %c0_60 = arith.constant 0 : index
    %c0_61 = arith.constant 0 : index
    %c0_62 = arith.constant 0 : index
    %c0_63 = arith.constant 0 : index
    %116 = vector.load %arg9[%c0_60, %c0_61, %c0_62, %c0_63] : memref<1x1x2x128xf32, #tpu.memory_space<vmem>>, vector<1x1x1x128xf32>
    %117 = vector.shape_cast %116 : vector<1x1x1x128xf32> to vector<1x128xf32>
    %118 = vector.shape_cast %115 : vector<1x128xf32> to vector<1x1x1x128xf32>
    tpu.vector_store %arg9[%c0_60, %c0_61, %c0_62, %c0_63], %118 {strides = array<i32>} : memref<1x1x2x128xf32, #tpu.memory_space<vmem>>, vector<1x1x1x128xf32>,
    %119 = arith.mulf %108, %108 : vector<128x128xf32>
    %cst_64 = arith.constant dense<0.000000e+00> : vector<128xf32>
    %120 = vector.multi_reduction <add>, %119, %cst_64 [0] : vector<128x128xf32> to vector<128xf32>
    %121 = vector.shape_cast %120 : vector<128xf32> to vector<1x128xf32>
    %c0_65 = arith.constant 0 : index
    %c0_66 = arith.constant 0 : index
    %c1_67 = arith.constant 1 : index
    %c0_68 = arith.constant 0 : index
    %122 = vector.load %arg9[%c0_65, %c0_66, %c1_67, %c0_68] : memref<1x1x2x128xf32, #tpu.memory_space<vmem>>, vector<1x1x1x128xf32>
    %123 = vector.shape_cast %122 : vector<1x1x1x128xf32> to vector<1x128xf32>
    %124 = vector.shape_cast %121 : vector<1x128xf32> to vector<1x1x1x128xf32>
    tpu.vector_store %arg9[%c0_65, %c0_66, %c1_67, %c0_68], %124 {strides = array<i32>} : memref<1x1x2x128xf32, #tpu.memory_space<vmem>>, vector<1x1x1x128xf32>,
    return
  }
  func.func @transform_0(%arg0: i32, %arg1: i32) -> (i32, i32, i32, i32) {
    %c0_i32 = arith.constant 0 : i32
    %c0_i32_0 = arith.constant 0 : i32
    %c0_i32_1 = arith.constant 0 : i32
    return %arg0, %arg1, %c0_i32, %c0_i32_0 : i32, i32, i32, i32
  }
  func.func @transform_1(%arg0: i32, %arg1: i32) -> (i32, i32) {
    %c0_i32 = arith.constant 0 : i32
    %c0_i32_0 = arith.constant 0 : i32
    %c0_i32_1 = arith.constant 0 : i32
    return %c0_i32, %c0_i32_0 : i32, i32
  }
  func.func @transform_2(%arg0: i32, %arg1: i32) -> (i32, i32) {
    %c0_i32 = arith.constant 0 : i32
    %c0_i32_0 = arith.constant 0 : i32
    %c0_i32_1 = arith.constant 0 : i32
    return %c0_i32, %c0_i32_0 : i32, i32
  }
  func.func @transform_3(%arg0: i32, %arg1: i32) -> (i32, i32, i32) {
    %c0_i32 = arith.constant 0 : i32
    %c0_i32_0 = arith.constant 0 : i32
    %c0_i32_1 = arith.constant 0 : i32
    %c0_i32_2 = arith.constant 0 : i32
    return %c0_i32, %c0_i32_0, %c0_i32_1 : i32, i32, i32
  }
  func.func @transform_4(%arg0: i32, %arg1: i32) -> (i32, i32) {
    %c0_i32 = arith.constant 0 : i32
    %c0_i32_0 = arith.constant 0 : i32
    %c0_i32_1 = arith.constant 0 : i32
    return %c0_i32, %c0_i32_0 : i32, i32
  }
  func.func @transform_6(%arg0: i32, %arg1: i32) -> (i32, i32, i32, i32) {
    %c0_i32 = arith.constant 0 : i32
    %c0_i32_0 = arith.constant 0 : i32
    %c0_i32_1 = arith.constant 0 : i32
    return %arg0, %arg1, %c0_i32, %c0_i32_0 : i32, i32, i32, i32
  }
  func.func @transform_7(%arg0: i32, %arg1: i32) -> (i32, i32, i32, i32) {
    %c0_i32 = arith.constant 0 : i32
    %c0_i32_0 = arith.constant 0 : i32
    %c0_i32_1 = arith.constant 0 : i32
    return %arg0, %arg1, %c0_i32, %c0_i32_0 : i32, i32, i32, i32
  }
}

module attributes {stable_mosaic.version = 11 : i64} {
  func.func @_matmul_kernel(%arg0: i32, %arg1: memref<256x128xbf16, #tpu.memory_space<vmem>>, %arg2: memref<128x128xbf16, #tpu.memory_space<vmem>>, %arg3: memref<1x128xf32, #tpu.memory_space<vmem>>, %arg4: memref<256x128xbf16, #tpu.memory_space<vmem>>, %arg5: memref<1x2x128xf32, #tpu.memory_space<vmem>>) attributes {dimension_semantics = [#tpu.dimension_semantics<parallel>], iteration_bounds = array<i64: 2>, scalar_prefetch = 0 : i64, scratch_operands = 0 : i64, tpu.core_type = #tpu.core_type<tc>, window_params = [{transform_indices = @transform_0, window_bounds = array<i64: 256, 128>}, {pipeline_mode = #tpu.pipeline_mode<synchronous>, transform_indices = @transform_1, window_bounds = array<i64: 128, 128>}, {pipeline_mode = #tpu.pipeline_mode<synchronous>, transform_indices = @transform_2, window_bounds = array<i64: 1, 128>}, {transform_indices = @transform_3, window_bounds = array<i64: 256, 128>}, {transform_indices = @transform_4, window_bounds = array<i64: 1, 2, 128>}]} {
    %c0 = arith.constant 0 : index
    %c0_0 = arith.constant 0 : index
    %0 = vector.load %arg1[%c0, %c0_0] : memref<256x128xbf16, #tpu.memory_space<vmem>>, vector<256x128xbf16>
    %c0_1 = arith.constant 0 : index
    %c0_2 = arith.constant 0 : index
    %1 = vector.load %arg2[%c0_1, %c0_2] : memref<128x128xbf16, #tpu.memory_space<vmem>>, vector<128x128xbf16>
    %cst = arith.constant dense<0.000000e+00> : vector<256x128xf32>
    %2 = tpu.matmul %0, %1, %cst {dimension_numbers = #tpu.dot_dimension_numbers<[1], [0], [0], [1], [0, 0, 1, 1], [], []>} : vector<256x128xbf16>, vector<128x128xbf16>, vector<256x128xf32> -> vector<256x128xf32>
    %c0_3 = arith.constant 0 : index
    %c0_4 = arith.constant 0 : index
    %3 = vector.load %arg3[%c0_3, %c0_4] : memref<1x128xf32, #tpu.memory_space<vmem>>, vector<1x128xf32>
    %4 = vector.broadcast %3 : vector<1x128xf32> to vector<256x128xf32>
    %5 = arith.addf %2, %4 : vector<256x128xf32>
    %6 = arith.truncf %5 : vector<256x128xf32> to vector<256x128xbf16>
    %c0_5 = arith.constant 0 : index
    %c0_6 = arith.constant 0 : index
    %7 = vector.load %arg4[%c0_5, %c0_6] : memref<256x128xbf16, #tpu.memory_space<vmem>>, vector<256x128xbf16>
    tpu.vector_store %arg4[%c0_5, %c0_6], %6 {strides = array<i32>} : memref<256x128xbf16, #tpu.memory_space<vmem>>, vector<256x128xbf16>,
    %cst_7 = arith.constant dense<0.000000e+00> : vector<128xf32>
    %8 = vector.multi_reduction <add>, %5, %cst_7 [0] : vector<256x128xf32> to vector<128xf32>
    %9 = vector.shape_cast %8 : vector<128xf32> to vector<1x128xf32>
    %c0_8 = arith.constant 0 : index
    %c0_9 = arith.constant 0 : index
    %c0_10 = arith.constant 0 : index
    %10 = vector.load %arg5[%c0_8, %c0_9, %c0_10] : memref<1x2x128xf32, #tpu.memory_space<vmem>>, vector<1x1x128xf32>
    %11 = vector.shape_cast %10 : vector<1x1x128xf32> to vector<1x128xf32>
    %12 = vector.shape_cast %9 : vector<1x128xf32> to vector<1x1x128xf32>
    tpu.vector_store %arg5[%c0_8, %c0_9, %c0_10], %12 {strides = array<i32>} : memref<1x2x128xf32, #tpu.memory_space<vmem>>, vector<1x1x128xf32>,
    %13 = arith.mulf %5, %5 : vector<256x128xf32>
    %cst_11 = arith.constant dense<0.000000e+00> : vector<128xf32>
    %14 = vector.multi_reduction <add>, %13, %cst_11 [0] : vector<256x128xf32> to vector<128xf32>
    %15 = vector.shape_cast %14 : vector<128xf32> to vector<1x128xf32>
    %c0_12 = arith.constant 0 : index
    %c1 = arith.constant 1 : index
    %c0_13 = arith.constant 0 : index
    %16 = vector.load %arg5[%c0_12, %c1, %c0_13] : memref<1x2x128xf32, #tpu.memory_space<vmem>>, vector<1x1x128xf32>
    %17 = vector.shape_cast %16 : vector<1x1x128xf32> to vector<1x128xf32>
    %18 = vector.shape_cast %15 : vector<1x128xf32> to vector<1x1x128xf32>
    tpu.vector_store %arg5[%c0_12, %c1, %c0_13], %18 {strides = array<i32>} : memref<1x2x128xf32, #tpu.memory_space<vmem>>, vector<1x1x128xf32>,
    return
  }
  func.func @transform_0(%arg0: i32) -> (i32, i32) {
    %c0_i32 = arith.constant 0 : i32
    %c0_i32_0 = arith.constant 0 : i32
    return %arg0, %c0_i32 : i32, i32
  }
  func.func @transform_1(%arg0: i32) -> (i32, i32) {
    %c0_i32 = arith.constant 0 : i32
    %c0_i32_0 = arith.constant 0 : i32
    %c0_i32_1 = arith.constant 0 : i32
    return %c0_i32, %c0_i32_0 : i32, i32
  }
  func.func @transform_2(%arg0: i32) -> (i32, i32) {
    %c0_i32 = arith.constant 0 : i32
    %c0_i32_0 = arith.constant 0 : i32
    %c0_i32_1 = arith.constant 0 : i32
    return %c0_i32, %c0_i32_0 : i32, i32
  }
  func.func @transform_3(%arg0: i32) -> (i32, i32) {
    %c0_i32 = arith.constant 0 : i32
    %c0_i32_0 = arith.constant 0 : i32
    return %arg0, %c0_i32 : i32, i32
  }
  func.func @transform_4(%arg0: i32) -> (i32, i32, i32) {
    %c0_i32 = arith.constant 0 : i32
    %c0_i32_0 = arith.constant 0 : i32
    %c0_i32_1 = arith.constant 0 : i32
    return %arg0, %c0_i32, %c0_i32_0 : i32, i32, i32
  }
}

module attributes {stable_mosaic.version = 11 : i64} {
  func.func @_bn_apply_kernel(%arg0: i32, %arg1: memref<256x128xbf16, #tpu.memory_space<vmem>>, %arg2: memref<2x128xf32, #tpu.memory_space<vmem>>, %arg3: memref<1x128xf32, #tpu.memory_space<vmem>>, %arg4: memref<1x128xf32, #tpu.memory_space<vmem>>, %arg5: memref<256x128xf32, #tpu.memory_space<vmem>>) attributes {dimension_semantics = [#tpu.dimension_semantics<parallel>], iteration_bounds = array<i64: 2>, scalar_prefetch = 0 : i64, scratch_operands = 0 : i64, tpu.core_type = #tpu.core_type<tc>, window_params = [{transform_indices = @transform_0, window_bounds = array<i64: 256, 128>}, {pipeline_mode = #tpu.pipeline_mode<synchronous>, transform_indices = @transform_1, window_bounds = array<i64: 2, 128>}, {pipeline_mode = #tpu.pipeline_mode<synchronous>, transform_indices = @transform_2, window_bounds = array<i64: 1, 128>}, {pipeline_mode = #tpu.pipeline_mode<synchronous>, transform_indices = @transform_3, window_bounds = array<i64: 1, 128>}, {transform_indices = @transform_4, window_bounds = array<i64: 256, 128>}]} {
    %c0 = arith.constant 0 : index
    %c0_0 = arith.constant 0 : index
    %0 = vector.load %arg2[%c0, %c0_0] : memref<2x128xf32, #tpu.memory_space<vmem>>, vector<1x128xf32>
    %cst = arith.constant 0.001953125 : f32
    %1 = vector.broadcast %cst : f32 to vector<1x128xf32>
    %2 = arith.mulf %0, %1 : vector<1x128xf32>
    %c1 = arith.constant 1 : index
    %c0_1 = arith.constant 0 : index
    %3 = vector.load %arg2[%c1, %c0_1] : memref<2x128xf32, #tpu.memory_space<vmem>>, vector<1x128xf32>
    %cst_2 = arith.constant 0.001953125 : f32
    %4 = vector.broadcast %cst_2 : f32 to vector<1x128xf32>
    %5 = arith.mulf %3, %4 : vector<1x128xf32>
    %6 = arith.mulf %2, %2 : vector<1x128xf32>
    %7 = arith.subf %5, %6 : vector<1x128xf32>
    %c0_3 = arith.constant 0 : index
    %c0_4 = arith.constant 0 : index
    %8 = vector.load %arg3[%c0_3, %c0_4] : memref<1x128xf32, #tpu.memory_space<vmem>>, vector<1x128xf32>
    %cst_5 = arith.constant 9.99999974E-6 : f32
    %9 = vector.broadcast %cst_5 : f32 to vector<1x128xf32>
    %10 = arith.addf %7, %9 : vector<1x128xf32>
    %11 = math.rsqrt %10 : vector<1x128xf32>
    %12 = arith.mulf %8, %11 : vector<1x128xf32>
    %c0_6 = arith.constant 0 : index
    %c0_7 = arith.constant 0 : index
    %13 = vector.load %arg4[%c0_6, %c0_7] : memref<1x128xf32, #tpu.memory_space<vmem>>, vector<1x128xf32>
    %14 = arith.mulf %2, %12 : vector<1x128xf32>
    %15 = arith.subf %13, %14 : vector<1x128xf32>
    %c0_8 = arith.constant 0 : index
    %c0_9 = arith.constant 0 : index
    %16 = vector.load %arg1[%c0_8, %c0_9] : memref<256x128xbf16, #tpu.memory_space<vmem>>, vector<256x128xbf16>
    %17 = arith.extf %16 : vector<256x128xbf16> to vector<256x128xf32>
    %18 = vector.broadcast %12 : vector<1x128xf32> to vector<256x128xf32>
    %19 = arith.mulf %17, %18 : vector<256x128xf32>
    %20 = vector.broadcast %15 : vector<1x128xf32> to vector<256x128xf32>
    %21 = arith.addf %19, %20 : vector<256x128xf32>
    %c0_10 = arith.constant 0 : index
    %c0_11 = arith.constant 0 : index
    %22 = vector.load %arg5[%c0_10, %c0_11] : memref<256x128xf32, #tpu.memory_space<vmem>>, vector<256x128xf32>
    tpu.vector_store %arg5[%c0_10, %c0_11], %21 {strides = array<i32>} : memref<256x128xf32, #tpu.memory_space<vmem>>, vector<256x128xf32>,
    return
  }
  func.func @transform_0(%arg0: i32) -> (i32, i32) {
    %c0_i32 = arith.constant 0 : i32
    %c0_i32_0 = arith.constant 0 : i32
    return %arg0, %c0_i32 : i32, i32
  }
  func.func @transform_1(%arg0: i32) -> (i32, i32) {
    %c0_i32 = arith.constant 0 : i32
    %c0_i32_0 = arith.constant 0 : i32
    %c0_i32_1 = arith.constant 0 : i32
    return %c0_i32, %c0_i32_0 : i32, i32
  }
  func.func @transform_2(%arg0: i32) -> (i32, i32) {
    %c0_i32 = arith.constant 0 : i32
    %c0_i32_0 = arith.constant 0 : i32
    %c0_i32_1 = arith.constant 0 : i32
    return %c0_i32, %c0_i32_0 : i32, i32
  }
  func.func @transform_3(%arg0: i32) -> (i32, i32) {
    %c0_i32 = arith.constant 0 : i32
    %c0_i32_0 = arith.constant 0 : i32
    %c0_i32_1 = arith.constant 0 : i32
    return %c0_i32, %c0_i32_0 : i32, i32
  }
  func.func @transform_4(%arg0: i32) -> (i32, i32) {
    %c0_i32 = arith.constant 0 : i32
    %c0_i32_0 = arith.constant 0 : i32
    return %arg0, %c0_i32 : i32, i32
  }
}

</mosaic_0001>

<llo_original>
// kernel: mynet_forward.4
$region0: #{mynet_forward.4}
  #allocation0 [shape = 'u32[]', space=smem, size = 0x4, offset = 0x4, fixed_abs, tag = 'smem constant byte address 0x4 - core index']
  #allocation1 [shape = 'u32[144,128]{1,0:T(1,128)}', space=vmem, size = 0x12000, scoped, tag = 'internal scratch']
  %s0 = inlined_call_operand.vmem [shape: bf16[512,128], index: 0, kind: input, shape index: {}]
  %s1 = inlined_call_operand.vmem [shape: bf16[128,128], index: 1, kind: input, shape index: {}]
  %s2 = inlined_call_operand.vmem [shape: f32[1,128], index: 2, kind: input, shape index: {}]
  %s3 = inlined_call_operand.vmem [shape: bf16[512,128], index: 3, kind: output, shape index: {0}]
  %s4 = inlined_call_operand.vmem [shape: f32[2,2,128], index: 4, kind: output, shape index: {1}]
  %5 = xla_tuple %s3, %s4
  %s6 = sld [smem:[#allocation0]]
  $region53: #{mynet_forward.4} parent=0
    _
  %s8 = ssub.s32 1, %s6
  %s9 = scalar_select 0, %s8, %s6
  loop: start=0, step=1, limit=4
  $region2: #{mynet_forward.4} parent=0 // loop_pre_header
    _
  $region3: #{mynet_forward.4} parent=0 // loop_header
    %s11 = sphi 0, %s15
    %p12 = scmp.ge.s32.totalorder %s11, 4
    %s21 = sphi 0, %s23
    %s24 = sphi 0, %s21
    %s25 = sphi 0, %s24
    %s41 = sphi 0, %s25
    %s45 = sphi 0, %s45
    %s47 = sphi 0, %s45
    %s48 = sphi 0, %s47
    %s62 = sphi 0, %s48
    %s66 = sphi 0, %s66
    %s68 = sphi 0, %s66
    %s69 = sphi 0, %s68
    %s83 = sphi 0, %s69
    %s89 = sphi 0, %s91
    %s92 = sphi 0, %s89
    %s93 = sphi 0, %s92
    %s109 = sphi 0, %s93
    %s115 = sphi 0, %s117
    %s118 = sphi 0, %s115
    %s119 = sphi 0, %s118
    %s135 = sphi 0, %s119
  $region4: #{mynet_forward.4} parent=0 // loop_header_branch
    %14 = sbr.rel (%p12) target = $region8
  $region5: #{mynet_forward.4} parent=0 // loop_body
    %s16 = ssub.s32 %s11, 1
    %s17 = ssub.s32 %s11, 2
    %s18 = sadd.s32 %s11, 1
    %s19 = ssub.s32 %s11, %s18
    %p20 = scmp.eq.s32.totalorder %s19, 0
    %s22 = sadd.s32 %s21, 1
    %s23 = scalar_select %p20, %s21, %s22
    %p26 = pneg %p20
    %p27 = scmp.eq.s32.totalorder %s11, 1
    %p28 = por %p26, %p27
    %p29 = scmp.ne.s32.totalorder %s21, %s24
    %p30 = scmp.eq.s32.totalorder %s11, 0
    %p31 = por %p29, %p30
    %p32 = scmp.ne.s32.totalorder %s21, %s24
    %p33 = scmp.eq.s32.totalorder %s16, 1
    %p34 = por %p32, %p33
    %p35 = scmp.ne.s32.totalorder %s24, %s25
    %p36 = scmp.eq.s32.totalorder %s16, 0
    %p37 = por %p35, %p36
    %p38 = scmp.ne.s32.totalorder %s24, %s25
    %p39 = scmp.eq.s32.totalorder %s17, 1
    %p40 = por %p38, %p39
    %p42 = scmp.ne.s32.totalorder %s25, %s41
    %p43 = scmp.eq.s32.totalorder %s17, 0
    %p44 = por %p42, %p43
    %s46 = sadd.s32 %s45, 1
    %p49 = scmp.eq.s32.totalorder %s11, 1
    %p50 = scmp.ne.s32.totalorder %s45, %s47
    %p51 = scmp.eq.s32.totalorder %s11, 0
    %p52 = por %p50, %p51
    %p53 = scmp.ne.s32.totalorder %s45, %s47
    %p54 = scmp.eq.s32.totalorder %s16, 1
    %p55 = por %p53, %p54
    %p56 = scmp.ne.s32.totalorder %s47, %s48
    %p57 = scmp.eq.s32.totalorder %s16, 0
    %p58 = por %p56, %p57
    %p59 = scmp.ne.s32.totalorder %s47, %s48
    %p60 = scmp.eq.s32.totalorder %s17, 1
    %p61 = por %p59, %p60
    %p63 = scmp.ne.s32.totalorder %s48, %s62
    %p64 = scmp.eq.s32.totalorder %s17, 0
    %p65 = por %p63, %p64
    %s67 = sadd.s32 %s66, 1
    %p70 = scmp.eq.s32.totalorder %s11, 1
    %p71 = scmp.ne.s32.totalorder %s66, %s68
    %p72 = scmp.eq.s32.totalorder %s11, 0
    %p73 = por %p71, %p72
    %p74 = scmp.ne.s32.totalorder %s66, %s68
    %p75 = scmp.eq.s32.totalorder %s16, 1
    %p76 = por %p74, %p75
    %p77 = scmp.ne.s32.totalorder %s68, %s69
    %p78 = scmp.eq.s32.totalorder %s16, 0
    %p79 = por %p77, %p78
    %p80 = scmp.ne.s32.totalorder %s68, %s69
    %p81 = scmp.eq.s32.totalorder %s17, 1
    %p82 = por %p80, %p81
    %p84 = scmp.ne.s32.totalorder %s69, %s83
    %p85 = scmp.eq.s32.totalorder %s17, 0
    %p86 = por %p84, %p85
    %s87 = ssub.s32 %s11, %s18
    %p88 = scmp.eq.s32.totalorder %s87, 0
    %s90 = sadd.s32 %s89, 1
    %s91 = scalar_select %p88, %s89, %s90
    %p94 = pneg %p88
    %p95 = scmp.eq.s32.totalorder %s11, 1
    %p96 = por %p94, %p95
    %p97 = scmp.ne.s32.totalorder %s89, %s92
    %p98 = scmp.eq.s32.totalorder %s11, 0
    %p99 = por %p97, %p98
    %p100 = scmp.ne.s32.totalorder %s89, %s92
    %p101 = scmp.eq.s32.totalorder %s16, 1
    %p102 = por %p100, %p101
    %p103 = scmp.ne.s32.totalorder %s92, %s93
    %p104 = scmp.eq.s32.totalorder %s16, 0
    %p105 = por %p103, %p104
    %p106 = scmp.ne.s32.totalorder %s92, %s93
    %p107 = scmp.eq.s32.totalorder %s17, 1
    %p108 = por %p106, %p107
    %p110 = scmp.ne.s32.totalorder %s93, %s109
    %p111 = scmp.eq.s32.totalorder %s17, 0
    %p112 = por %p110, %p111
    %s113 = ssub.s32 %s11, %s18
    %p114 = scmp.eq.s32.totalorder %s113, 0
    %s116 = sadd.s32 %s115, 1
    %s117 = scalar_select %p114, %s115, %s116
    %p120 = pneg %p114
    %p121 = scmp.eq.s32.totalorder %s11, 1
    %p122 = por %p120, %p121
    %p123 = scmp.ne.s32.totalorder %s115, %s118
    %p124 = scmp.eq.s32.totalorder %s11, 0
    %p125 = por %p123, %p124
    %p126 = scmp.ne.s32.totalorder %s115, %s118
    %p127 = scmp.eq.s32.totalorder %s16, 1
    %p128 = por %p126, %p127
    %p129 = scmp.ne.s32.totalorder %s118, %s119
    %p130 = scmp.eq.s32.totalorder %s16, 0
    %p131 = por %p129, %p130
    %p132 = scmp.ne.s32.totalorder %s118, %s119
    %p133 = scmp.eq.s32.totalorder %s17, 1
    %p134 = por %p132, %p133
    %p136 = scmp.ne.s32.totalorder %s119, %s135
    %p137 = scmp.eq.s32.totalorder %s17, 0
    %p138 = por %p136, %p137
    %p139 = scmp.le.s32.totalorder 1, %s11
    %p140 = scmp.lt.s32.totalorder %s11, 3
    %p141 = pnand %p139, %p140
    %p142 = pneg %p141
    // Predicated region
    $region9: #{mynet_forward.4} parent=5 // pred_check
      _
    $region10: #{mynet_forward.4} parent=5 // pred_check_branch
      %144 = sbr.rel (%p141) target = $region12
    $region11: #{mynet_forward.4} parent=5 // pred_region
      %s145 = ssub.s32 %s11, 1
      // Predicated region
      $region13: #{mynet_forward.4} parent=11 // pred_check
        %p146 = pneg %p58
      $region14: #{mynet_forward.4} parent=11 // pred_check_branch
        %148 = sbr.rel (%p146) target = $region16
      $region15: #{mynet_forward.4} parent=11 // pred_region
        _
      $region16: #{mynet_forward.4} parent=11 // pred_fallthru
        _
      // Predicated region
      $region17: #{mynet_forward.4} parent=11 // pred_check
        %p149 = pneg %p79
      $region18: #{mynet_forward.4} parent=11 // pred_check_branch
        %151 = sbr.rel (%p149) target = $region20
      $region19: #{mynet_forward.4} parent=11 // pred_region
        _
      $region20: #{mynet_forward.4} parent=11 // pred_fallthru
        _
    $region12: #{mynet_forward.4} parent=5 // pred_fallthru
      _
    %p152 = scmp.lt.s32.totalorder %s11, 2
    // Predicated region
    $region21: #{mynet_forward.4} parent=5 // pred_check
      %p153 = pneg %p152
    $region22: #{mynet_forward.4} parent=5 // pred_check_branch
      %155 = sbr.rel (%p153) target = $region24
    $region23: #{mynet_forward.4} parent=5 // pred_region
      // Predicated region
      $region25: #{mynet_forward.4} parent=23 // pred_check
        %p156 = pneg %p31
      $region26: #{mynet_forward.4} parent=23 // pred_check_branch
        %158 = sbr.rel (%p156) target = $region28
      $region27: #{mynet_forward.4} parent=23 // pred_region
        %s159 = smul.u32 32, %s11
        %p160 = scmp.lt.s32.totalorder %s159, 63
        %s161 = scalar_select %p160, %s159, 63
        %s162 = smul.addr %s161, 4
        %s163 = scalar_lea.vmem %s0, %s162
        %s164 = smul.u32 32, %s11
      $region28: #{mynet_forward.4} parent=23 // pred_fallthru
        _
    $region24: #{mynet_forward.4} parent=5 // pred_fallthru
      _
    %p165 = scmp.le.s32.totalorder 1, %s11
    %p166 = scmp.lt.s32.totalorder %s11, 3
    %p167 = pnand %p165, %p166
    %p168 = pneg %p167
    // Predicated region
    $region29: #{mynet_forward.4} parent=5 // pred_check
      _
    $region30: #{mynet_forward.4} parent=5 // pred_check_branch
      %170 = sbr.rel (%p167) target = $region32
    $region31: #{mynet_forward.4} parent=5 // pred_region
      %s171 = ssub.s32 %s11, 1
      %s172 = smul.u32 32, %s16
      %p173 = scmp.lt.s32.totalorder %s172, 63
      %s174 = scalar_select %p173, %s172, 63
      %s175 = smul.addr %s174, 4
      %s176 = scalar_lea.vmem %s0, %s175
      %p177 = pneg %p37
      %p178 = pneg %p34
      %p179 = pneg %p58
      %p180 = pneg %p55
      %p181 = pneg %p79
      %p182 = pneg %p76
      %p183 = pneg %p105
      %p184 = pneg %p102
      %s185 = smul.u32 32, %s16
      %p186 = scmp.lt.s32.totalorder %s185, 63
      %s187 = scalar_select %p186, %s185, 63
      %s188 = smul.addr %s187, 4
      %s189 = scalar_lea.vmem %s3, %s188
      %p190 = pneg %p131
      %p191 = pneg %p128
      %p192 = scmp.lt.s32.totalorder %s16, 1
      %s193 = scalar_select %p192, %s16, 1
      %s194 = smul.addr %s193, 2
      %s195 = scalar_lea.vmem %s4, %s194
      %s196 = smul.u32 32, %s16
      %p197 = scmp.lt.s32.totalorder %s196, 63
      %s198 = scalar_select %p197, %s196, 63
      %s199 = smul.addr %s198, 4
      %s200 = scalar_lea.vmem %s0, %s199
      %s201 = smul.u32 32, %s16
      %s202 = smul.u32 32, %s16
      %p203 = scmp.lt.s32.totalorder %s202, 63
      %s204 = scalar_select %p203, %s202, 63
      %s205 = smul.addr %s204, 4
      %s206 = scalar_lea.vmem %s3, %s205
      %s207 = smul.u32 32, %s16
      %p208 = scmp.lt.s32.totalorder %s16, 1
      %s209 = scalar_select %p208, %s16, 1
      %s210 = smul.addr %s209, 2
      %s211 = scalar_lea.vmem %s4, %s210
      %v213 = vld [vmem:[%s200] sm:$0xf]
      %v214 = vld [vmem:[%s200 + $0x4] sm:$0xf]
      %v215 = vld [vmem:[%s200 + $0x8] sm:$0xf]
      %v216 = vld [vmem:[%s200 + $0xc] sm:$0xf]
      %v217 = vld [vmem:[%s200 + $0x10] sm:$0xf]
      %v218 = vld [vmem:[%s200 + $0x14] sm:$0xf]
      %v219 = vld [vmem:[%s200 + $0x18] sm:$0xf]
      %v220 = vld [vmem:[%s200 + $0x1c] sm:$0xf]
      %v221 = vld [vmem:[%s200 + $0x20] sm:$0xf]
      %v222 = vld [vmem:[%s200 + $0x24] sm:$0xf]
      %v223 = vld [vmem:[%s200 + $0x28] sm:$0xf]
      %v224 = vld [vmem:[%s200 + $0x2c] sm:$0xf]
      %v225 = vld [vmem:[%s200 + $0x30] sm:$0xf]
      %v226 = vld [vmem:[%s200 + $0x34] sm:$0xf]
      %v227 = vld [vmem:[%s200 + $0x38] sm:$0xf]
      %v228 = vld [vmem:[%s200 + $0x3c] sm:$0xf]
      %v229 = vld [vmem:[%s200 + $0x40] sm:$0xf]
      %v230 = vld [vmem:[%s200 + $0x44] sm:$0xf]
      %v231 = vld [vmem:[%s200 + $0x48] sm:$0xf]
      %v232 = vld [vmem:[%s200 + $0x4c] sm:$0xf]
      %v233 = vld [vmem:[%s200 + $0x50] sm:$0xf]
      %v234 = vld [vmem:[%s200 + $0x54] sm:$0xf]
      %v235 = vld [vmem:[%s200 + $0x58] sm:$0xf]
      %v236 = vld [vmem:[%s200 + $0x5c] sm:$0xf]
      %v237 = vld [vmem:[%s200 + $0x60] sm:$0xf]
      %v238 = vld [vmem:[%s200 + $0x64] sm:$0xf]
      %v239 = vld [vmem:[%s200 + $0x68] sm:$0xf]
      %v240 = vld [vmem:[%s200 + $0x6c] sm:$0xf]
      %v241 = vld [vmem:[%s200 + $0x70] sm:$0xf]
      %v242 = vld [vmem:[%s200 + $0x74] sm:$0xf]
      %v243 = vld [vmem:[%s200 + $0x78] sm:$0xf]
      %v244 = vld [vmem:[%s200 + $0x7c] sm:$0xf]
      %v245 = vld [vmem:[%s1] sm:$0xf]
      %v246 = vld [vmem:[%s1 + $0x4] sm:$0xf]
      %v247 = vld [vmem:[%s1 + $0x8] sm:$0xf]
      %v248 = vld [vmem:[%s1 + $0xc] sm:$0xf]
      %v249 = vld [vmem:[%s1 + $0x10] sm:$0xf]
      %v250 = vld [vmem:[%s1 + $0x14] sm:$0xf]
      %v251 = vld [vmem:[%s1 + $0x18] sm:$0xf]
      %v252 = vld [vmem:[%s1 + $0x1c] sm:$0xf]
      %v253 = vld [vmem:[%s1 + $0x20] sm:$0xf]
      %v254 = vld [vmem:[%s1 + $0x24] sm:$0xf]
      %v255 = vld [vmem:[%s1 + $0x28] sm:$0xf]
      %v256 = vld [vmem:[%s1 + $0x2c] sm:$0xf]
      %v257 = vld [vmem:[%s1 + $0x30] sm:$0xf]
      %v258 = vld [vmem:[%s1 + $0x34] sm:$0xf]
      %v259 = vld [vmem:[%s1 + $0x38] sm:$0xf]
      %v260 = vld [vmem:[%s1 + $0x3c] sm:$0xf]
      %v261 = vld [vmem:[%s2] sm:$0x1]
      %v263 = vlaneseq
      %v264 = vshrl.u32 %v263, 7
      %v265 = vsub.s32 0, %v264
      %v266 = vrot.slane %v261, %v265
      %v300 = vunpack.c.l.b16 %v213
      %v301 = vunpack.c.l.b16 %v214
      %v302 = vunpack.c.l.b16 %v215
      %v303 = vunpack.c.l.b16 %v216
      %v304 = vunpack.c.l.b16 %v217
      %v305 = vunpack.c.l.b16 %v218
      %v306 = vunpack.c.l.b16 %v219
      %v307 = vunpack.c.l.b16 %v220
      %v308 = vunpack.c.l.b16 %v221
      %v309 = vunpack.c.l.b16 %v222
      %v310 = vunpack.c.l.b16 %v223
      %v311 = vunpack.c.l.b16 %v224
      %v312 = vunpack.c.l.b16 %v225
      %v313 = vunpack.c.l.b16 %v226
      %v314 = vunpack.c.l.b16 %v227
      %v315 = vunpack.c.l.b16 %v228
      %v316 = vunpack.c.l.b16 %v229
      %v317 = vunpack.c.l.b16 %v230
      %v318 = vunpack.c.l.b16 %v231
      %v319 = vunpack.c.l.b16 %v232
      %v320 = vunpack.c.l.b16 %v233
      %v321 = vunpack.c.l.b16 %v234
      %v322 = vunpack.c.l.b16 %v235
      %v323 = vunpack.c.l.b16 %v236
      %v324 = vunpack.c.l.b16 %v237
      %v325 = vunpack.c.l.b16 %v238
      %v326 = vunpack.c.l.b16 %v239
      %v327 = vunpack.c.l.b16 %v240
      %v328 = vunpack.c.l.b16 %v241
      %v329 = vunpack.c.l.b16 %v242
      %v330 = vunpack.c.l.b16 %v243
      %v331 = vunpack.c.l.b16 %v244
      %v332 = vpack.c.b16 %v301, %v300
      %v333 = vpack.c.b16 %v303, %v302
      %v334 = vpack.c.b16 %v305, %v304
      %v335 = vpack.c.b16 %v307, %v306
      %v336 = vpack.c.b16 %v309, %v308
      %v337 = vpack.c.b16 %v311, %v310
      %v338 = vpack.c.b16 %v313, %v312
      %v339 = vpack.c.b16 %v315, %v314
      %v340 = vpack.c.b16 %v317, %v316
      %v341 = vpack.c.b16 %v319, %v318
      %v342 = vpack.c.b16 %v321, %v320
      %v343 = vpack.c.b16 %v323, %v322
      %v344 = vpack.c.b16 %v325, %v324
      %v345 = vpack.c.b16 %v327, %v326
      %v346 = vpack.c.b16 %v329, %v328
      %v347 = vpack.c.b16 %v331, %v330
      %v380 = vunpack.c.l.b16 %v245
      %v381 = vunpack.c.l.b16 %v246
      %v382 = vunpack.c.l.b16 %v247
      %v383 = vunpack.c.l.b16 %v248
      %v384 = vunpack.c.l.b16 %v249
      %v385 = vunpack.c.l.b16 %v250
      %v386 = vunpack.c.l.b16 %v251
      %v387 = vunpack.c.l.b16 %v252
      %v388 = vunpack.c.l.b16 %v253
      %v389 = vunpack.c.l.b16 %v254
      %v390 = vunpack.c.l.b16 %v255
      %v391 = vunpack.c.l.b16 %v256
      %v392 = vunpack.c.l.b16 %v257
      %v393 = vunpack.c.l.b16 %v258
      %v394 = vunpack.c.l.b16 %v259
      %v395 = vunpack.c.l.b16 %v260
      %v396 = vpack.c.b16 %v381, %v380
      %v397 = vpack.c.b16 %v383, %v382
      %v398 = vpack.c.b16 %v385, %v384
      %v399 = vpack.c.b16 %v387, %v386
      %v400 = vpack.c.b16 %v389, %v388
      %v401 = vpack.c.b16 %v391, %v390
      %v402 = vpack.c.b16 %v393, %v392
      %v403 = vpack.c.b16 %v395, %v394
      %412 = vmatprep.subr.bf16.mxu0 0
      %413 = vmatpush1.bf16.msra.mxu0 %v403
      %414 = vmatprep.subr.bf16.mxu0 0
      %415 = vmatpush1.bf16.msra.mxu0 %v402
      %416 = vmatprep.subr.bf16.mxu0 0
      %417 = vmatpush1.bf16.msra.mxu0 %v401
      %418 = vmatprep.subr.bf16.mxu0 0
      %419 = vmatpush1.bf16.msra.mxu0 %v400
      %420 = vmatprep.subr.bf16.mxu0 0
      %421 = vmatpush1.bf16.msra.mxu0 %v399
      %422 = vmatprep.subr.bf16.mxu0 0
      %423 = vmatpush1.bf16.msra.mxu0 %v398
      %424 = vmatprep.subr.bf16.mxu0 0
      %425 = vmatpush1.bf16.msra.mxu0 %v397
      %426 = vmatprep.subr.bf16.mxu0 0
      %427 = vmatpush1.bf16.msra.mxu0 %v396
      %428 = vmatprep.subr.bf16.mxu0 0
      %429 = vmatpush2.bf16.msra.mxu0 0
      %430 = vmatprep.subr.bf16.mxu0 0
      %431 = vmatpush2.bf16.msra.mxu0 0
      %432 = vmatprep.subr.bf16.mxu0 0
      %433 = vmatpush2.bf16.msra.mxu0 0
      %434 = vmatprep.subr.bf16.mxu0 0
      %435 = vmatpush2.bf16.msra.mxu0 0
      %436 = vmatprep.subr.bf16.mxu0 0
      %437 = vmatpush2.bf16.msra.mxu0 0
      %438 = vmatprep.subr.bf16.mxu0 0
      %439 = vmatpush2.bf16.msra.mxu0 0
      %440 = vmatprep.subr.bf16.mxu0 0
      %441 = vmatpush2.bf16.msra.mxu0 0
      %442 = vmatprep.subr.bf16.mxu0 0
      %443 = vmatpush2.bf16.msra.mxu0 0
      %444 = vmatprep.mubr.bf16.mxu0 0
      %445 = vmatmul.mubr.bf16.gmra.mxu0 %v332
      %v446 = vpop.f32.mrf.mxu0
      %v447 = vadd.f32 %v266, %v446
      %v448 = vpop.f32.mrf.mxu0
      %v449 = vpop.f32.mrf.mxu0
      %v450 = vadd.f32 %v266, %v449
      %v451 = vpop.f32.mrf.mxu0
      %452 = vmatprep.mubr.bf16.mxu0 0
      %453 = vmatmul.mubr.bf16.gmra.mxu0 %v333
      %v454 = vpop.f32.mrf.mxu0
      %v455 = vadd.f32 %v266, %v454
      %v456 = vpop.f32.mrf.mxu0
      %v457 = vpop.f32.mrf.mxu0
      %v458 = vadd.f32 %v266, %v457
      %v459 = vpop.f32.mrf.mxu0
      %460 = vmatprep.mubr.bf16.mxu0 0
      %461 = vmatmul.mubr.bf16.gmra.mxu0 %v334
      %v462 = vpop.f32.mrf.mxu0
      %v463 = vadd.f32 %v266, %v462
      %v464 = vpop.f32.mrf.mxu0
      %v465 = vpop.f32.mrf.mxu0
      %v466 = vadd.f32 %v266, %v465
      %v467 = vpop.f32.mrf.mxu0
      %468 = vmatprep.mubr.bf16.mxu0 0
      %469 = vmatmul.mubr.bf16.gmra.mxu0 %v335
      %v470 = vpop.f32.mrf.mxu0
      %v471 = vadd.f32 %v266, %v470
      %v472 = vpop.f32.mrf.mxu0
      %v473 = vpop.f32.mrf.mxu0
      %v474 = vadd.f32 %v266, %v473
      %v475 = vpop.f32.mrf.mxu0
      %476 = vmatprep.mubr.bf16.mxu0 0
      %477 = vmatmul.mubr.bf16.gmra.mxu0 %v336
      %v478 = vpop.f32.mrf.mxu0
      %v479 = vadd.f32 %v266, %v478
      %v480 = vpop.f32.mrf.mxu0
      %v481 = vpop.f32.mrf.mxu0
      %v482 = vadd.f32 %v266, %v481
      %v483 = vpop.f32.mrf.mxu0
      %484 = vmatprep.mubr.bf16.mxu0 0
      %485 = vmatmul.mubr.bf16.gmra.mxu0 %v337
      %v486 = vpop.f32.mrf.mxu0
      %v487 = vadd.f32 %v266, %v486
      %v488 = vpop.f32.mrf.mxu0
      %v489 = vpop.f32.mrf.mxu0
      %v490 = vadd.f32 %v266, %v489
      %v491 = vpop.f32.mrf.mxu0
      %492 = vmatprep.mubr.bf16.mxu0 0
      %493 = vmatmul.mubr.bf16.gmra.mxu0 %v338
      %v494 = vpop.f32.mrf.mxu0
      %v495 = vadd.f32 %v266, %v494
      %v496 = vpop.f32.mrf.mxu0
      %v497 = vpop.f32.mrf.mxu0
      %v498 = vadd.f32 %v266, %v497
      %v499 = vpop.f32.mrf.mxu0
      %500 = vmatprep.mubr.bf16.mxu0 0
      %501 = vmatmul.mubr.bf16.gmra.mxu0 %v339
      %v502 = vpop.f32.mrf.mxu0
      %v503 = vadd.f32 %v266, %v502
      %v504 = vpop.f32.mrf.mxu0
      %v505 = vpop.f32.mrf.mxu0
      %v506 = vadd.f32 %v266, %v505
      %v507 = vpop.f32.mrf.mxu0
      %508 = vmatprep.mubr.bf16.mxu0 0
      %509 = vmatmul.mubr.bf16.gmra.mxu0 %v340
      %v510 = vpop.f32.mrf.mxu0
      %v511 = vadd.f32 %v266, %v510
      %v512 = vpop.f32.mrf.mxu0
      %v513 = vpop.f32.mrf.mxu0
      %v514 = vadd.f32 %v266, %v513
      %v515 = vpop.f32.mrf.mxu0
      %516 = vmatprep.mubr.bf16.mxu0 0
      %517 = vmatmul.mubr.bf16.gmra.mxu0 %v341
      %v518 = vpop.f32.mrf.mxu0
      %v519 = vadd.f32 %v266, %v518
      %v520 = vpop.f32.mrf.mxu0
      %v521 = vpop.f32.mrf.mxu0
      %v522 = vadd.f32 %v266, %v521
      %v523 = vpop.f32.mrf.mxu0
      %524 = vmatprep.mubr.bf16.mxu0 0
      %525 = vmatmul.mubr.bf16.gmra.mxu0 %v342
      %v526 = vpop.f32.mrf.mxu0
      %v527 = vadd.f32 %v266, %v526
      %v528 = vpop.f32.mrf.mxu0
      %v529 = vpop.f32.mrf.mxu0
      %v530 = vadd.f32 %v266, %v529
      %v531 = vpop.f32.mrf.mxu0
      %532 = vmatprep.mubr.bf16.mxu0 0
      %533 = vmatmul.mubr.bf16.gmra.mxu0 %v343
      %v534 = vpop.f32.mrf.mxu0
      %v535 = vadd.f32 %v266, %v534
      %v536 = vpop.f32.mrf.mxu0
      %v537 = vpop.f32.mrf.mxu0
      %v538 = vadd.f32 %v266, %v537
      %v539 = vpop.f32.mrf.mxu0
      %540 = vmatprep.mubr.bf16.mxu0 0
      %541 = vmatmul.mubr.bf16.gmra.mxu0 %v344
      %v542 = vpop.f32.mrf.mxu0
      %v543 = vadd.f32 %v266, %v542
      %v544 = vpop.f32.mrf.mxu0
      %v545 = vpop.f32.mrf.mxu0
      %v546 = vadd.f32 %v266, %v545
      %v547 = vpop.f32.mrf.mxu0
      %548 = vmatprep.mubr.bf16.mxu0 0
      %549 = vmatmul.mubr.bf16.gmra.mxu0 %v345
      %v550 = vpop.f32.mrf.mxu0
      %v551 = vadd.f32 %v266, %v550
      %v552 = vpop.f32.mrf.mxu0
      %v553 = vpop.f32.mrf.mxu0
      %v554 = vadd.f32 %v266, %v553
      %v555 = vpop.f32.mrf.mxu0
      %556 = vmatprep.mubr.bf16.mxu0 0
      %557 = vmatmul.mubr.bf16.gmra.mxu0 %v346
      %v558 = vpop.f32.mrf.mxu0
      %v559 = vadd.f32 %v266, %v558
      %v560 = vpop.f32.mrf.mxu0
      %v561 = vpop.f32.mrf.mxu0
      %v562 = vadd.f32 %v266, %v561
      %v563 = vpop.f32.mrf.mxu0
      %564 = vmatprep.mubr.bf16.mxu0 0
      %565 = vmatmul.mubr.bf16.gmra.mxu0 %v347
      %v566 = vpop.f32.mrf.mxu0
      %v567 = vadd.f32 %v266, %v566
      %v568 = vpop.f32.mrf.mxu0
      %v569 = vpop.f32.mrf.mxu0
      %v570 = vadd.f32 %v266, %v569
      %v571 = vpop.f32.mrf.mxu0
      %572 = vdwg.mxu0
      %v573 = vmax.f32 %v447, 0.0
      %v574 = vmax.f32 %v450, 0.0
      %v575 = vmax.f32 %v455, 0.0
      %v576 = vmax.f32 %v458, 0.0
      %v577 = vmax.f32 %v463, 0.0
      %v578 = vmax.f32 %v466, 0.0
      %v579 = vmax.f32 %v471, 0.0
      %v580 = vmax.f32 %v474, 0.0
      %v581 = vmax.f32 %v479, 0.0
      %v582 = vmax.f32 %v482, 0.0
      %v583 = vmax.f32 %v487, 0.0
      %v584 = vmax.f32 %v490, 0.0
      %v585 = vmax.f32 %v495, 0.0
      %v586 = vmax.f32 %v498, 0.0
      %v587 = vmax.f32 %v503, 0.0
      %v588 = vmax.f32 %v506, 0.0
      %v589 = vmax.f32 %v511, 0.0
      %v590 = vmax.f32 %v514, 0.0
      %v591 = vmax.f32 %v519, 0.0
      %v592 = vmax.f32 %v522, 0.0
      %v593 = vmax.f32 %v527, 0.0
      %v594 = vmax.f32 %v530, 0.0
      %v595 = vmax.f32 %v535, 0.0
      %v596 = vmax.f32 %v538, 0.0
      %v597 = vmax.f32 %v543, 0.0
      %v598 = vmax.f32 %v546, 0.0
      %v599 = vmax.f32 %v551, 0.0
      %v600 = vmax.f32 %v554, 0.0
      %v601 = vmax.f32 %v559, 0.0
      %v602 = vmax.f32 %v562, 0.0
      %v603 = vmax.f32 %v567, 0.0
      %v604 = vmax.f32 %v570, 0.0
      %v605 = vpack.c.bf16 %v574, %v573
      %v606 = vpack.c.bf16 %v576, %v575
      %v607 = vpack.c.bf16 %v578, %v577
      %v608 = vpack.c.bf16 %v580, %v579
      %v609 = vpack.c.bf16 %v582, %v581
      %v610 = vpack.c.bf16 %v584, %v583
      %v611 = vpack.c.bf16 %v586, %v585
      %v612 = vpack.c.bf16 %v588, %v587
      %v613 = vpack.c.bf16 %v590, %v589
      %v614 = vpack.c.bf16 %v592, %v591
      %v615 = vpack.c.bf16 %v594, %v593
      %v616 = vpack.c.bf16 %v596, %v595
      %v617 = vpack.c.bf16 %v598, %v597
      %v618 = vpack.c.bf16 %v600, %v599
      %v619 = vpack.c.bf16 %v602, %v601
      %v620 = vpack.c.bf16 %v604, %v603
      %v637 = vunpack.c.l.b16 %v605
      %v638 = vunpack.c.h.b16 %v605
      %v639 = vunpack.c.l.b16 %v606
      %v640 = vunpack.c.h.b16 %v606
      %v641 = vunpack.c.l.b16 %v607
      %v642 = vunpack.c.h.b16 %v607
      %v643 = vunpack.c.l.b16 %v608
      %v644 = vunpack.c.h.b16 %v608
      %v645 = vunpack.c.l.b16 %v609
      %v646 = vunpack.c.h.b16 %v609
      %v647 = vunpack.c.l.b16 %v610
      %v648 = vunpack.c.h.b16 %v610
      %v649 = vunpack.c.l.b16 %v611
      %v650 = vunpack.c.h.b16 %v611
      %v651 = vunpack.c.l.b16 %v612
      %v652 = vunpack.c.h.b16 %v612
      %v653 = vunpack.c.l.b16 %v613
      %v654 = vunpack.c.h.b16 %v613
      %v655 = vunpack.c.l.b16 %v614
      %v656 = vunpack.c.h.b16 %v614
      %v657 = vunpack.c.l.b16 %v615
      %v658 = vunpack.c.h.b16 %v615
      %v659 = vunpack.c.l.b16 %v616
      %v660 = vunpack.c.h.b16 %v616
      %v661 = vunpack.c.l.b16 %v617
      %v662 = vunpack.c.h.b16 %v617
      %v663 = vunpack.c.l.b16 %v618
      %v664 = vunpack.c.h.b16 %v618
      %v665 = vunpack.c.l.b16 %v619
      %v666 = vunpack.c.h.b16 %v619
      %v667 = vunpack.c.l.b16 %v620
      %v668 = vunpack.c.h.b16 %v620
      %v669 = vpack.c.b16 %v637, %v637
      %v670 = vpack.c.b16 %v638, %v638
      %v671 = vpack.c.b16 %v639, %v639
      %v672 = vpack.c.b16 %v640, %v640
      %v673 = vpack.c.b16 %v641, %v641
      %v674 = vpack.c.b16 %v642, %v642
      %v675 = vpack.c.b16 %v643, %v643
      %v676 = vpack.c.b16 %v644, %v644
      %v677 = vpack.c.b16 %v645, %v645
      %v678 = vpack.c.b16 %v646, %v646
      %v679 = vpack.c.b16 %v647, %v647
      %v680 = vpack.c.b16 %v648, %v648
      %v681 = vpack.c.b16 %v649, %v649
      %v682 = vpack.c.b16 %v650, %v650
      %v683 = vpack.c.b16 %v651, %v651
      %v684 = vpack.c.b16 %v652, %v652
      %v685 = vpack.c.b16 %v653, %v653
      %v686 = vpack.c.b16 %v654, %v654
      %v687 = vpack.c.b16 %v655, %v655
      %v688 = vpack.c.b16 %v656, %v656
      %v689 = vpack.c.b16 %v657, %v657
      %v690 = vpack.c.b16 %v658, %v658
      %v691 = vpack.c.b16 %v659, %v659
      %v692 = vpack.c.b16 %v660, %v660
      %v693 = vpack.c.b16 %v661, %v661
      %v694 = vpack.c.b16 %v662, %v662
      %v695 = vpack.c.b16 %v663, %v663
      %v696 = vpack.c.b16 %v664, %v664
      %v697 = vpack.c.b16 %v665, %v665
      %v698 = vpack.c.b16 %v666, %v666
      %v699 = vpack.c.b16 %v667, %v667
      %v700 = vpack.c.b16 %v668, %v668
      %733 = vst [vmem:[%s206] sm:$0xf] %v669
      %734 = vst [vmem:[%s206 + $0x4] sm:$0xf] %v670
      %735 = vst [vmem:[%s206 + $0x8] sm:$0xf] %v671
      %736 = vst [vmem:[%s206 + $0xc] sm:$0xf] %v672
      %737 = vst [vmem:[%s206 + $0x10] sm:$0xf] %v673
      %738 = vst [vmem:[%s206 + $0x14] sm:$0xf] %v674
      %739 = vst [vmem:[%s206 + $0x18] sm:$0xf] %v675
      %740 = vst [vmem:[%s206 + $0x1c] sm:$0xf] %v676
      %741 = vst [vmem:[%s206 + $0x20] sm:$0xf] %v677
      %742 = vst [vmem:[%s206 + $0x24] sm:$0xf] %v678
      %743 = vst [vmem:[%s206 + $0x28] sm:$0xf] %v679
      %744 = vst [vmem:[%s206 + $0x2c] sm:$0xf] %v680
      %745 = vst [vmem:[%s206 + $0x30] sm:$0xf] %v681
      %746 = vst [vmem:[%s206 + $0x34] sm:$0xf] %v682
      %747 = vst [vmem:[%s206 + $0x38] sm:$0xf] %v683
      %748 = vst [vmem:[%s206 + $0x3c] sm:$0xf] %v684
      %749 = vst [vmem:[%s206 + $0x40] sm:$0xf] %v685
      %750 = vst [vmem:[%s206 + $0x44] sm:$0xf] %v686
      %751 = vst [vmem:[%s206 + $0x48] sm:$0xf] %v687
      %752 = vst [vmem:[%s206 + $0x4c] sm:$0xf] %v688
      %753 = vst [vmem:[%s206 + $0x50] sm:$0xf] %v689
      %754 = vst [vmem:[%s206 + $0x54] sm:$0xf] %v690
      %755 = vst [vmem:[%s206 + $0x58] sm:$0xf] %v691
      %756 = vst [vmem:[%s206 + $0x5c] sm:$0xf] %v692
      %757 = vst [vmem:[%s206 + $0x60] sm:$0xf] %v693
      %758 = vst [vmem:[%s206 + $0x64] sm:$0xf] %v694
      %759 = vst [vmem:[%s206 + $0x68] sm:$0xf] %v695
      %760 = vst [vmem:[%s206 + $0x6c] sm:$0xf] %v696
      %761 = vst [vmem:[%s206 + $0x70] sm:$0xf] %v697
      %762 = vst [vmem:[%s206 + $0x74] sm:$0xf] %v698
      %763 = vst [vmem:[%s206 + $0x78] sm:$0xf] %v699
      %764 = vst [vmem:[%s206 + $0x7c] sm:$0xf] %v700
      %v765 = vadd.f32 %v573, %v574
      %v766 = vadd.f32 %v765, %v575
      %v767 = vadd.f32 %v766, %v576
      %v768 = vadd.f32 %v767, %v577
      %v769 = vadd.f32 %v768, %v578
      %v770 = vadd.f32 %v769, %v579
      %v771 = vadd.f32 %v770, %v580
      %v772 = vadd.f32 %v771, %v581
      %v773 = vadd.f32 %v772, %v582
      %v774 = vadd.f32 %v773, %v583
      %v775 = vadd.f32 %v774, %v584
      %v776 = vadd.f32 %v775, %v585
      %v777 = vadd.f32 %v776, %v586
      %v778 = vadd.f32 %v777, %v587
      %v779 = vadd.f32 %v778, %v588
      %v780 = vadd.f32 %v779, %v589
      %v781 = vadd.f32 %v780, %v590
      %v782 = vadd.f32 %v781, %v591
      %v783 = vadd.f32 %v782, %v592
      %v784 = vadd.f32 %v783, %v593
      %v785 = vadd.f32 %v784, %v594
      %v786 = vadd.f32 %v785, %v595
      %v787 = vadd.f32 %v786, %v596
      %v788 = vadd.f32 %v787, %v597
      %v789 = vadd.f32 %v788, %v598
      %v790 = vadd.f32 %v789, %v599
      %v791 = vadd.f32 %v790, %v600
      %v792 = vadd.f32 %v791, %v601
      %v793 = vadd.f32 %v792, %v602
      %v794 = vadd.f32 %v793, %v603
      %v795 = vadd.f32 %v794, %v604
      %v796 = vrot.slane %v795, 4
      %v797 = vadd.f32 %v795, %v796
      %v798 = vrot.slane %v797, 2
      %v799 = vadd.f32 %v797, %v798
      %v800 = vrot.slane %v799, 1
      %v801 = vadd.f32 %v799, %v800
      %802 = vst [vmem:[%s211] sm:$0x1] %v801
      %v803 = vmul.f32 %v573, %v573
      %v804 = vmul.f32 %v574, %v574
      %v805 = vmul.f32 %v575, %v575
      %v806 = vmul.f32 %v576, %v576
      %v807 = vmul.f32 %v577, %v577
      %v808 = vmul.f32 %v578, %v578
      %v809 = vmul.f32 %v579, %v579
      %v810 = vmul.f32 %v580, %v580
      %v811 = vmul.f32 %v581, %v581
      %v812 = vmul.f32 %v582, %v582
      %v813 = vmul.f32 %v583, %v583
      %v814 = vmul.f32 %v584, %v584
      %v815 = vmul.f32 %v585, %v585
      %v816 = vmul.f32 %v586, %v586
      %v817 = vmul.f32 %v587, %v587
      %v818 = vmul.f32 %v588, %v588
      %v819 = vmul.f32 %v589, %v589
      %v820 = vmul.f32 %v590, %v590
      %v821 = vmul.f32 %v591, %v591
      %v822 = vmul.f32 %v592, %v592
      %v823 = vmul.f32 %v593, %v593
      %v824 = vmul.f32 %v594, %v594
      %v825 = vmul.f32 %v595, %v595
      %v826 = vmul.f32 %v596, %v596
      %v827 = vmul.f32 %v597, %v597
      %v828 = vmul.f32 %v598, %v598
      %v829 = vmul.f32 %v599, %v599
      %v830 = vmul.f32 %v600, %v600
      %v831 = vmul.f32 %v601, %v601
      %v832 = vmul.f32 %v602, %v602
      %v833 = vmul.f32 %v603, %v603
      %v834 = vmul.f32 %v604, %v604
      %v835 = vadd.f32 %v803, %v804
      %v836 = vadd.f32 %v835, %v805
      %v837 = vadd.f32 %v836, %v806
      %v838 = vadd.f32 %v837, %v807
      %v839 = vadd.f32 %v838, %v808
      %v840 = vadd.f32 %v839, %v809
      %v841 = vadd.f32 %v840, %v810
      %v842 = vadd.f32 %v841, %v811
      %v843 = vadd.f32 %v842, %v812
      %v844 = vadd.f32 %v843, %v813
      %v845 = vadd.f32 %v844, %v814
      %v846 = vadd.f32 %v845, %v815
      %v847 = vadd.f32 %v846, %v816
      %v848 = vadd.f32 %v847, %v817
      %v849 = vadd.f32 %v848, %v818
      %v850 = vadd.f32 %v849, %v819
      %v851 = vadd.f32 %v850, %v820
      %v852 = vadd.f32 %v851, %v821
      %v853 = vadd.f32 %v852, %v822
      %v854 = vadd.f32 %v853, %v823
      %v855 = vadd.f32 %v854, %v824
      %v856 = vadd.f32 %v855, %v825
      %v857 = vadd.f32 %v856, %v826
      %v858 = vadd.f32 %v857, %v827
      %v859 = vadd.f32 %v858, %v828
      %v860 = vadd.f32 %v859, %v829
      %v861 = vadd.f32 %v860, %v830
      %v862 = vadd.f32 %v861, %v831
      %v863 = vadd.f32 %v862, %v832
      %v864 = vadd.f32 %v863, %v833
      %v865 = vadd.f32 %v864, %v834
      %v866 = vrot.slane %v865, 4
      %v867 = vadd.f32 %v865, %v866
      %v868 = vrot.slane %v867, 2
      %v869 = vadd.f32 %v867, %v868
      %v870 = vrot.slane %v869, 1
      %v871 = vadd.f32 %v869, %v870
      %872 = vst [vmem:[%s211 + $0x1] sm:$0x1] %v871
      %s873 = smul.u32 32, %s16
      %p874 = scmp.lt.s32.totalorder %s873, 63
      %s875 = scalar_select %p874, %s873, 63
      %s876 = smul.addr %s875, 4
      %s877 = scalar_lea.vmem %s3, %s876
      %p878 = scmp.lt.s32.totalorder %s16, 1
      %s879 = scalar_select %p878, %s16, 1
      %s880 = smul.addr %s879, 2
      %s881 = scalar_lea.vmem %s4, %s880
      // Predicated region
      $region33: #{mynet_forward.4} parent=31 // pred_check
        %p882 = pneg %p102
      $region34: #{mynet_forward.4} parent=31 // pred_check_branch
        %884 = sbr.rel (%p882) target = $region36
      $region35: #{mynet_forward.4} parent=31 // pred_region
        %s885 = smul.u32 32, %s16
      $region36: #{mynet_forward.4} parent=31 // pred_fallthru
        _
      // Predicated region
      $region37: #{mynet_forward.4} parent=31 // pred_check
        %p886 = pneg %p128
      $region38: #{mynet_forward.4} parent=31 // pred_check_branch
        %888 = sbr.rel (%p886) target = $region40
      $region39: #{mynet_forward.4} parent=31 // pred_region
        _
      $region40: #{mynet_forward.4} parent=31 // pred_fallthru
        _
    $region32: #{mynet_forward.4} parent=5 // pred_fallthru
      _
    %p889 = scmp.le.s32.totalorder 2, %s11
    // Predicated region
    $region41: #{mynet_forward.4} parent=5 // pred_check
      %p890 = pneg %p889
    $region42: #{mynet_forward.4} parent=5 // pred_check_branch
      %892 = sbr.rel (%p890) target = $region44
    $region43: #{mynet_forward.4} parent=5 // pred_region
      %s893 = ssub.s32 %s11, 2
      // Predicated region
      $region45: #{mynet_forward.4} parent=43 // pred_check
        %p894 = pneg %p108
      $region46: #{mynet_forward.4} parent=43 // pred_check_branch
        %896 = sbr.rel (%p894) target = $region48
      $region47: #{mynet_forward.4} parent=43 // pred_region
        %s897 = smul.u32 32, %s17
        %p898 = scmp.lt.s32.totalorder %s897, 63
        %s899 = scalar_select %p898, %s897, 63
        %s900 = smul.addr %s899, 4
        %s901 = scalar_lea.vmem %s3, %s900
      $region48: #{mynet_forward.4} parent=43 // pred_fallthru
        _
      // Predicated region
      $region49: #{mynet_forward.4} parent=43 // pred_check
        %p902 = pneg %p134
      $region50: #{mynet_forward.4} parent=43 // pred_check_branch
        %904 = sbr.rel (%p902) target = $region52
      $region51: #{mynet_forward.4} parent=43 // pred_region
        %p905 = scmp.lt.s32.totalorder %s17, 1
        %s906 = scalar_select %p905, %s17, 1
        %s907 = smul.addr %s906, 2
        %s908 = scalar_lea.vmem %s4, %s907
      $region52: #{mynet_forward.4} parent=43 // pred_fallthru
        _
    $region44: #{mynet_forward.4} parent=5 // pred_fallthru
      _
  $region6: #{mynet_forward.4} parent=0 // loop_footer
    %s15 = sadd.s32 1, %s11
  $region7: #{mynet_forward.4} parent=0 // loop_footer_branch
    %10 = sbr.rel target = $region3
  $region8: #{mynet_forward.4} parent=0 // loop_exit
    _

// kernel: mynet_forward.6
$region0: #{mynet_forward.6}
  #allocation0 [shape = 'u32[]', space=smem, size = 0x4, offset = 0x4, fixed_abs, tag = 'smem constant byte address 0x4 - core index']
  #allocation1 [shape = 'u32[144,128]{1,0:T(1,128)}', space=vmem, size = 0x12000, scoped, tag = 'internal scratch']
  %s0 = inlined_call_operand.vmem [shape: bf16[512,128], index: 0, kind: input, shape index: {}]
  %s1 = inlined_call_operand.vmem [shape: bf16[128,128], index: 1, kind: input, shape index: {}]
  %s2 = inlined_call_operand.vmem [shape: f32[1,128], index: 2, kind: input, shape index: {}]
  %s3 = inlined_call_operand.vmem [shape: bf16[512,128], index: 3, kind: output, shape index: {0}]
  %s4 = inlined_call_operand.vmem [shape: f32[2,2,128], index: 4, kind: output, shape index: {1}]
  %5 = xla_tuple %s3, %s4
  %s6 = sld [smem:[#allocation0]]
  $region53: #{mynet_forward.6} parent=0
    _
  %s8 = ssub.s32 1, %s6
  %s9 = scalar_select 0, %s8, %s6
  loop: start=0, step=1, limit=4
  $region2: #{mynet_forward.6} parent=0 // loop_pre_header
    _
  $region3: #{mynet_forward.6} parent=0 // loop_header
    %s11 = sphi 0, %s15
    %p12 = scmp.ge.s32.totalorder %s11, 4
    %s21 = sphi 0, %s23
    %s24 = sphi 0, %s21
    %s25 = sphi 0, %s24
    %s41 = sphi 0, %s25
    %s45 = sphi 0, %s45
    %s47 = sphi 0, %s45
    %s48 = sphi 0, %s47
    %s62 = sphi 0, %s48
    %s66 = sphi 0, %s66
    %s68 = sphi 0, %s66
    %s69 = sphi 0, %s68
    %s83 = sphi 0, %s69
    %s89 = sphi 0, %s91
    %s92 = sphi 0, %s89
    %s93 = sphi 0, %s92
    %s109 = sphi 0, %s93
    %s115 = sphi 0, %s117
    %s118 = sphi 0, %s115
    %s119 = sphi 0, %s118
    %s135 = sphi 0, %s119
  $region4: #{mynet_forward.6} parent=0 // loop_header_branch
    %14 = sbr.rel (%p12) target = $region8
  $region5: #{mynet_forward.6} parent=0 // loop_body
    %s16 = ssub.s32 %s11, 1
    %s17 = ssub.s32 %s11, 2
    %s18 = sadd.s32 %s11, 1
    %s19 = ssub.s32 %s11, %s18
    %p20 = scmp.eq.s32.totalorder %s19, 0
    %s22 = sadd.s32 %s21, 1
    %s23 = scalar_select %p20, %s21, %s22
    %p26 = pneg %p20
    %p27 = scmp.eq.s32.totalorder %s11, 1
    %p28 = por %p26, %p27
    %p29 = scmp.ne.s32.totalorder %s21, %s24
    %p30 = scmp.eq.s32.totalorder %s11, 0
    %p31 = por %p29, %p30
    %p32 = scmp.ne.s32.totalorder %s21, %s24
    %p33 = scmp.eq.s32.totalorder %s16, 1
    %p34 = por %p32, %p33
    %p35 = scmp.ne.s32.totalorder %s24, %s25
    %p36 = scmp.eq.s32.totalorder %s16, 0
    %p37 = por %p35, %p36
    %p38 = scmp.ne.s32.totalorder %s24, %s25
    %p39 = scmp.eq.s32.totalorder %s17, 1
    %p40 = por %p38, %p39
    %p42 = scmp.ne.s32.totalorder %s25, %s41
    %p43 = scmp.eq.s32.totalorder %s17, 0
    %p44 = por %p42, %p43
    %s46 = sadd.s32 %s45, 1
    %p49 = scmp.eq.s32.totalorder %s11, 1
    %p50 = scmp.ne.s32.totalorder %s45, %s47
    %p51 = scmp.eq.s32.totalorder %s11, 0
    %p52 = por %p50, %p51
    %p53 = scmp.ne.s32.totalorder %s45, %s47
    %p54 = scmp.eq.s32.totalorder %s16, 1
    %p55 = por %p53, %p54
    %p56 = scmp.ne.s32.totalorder %s47, %s48
    %p57 = scmp.eq.s32.totalorder %s16, 0
    %p58 = por %p56, %p57
    %p59 = scmp.ne.s32.totalorder %s47, %s48
    %p60 = scmp.eq.s32.totalorder %s17, 1
    %p61 = por %p59, %p60
    %p63 = scmp.ne.s32.totalorder %s48, %s62
    %p64 = scmp.eq.s32.totalorder %s17, 0
    %p65 = por %p63, %p64
    %s67 = sadd.s32 %s66, 1
    %p70 = scmp.eq.s32.totalorder %s11, 1
    %p71 = scmp.ne.s32.totalorder %s66, %s68
    %p72 = scmp.eq.s32.totalorder %s11, 0
    %p73 = por %p71, %p72
    %p74 = scmp.ne.s32.totalorder %s66, %s68
    %p75 = scmp.eq.s32.totalorder %s16, 1
    %p76 = por %p74, %p75
    %p77 = scmp.ne.s32.totalorder %s68, %s69
    %p78 = scmp.eq.s32.totalorder %s16, 0
    %p79 = por %p77, %p78
    %p80 = scmp.ne.s32.totalorder %s68, %s69
    %p81 = scmp.eq.s32.totalorder %s17, 1
    %p82 = por %p80, %p81
    %p84 = scmp.ne.s32.totalorder %s69, %s83
    %p85 = scmp.eq.s32.totalorder %s17, 0
    %p86 = por %p84, %p85
    %s87 = ssub.s32 %s11, %s18
    %p88 = scmp.eq.s32.totalorder %s87, 0
    %s90 = sadd.s32 %s89, 1
    %s91 = scalar_select %p88, %s89, %s90
    %p94 = pneg %p88
    %p95 = scmp.eq.s32.totalorder %s11, 1
    %p96 = por %p94, %p95
    %p97 = scmp.ne.s32.totalorder %s89, %s92
    %p98 = scmp.eq.s32.totalorder %s11, 0
    %p99 = por %p97, %p98
    %p100 = scmp.ne.s32.totalorder %s89, %s92
    %p101 = scmp.eq.s32.totalorder %s16, 1
    %p102 = por %p100, %p101
    %p103 = scmp.ne.s32.totalorder %s92, %s93
    %p104 = scmp.eq.s32.totalorder %s16, 0
    %p105 = por %p103, %p104
    %p106 = scmp.ne.s32.totalorder %s92, %s93
    %p107 = scmp.eq.s32.totalorder %s17, 1
    %p108 = por %p106, %p107
    %p110 = scmp.ne.s32.totalorder %s93, %s109
    %p111 = scmp.eq.s32.totalorder %s17, 0
    %p112 = por %p110, %p111
    %s113 = ssub.s32 %s11, %s18
    %p114 = scmp.eq.s32.totalorder %s113, 0
    %s116 = sadd.s32 %s115, 1
    %s117 = scalar_select %p114, %s115, %s116
    %p120 = pneg %p114
    %p121 = scmp.eq.s32.totalorder %s11, 1
    %p122 = por %p120, %p121
    %p123 = scmp.ne.s32.totalorder %s115, %s118
    %p124 = scmp.eq.s32.totalorder %s11, 0
    %p125 = por %p123, %p124
    %p126 = scmp.ne.s32.totalorder %s115, %s118
    %p127 = scmp.eq.s32.totalorder %s16, 1
    %p128 = por %p126, %p127
    %p129 = scmp.ne.s32.totalorder %s118, %s119
    %p130 = scmp.eq.s32.totalorder %s16, 0
    %p131 = por %p129, %p130
    %p132 = scmp.ne.s32.totalorder %s118, %s119
    %p133 = scmp.eq.s32.totalorder %s17, 1
    %p134 = por %p132, %p133
    %p136 = scmp.ne.s32.totalorder %s119, %s135
    %p137 = scmp.eq.s32.totalorder %s17, 0
    %p138 = por %p136, %p137
    %p139 = scmp.le.s32.totalorder 1, %s11
    %p140 = scmp.lt.s32.totalorder %s11, 3
    %p141 = pnand %p139, %p140
    %p142 = pneg %p141
    // Predicated region
    $region9: #{mynet_forward.6} parent=5 // pred_check
      _
    $region10: #{mynet_forward.6} parent=5 // pred_check_branch
      %144 = sbr.rel (%p141) target = $region12
    $region11: #{mynet_forward.6} parent=5 // pred_region
      %s145 = ssub.s32 %s11, 1
      // Predicated region
      $region13: #{mynet_forward.6} parent=11 // pred_check
        %p146 = pneg %p58
      $region14: #{mynet_forward.6} parent=11 // pred_check_branch
        %148 = sbr.rel (%p146) target = $region16
      $region15: #{mynet_forward.6} parent=11 // pred_region
        _
      $region16: #{mynet_forward.6} parent=11 // pred_fallthru
        _
      // Predicated region
      $region17: #{mynet_forward.6} parent=11 // pred_check
        %p149 = pneg %p79
      $region18: #{mynet_forward.6} parent=11 // pred_check_branch
        %151 = sbr.rel (%p149) target = $region20
      $region19: #{mynet_forward.6} parent=11 // pred_region
        _
      $region20: #{mynet_forward.6} parent=11 // pred_fallthru
        _
    $region12: #{mynet_forward.6} parent=5 // pred_fallthru
      _
    %p152 = scmp.lt.s32.totalorder %s11, 2
    // Predicated region
    $region21: #{mynet_forward.6} parent=5 // pred_check
      %p153 = pneg %p152
    $region22: #{mynet_forward.6} parent=5 // pred_check_branch
      %155 = sbr.rel (%p153) target = $region24
    $region23: #{mynet_forward.6} parent=5 // pred_region
      // Predicated region
      $region25: #{mynet_forward.6} parent=23 // pred_check
        %p156 = pneg %p31
      $region26: #{mynet_forward.6} parent=23 // pred_check_branch
        %158 = sbr.rel (%p156) target = $region28
      $region27: #{mynet_forward.6} parent=23 // pred_region
        %s159 = smul.u32 32, %s11
        %p160 = scmp.lt.s32.totalorder %s159, 63
        %s161 = scalar_select %p160, %s159, 63
        %s162 = smul.addr %s161, 4
        %s163 = scalar_lea.vmem %s0, %s162
        %s164 = smul.u32 32, %s11
      $region28: #{mynet_forward.6} parent=23 // pred_fallthru
        _
    $region24: #{mynet_forward.6} parent=5 // pred_fallthru
      _
    %p165 = scmp.le.s32.totalorder 1, %s11
    %p166 = scmp.lt.s32.totalorder %s11, 3
    %p167 = pnand %p165, %p166
    %p168 = pneg %p167
    // Predicated region
    $region29: #{mynet_forward.6} parent=5 // pred_check
      _
    $region30: #{mynet_forward.6} parent=5 // pred_check_branch
      %170 = sbr.rel (%p167) target = $region32
    $region31: #{mynet_forward.6} parent=5 // pred_region
      %s171 = ssub.s32 %s11, 1
      %s172 = smul.u32 32, %s16
      %p173 = scmp.lt.s32.totalorder %s172, 63
      %s174 = scalar_select %p173, %s172, 63
      %s175 = smul.addr %s174, 4
      %s176 = scalar_lea.vmem %s0, %s175
      %p177 = pneg %p37
      %p178 = pneg %p34
      %p179 = pneg %p58
      %p180 = pneg %p55
      %p181 = pneg %p79
      %p182 = pneg %p76
      %p183 = pneg %p105
      %p184 = pneg %p102
      %s185 = smul.u32 32, %s16
      %p186 = scmp.lt.s32.totalorder %s185, 63
      %s187 = scalar_select %p186, %s185, 63
      %s188 = smul.addr %s187, 4
      %s189 = scalar_lea.vmem %s3, %s188
      %p190 = pneg %p131
      %p191 = pneg %p128
      %p192 = scmp.lt.s32.totalorder %s16, 1
      %s193 = scalar_select %p192, %s16, 1
      %s194 = smul.addr %s193, 2
      %s195 = scalar_lea.vmem %s4, %s194
      %s196 = smul.u32 32, %s16
      %p197 = scmp.lt.s32.totalorder %s196, 63
      %s198 = scalar_select %p197, %s196, 63
      %s199 = smul.addr %s198, 4
      %s200 = scalar_lea.vmem %s0, %s199
      %s201 = smul.u32 32, %s16
      %s202 = smul.u32 32, %s16
      %p203 = scmp.lt.s32.totalorder %s202, 63
      %s204 = scalar_select %p203, %s202, 63
      %s205 = smul.addr %s204, 4
      %s206 = scalar_lea.vmem %s3, %s205
      %s207 = smul.u32 32, %s16
      %p208 = scmp.lt.s32.totalorder %s16, 1
      %s209 = scalar_select %p208, %s16, 1
      %s210 = smul.addr %s209, 2
      %s211 = scalar_lea.vmem %s4, %s210
      %v213 = vld [vmem:[%s200] sm:$0xf]
      %v214 = vld [vmem:[%s200 + $0x4] sm:$0xf]
      %v215 = vld [vmem:[%s200 + $0x8] sm:$0xf]
      %v216 = vld [vmem:[%s200 + $0xc] sm:$0xf]
      %v217 = vld [vmem:[%s200 + $0x10] sm:$0xf]
      %v218 = vld [vmem:[%s200 + $0x14] sm:$0xf]
      %v219 = vld [vmem:[%s200 + $0x18] sm:$0xf]
      %v220 = vld [vmem:[%s200 + $0x1c] sm:$0xf]
      %v221 = vld [vmem:[%s200 + $0x20] sm:$0xf]
      %v222 = vld [vmem:[%s200 + $0x24] sm:$0xf]
      %v223 = vld [vmem:[%s200 + $0x28] sm:$0xf]
      %v224 = vld [vmem:[%s200 + $0x2c] sm:$0xf]
      %v225 = vld [vmem:[%s200 + $0x30] sm:$0xf]
      %v226 = vld [vmem:[%s200 + $0x34] sm:$0xf]
      %v227 = vld [vmem:[%s200 + $0x38] sm:$0xf]
      %v228 = vld [vmem:[%s200 + $0x3c] sm:$0xf]
      %v229 = vld [vmem:[%s200 + $0x40] sm:$0xf]
      %v230 = vld [vmem:[%s200 + $0x44] sm:$0xf]
      %v231 = vld [vmem:[%s200 + $0x48] sm:$0xf]
      %v232 = vld [vmem:[%s200 + $0x4c] sm:$0xf]
      %v233 = vld [vmem:[%s200 + $0x50] sm:$0xf]
      %v234 = vld [vmem:[%s200 + $0x54] sm:$0xf]
      %v235 = vld [vmem:[%s200 + $0x58] sm:$0xf]
      %v236 = vld [vmem:[%s200 + $0x5c] sm:$0xf]
      %v237 = vld [vmem:[%s200 + $0x60] sm:$0xf]
      %v238 = vld [vmem:[%s200 + $0x64] sm:$0xf]
      %v239 = vld [vmem:[%s200 + $0x68] sm:$0xf]
      %v240 = vld [vmem:[%s200 + $0x6c] sm:$0xf]
      %v241 = vld [vmem:[%s200 + $0x70] sm:$0xf]
      %v242 = vld [vmem:[%s200 + $0x74] sm:$0xf]
      %v243 = vld [vmem:[%s200 + $0x78] sm:$0xf]
      %v244 = vld [vmem:[%s200 + $0x7c] sm:$0xf]
      %v245 = vld [vmem:[%s1] sm:$0xf]
      %v246 = vld [vmem:[%s1 + $0x4] sm:$0xf]
      %v247 = vld [vmem:[%s1 + $0x8] sm:$0xf]
      %v248 = vld [vmem:[%s1 + $0xc] sm:$0xf]
      %v249 = vld [vmem:[%s1 + $0x10] sm:$0xf]
      %v250 = vld [vmem:[%s1 + $0x14] sm:$0xf]
      %v251 = vld [vmem:[%s1 + $0x18] sm:$0xf]
      %v252 = vld [vmem:[%s1 + $0x1c] sm:$0xf]
      %v253 = vld [vmem:[%s1 + $0x20] sm:$0xf]
      %v254 = vld [vmem:[%s1 + $0x24] sm:$0xf]
      %v255 = vld [vmem:[%s1 + $0x28] sm:$0xf]
      %v256 = vld [vmem:[%s1 + $0x2c] sm:$0xf]
      %v257 = vld [vmem:[%s1 + $0x30] sm:$0xf]
      %v258 = vld [vmem:[%s1 + $0x34] sm:$0xf]
      %v259 = vld [vmem:[%s1 + $0x38] sm:$0xf]
      %v260 = vld [vmem:[%s1 + $0x3c] sm:$0xf]
      %v261 = vld [vmem:[%s2] sm:$0x1]
      %v263 = vlaneseq
      %v264 = vshrl.u32 %v263, 7
      %v265 = vsub.s32 0, %v264
      %v266 = vrot.slane %v261, %v265
      %v300 = vunpack.c.l.b16 %v213
      %v301 = vunpack.c.l.b16 %v214
      %v302 = vunpack.c.l.b16 %v215
      %v303 = vunpack.c.l.b16 %v216
      %v304 = vunpack.c.l.b16 %v217
      %v305 = vunpack.c.l.b16 %v218
      %v306 = vunpack.c.l.b16 %v219
      %v307 = vunpack.c.l.b16 %v220
      %v308 = vunpack.c.l.b16 %v221
      %v309 = vunpack.c.l.b16 %v222
      %v310 = vunpack.c.l.b16 %v223
      %v311 = vunpack.c.l.b16 %v224
      %v312 = vunpack.c.l.b16 %v225
      %v313 = vunpack.c.l.b16 %v226
      %v314 = vunpack.c.l.b16 %v227
      %v315 = vunpack.c.l.b16 %v228
      %v316 = vunpack.c.l.b16 %v229
      %v317 = vunpack.c.l.b16 %v230
      %v318 = vunpack.c.l.b16 %v231
      %v319 = vunpack.c.l.b16 %v232
      %v320 = vunpack.c.l.b16 %v233
      %v321 = vunpack.c.l.b16 %v234
      %v322 = vunpack.c.l.b16 %v235
      %v323 = vunpack.c.l.b16 %v236
      %v324 = vunpack.c.l.b16 %v237
      %v325 = vunpack.c.l.b16 %v238
      %v326 = vunpack.c.l.b16 %v239
      %v327 = vunpack.c.l.b16 %v240
      %v328 = vunpack.c.l.b16 %v241
      %v329 = vunpack.c.l.b16 %v242
      %v330 = vunpack.c.l.b16 %v243
      %v331 = vunpack.c.l.b16 %v244
      %v332 = vpack.c.b16 %v301, %v300
      %v333 = vpack.c.b16 %v303, %v302
      %v334 = vpack.c.b16 %v305, %v304
      %v335 = vpack.c.b16 %v307, %v306
      %v336 = vpack.c.b16 %v309, %v308
      %v337 = vpack.c.b16 %v311, %v310
      %v338 = vpack.c.b16 %v313, %v312
      %v339 = vpack.c.b16 %v315, %v314
      %v340 = vpack.c.b16 %v317, %v316
      %v341 = vpack.c.b16 %v319, %v318
      %v342 = vpack.c.b16 %v321, %v320
      %v343 = vpack.c.b16 %v323, %v322
      %v344 = vpack.c.b16 %v325, %v324
      %v345 = vpack.c.b16 %v327, %v326
      %v346 = vpack.c.b16 %v329, %v328
      %v347 = vpack.c.b16 %v331, %v330
      %v380 = vunpack.c.l.b16 %v245
      %v381 = vunpack.c.l.b16 %v246
      %v382 = vunpack.c.l.b16 %v247
      %v383 = vunpack.c.l.b16 %v248
      %v384 = vunpack.c.l.b16 %v249
      %v385 = vunpack.c.l.b16 %v250
      %v386 = vunpack.c.l.b16 %v251
      %v387 = vunpack.c.l.b16 %v252
      %v388 = vunpack.c.l.b16 %v253
      %v389 = vunpack.c.l.b16 %v254
      %v390 = vunpack.c.l.b16 %v255
      %v391 = vunpack.c.l.b16 %v256
      %v392 = vunpack.c.l.b16 %v257
      %v393 = vunpack.c.l.b16 %v258
      %v394 = vunpack.c.l.b16 %v259
      %v395 = vunpack.c.l.b16 %v260
      %v396 = vpack.c.b16 %v381, %v380
      %v397 = vpack.c.b16 %v383, %v382
      %v398 = vpack.c.b16 %v385, %v384
      %v399 = vpack.c.b16 %v387, %v386
      %v400 = vpack.c.b16 %v389, %v388
      %v401 = vpack.c.b16 %v391, %v390
      %v402 = vpack.c.b16 %v393, %v392
      %v403 = vpack.c.b16 %v395, %v394
      %412 = vmatprep.subr.bf16.mxu0 0
      %413 = vmatpush1.bf16.msra.mxu0 %v403
      %414 = vmatprep.subr.bf16.mxu0 0
      %415 = vmatpush1.bf16.msra.mxu0 %v402
      %416 = vmatprep.subr.bf16.mxu0 0
      %417 = vmatpush1.bf16.msra.mxu0 %v401
      %418 = vmatprep.subr.bf16.mxu0 0
      %419 = vmatpush1.bf16.msra.mxu0 %v400
      %420 = vmatprep.subr.bf16.mxu0 0
      %421 = vmatpush1.bf16.msra.mxu0 %v399
      %422 = vmatprep.subr.bf16.mxu0 0
      %423 = vmatpush1.bf16.msra.mxu0 %v398
      %424 = vmatprep.subr.bf16.mxu0 0
      %425 = vmatpush1.bf16.msra.mxu0 %v397
      %426 = vmatprep.subr.bf16.mxu0 0
      %427 = vmatpush1.bf16.msra.mxu0 %v396
      %428 = vmatprep.subr.bf16.mxu0 0
      %429 = vmatpush2.bf16.msra.mxu0 0
      %430 = vmatprep.subr.bf16.mxu0 0
      %431 = vmatpush2.bf16.msra.mxu0 0
      %432 = vmatprep.subr.bf16.mxu0 0
      %433 = vmatpush2.bf16.msra.mxu0 0
      %434 = vmatprep.subr.bf16.mxu0 0
      %435 = vmatpush2.bf16.msra.mxu0 0
      %436 = vmatprep.subr.bf16.mxu0 0
      %437 = vmatpush2.bf16.msra.mxu0 0
      %438 = vmatprep.subr.bf16.mxu0 0
      %439 = vmatpush2.bf16.msra.mxu0 0
      %440 = vmatprep.subr.bf16.mxu0 0
      %441 = vmatpush2.bf16.msra.mxu0 0
      %442 = vmatprep.subr.bf16.mxu0 0
      %443 = vmatpush2.bf16.msra.mxu0 0
      %444 = vmatprep.mubr.bf16.mxu0 0
      %445 = vmatmul.mubr.bf16.gmra.mxu0 %v332
      %v446 = vpop.f32.mrf.mxu0
      %v447 = vadd.f32 %v266, %v446
      %v448 = vpop.f32.mrf.mxu0
      %v449 = vpop.f32.mrf.mxu0
      %v450 = vadd.f32 %v266, %v449
      %v451 = vpop.f32.mrf.mxu0
      %452 = vmatprep.mubr.bf16.mxu0 0
      %453 = vmatmul.mubr.bf16.gmra.mxu0 %v333
      %v454 = vpop.f32.mrf.mxu0
      %v455 = vadd.f32 %v266, %v454
      %v456 = vpop.f32.mrf.mxu0
      %v457 = vpop.f32.mrf.mxu0
      %v458 = vadd.f32 %v266, %v457
      %v459 = vpop.f32.mrf.mxu0
      %460 = vmatprep.mubr.bf16.mxu0 0
      %461 = vmatmul.mubr.bf16.gmra.mxu0 %v334
      %v462 = vpop.f32.mrf.mxu0
      %v463 = vadd.f32 %v266, %v462
      %v464 = vpop.f32.mrf.mxu0
      %v465 = vpop.f32.mrf.mxu0
      %v466 = vadd.f32 %v266, %v465
      %v467 = vpop.f32.mrf.mxu0
      %468 = vmatprep.mubr.bf16.mxu0 0
      %469 = vmatmul.mubr.bf16.gmra.mxu0 %v335
      %v470 = vpop.f32.mrf.mxu0
      %v471 = vadd.f32 %v266, %v470
      %v472 = vpop.f32.mrf.mxu0
      %v473 = vpop.f32.mrf.mxu0
      %v474 = vadd.f32 %v266, %v473
      %v475 = vpop.f32.mrf.mxu0
      %476 = vmatprep.mubr.bf16.mxu0 0
      %477 = vmatmul.mubr.bf16.gmra.mxu0 %v336
      %v478 = vpop.f32.mrf.mxu0
      %v479 = vadd.f32 %v266, %v478
      %v480 = vpop.f32.mrf.mxu0
      %v481 = vpop.f32.mrf.mxu0
      %v482 = vadd.f32 %v266, %v481
      %v483 = vpop.f32.mrf.mxu0
      %484 = vmatprep.mubr.bf16.mxu0 0
      %485 = vmatmul.mubr.bf16.gmra.mxu0 %v337
      %v486 = vpop.f32.mrf.mxu0
      %v487 = vadd.f32 %v266, %v486
      %v488 = vpop.f32.mrf.mxu0
      %v489 = vpop.f32.mrf.mxu0
      %v490 = vadd.f32 %v266, %v489
      %v491 = vpop.f32.mrf.mxu0
      %492 = vmatprep.mubr.bf16.mxu0 0
      %493 = vmatmul.mubr.bf16.gmra.mxu0 %v338
      %v494 = vpop.f32.mrf.mxu0
      %v495 = vadd.f32 %v266, %v494
      %v496 = vpop.f32.mrf.mxu0
      %v497 = vpop.f32.mrf.mxu0
      %v498 = vadd.f32 %v266, %v497
      %v499 = vpop.f32.mrf.mxu0
      %500 = vmatprep.mubr.bf16.mxu0 0
      %501 = vmatmul.mubr.bf16.gmra.mxu0 %v339
      %v502 = vpop.f32.mrf.mxu0
      %v503 = vadd.f32 %v266, %v502
      %v504 = vpop.f32.mrf.mxu0
      %v505 = vpop.f32.mrf.mxu0
      %v506 = vadd.f32 %v266, %v505
      %v507 = vpop.f32.mrf.mxu0
      %508 = vmatprep.mubr.bf16.mxu0 0
      %509 = vmatmul.mubr.bf16.gmra.mxu0 %v340
      %v510 = vpop.f32.mrf.mxu0
      %v511 = vadd.f32 %v266, %v510
      %v512 = vpop.f32.mrf.mxu0
      %v513 = vpop.f32.mrf.mxu0
      %v514 = vadd.f32 %v266, %v513
      %v515 = vpop.f32.mrf.mxu0
      %516 = vmatprep.mubr.bf16.mxu0 0
      %517 = vmatmul.mubr.bf16.gmra.mxu0 %v341
      %v518 = vpop.f32.mrf.mxu0
      %v519 = vadd.f32 %v266, %v518
      %v520 = vpop.f32.mrf.mxu0
      %v521 = vpop.f32.mrf.mxu0
      %v522 = vadd.f32 %v266, %v521
      %v523 = vpop.f32.mrf.mxu0
      %524 = vmatprep.mubr.bf16.mxu0 0
      %525 = vmatmul.mubr.bf16.gmra.mxu0 %v342
      %v526 = vpop.f32.mrf.mxu0
      %v527 = vadd.f32 %v266, %v526
      %v528 = vpop.f32.mrf.mxu0
      %v529 = vpop.f32.mrf.mxu0
      %v530 = vadd.f32 %v266, %v529
      %v531 = vpop.f32.mrf.mxu0
      %532 = vmatprep.mubr.bf16.mxu0 0
      %533 = vmatmul.mubr.bf16.gmra.mxu0 %v343
      %v534 = vpop.f32.mrf.mxu0
      %v535 = vadd.f32 %v266, %v534
      %v536 = vpop.f32.mrf.mxu0
      %v537 = vpop.f32.mrf.mxu0
      %v538 = vadd.f32 %v266, %v537
      %v539 = vpop.f32.mrf.mxu0
      %540 = vmatprep.mubr.bf16.mxu0 0
      %541 = vmatmul.mubr.bf16.gmra.mxu0 %v344
      %v542 = vpop.f32.mrf.mxu0
      %v543 = vadd.f32 %v266, %v542
      %v544 = vpop.f32.mrf.mxu0
      %v545 = vpop.f32.mrf.mxu0
      %v546 = vadd.f32 %v266, %v545
      %v547 = vpop.f32.mrf.mxu0
      %548 = vmatprep.mubr.bf16.mxu0 0
      %549 = vmatmul.mubr.bf16.gmra.mxu0 %v345
      %v550 = vpop.f32.mrf.mxu0
      %v551 = vadd.f32 %v266, %v550
      %v552 = vpop.f32.mrf.mxu0
      %v553 = vpop.f32.mrf.mxu0
      %v554 = vadd.f32 %v266, %v553
      %v555 = vpop.f32.mrf.mxu0
      %556 = vmatprep.mubr.bf16.mxu0 0
      %557 = vmatmul.mubr.bf16.gmra.mxu0 %v346
      %v558 = vpop.f32.mrf.mxu0
      %v559 = vadd.f32 %v266, %v558
      %v560 = vpop.f32.mrf.mxu0
      %v561 = vpop.f32.mrf.mxu0
      %v562 = vadd.f32 %v266, %v561
      %v563 = vpop.f32.mrf.mxu0
      %564 = vmatprep.mubr.bf16.mxu0 0
      %565 = vmatmul.mubr.bf16.gmra.mxu0 %v347
      %v566 = vpop.f32.mrf.mxu0
      %v567 = vadd.f32 %v266, %v566
      %v568 = vpop.f32.mrf.mxu0
      %v569 = vpop.f32.mrf.mxu0
      %v570 = vadd.f32 %v266, %v569
      %v571 = vpop.f32.mrf.mxu0
      %572 = vdwg.mxu0
      %v573 = vpack.c.bf16 %v450, %v447
      %v574 = vpack.c.bf16 %v458, %v455
      %v575 = vpack.c.bf16 %v466, %v463
      %v576 = vpack.c.bf16 %v474, %v471
      %v577 = vpack.c.bf16 %v482, %v479
      %v578 = vpack.c.bf16 %v490, %v487
      %v579 = vpack.c.bf16 %v498, %v495
      %v580 = vpack.c.bf16 %v506, %v503
      %v581 = vpack.c.bf16 %v514, %v511
      %v582 = vpack.c.bf16 %v522, %v519
      %v583 = vpack.c.bf16 %v530, %v527
      %v584 = vpack.c.bf16 %v538, %v535
      %v585 = vpack.c.bf16 %v546, %v543
      %v586 = vpack.c.bf16 %v554, %v551
      %v587 = vpack.c.bf16 %v562, %v559
      %v588 = vpack.c.bf16 %v570, %v567
      %v605 = vunpack.c.l.b16 %v573
      %v606 = vunpack.c.h.b16 %v573
      %v607 = vunpack.c.l.b16 %v574
      %v608 = vunpack.c.h.b16 %v574
      %v609 = vunpack.c.l.b16 %v575
      %v610 = vunpack.c.h.b16 %v575
      %v611 = vunpack.c.l.b16 %v576
      %v612 = vunpack.c.h.b16 %v576
      %v613 = vunpack.c.l.b16 %v577
      %v614 = vunpack.c.h.b16 %v577
      %v615 = vunpack.c.l.b16 %v578
      %v616 = vunpack.c.h.b16 %v578
      %v617 = vunpack.c.l.b16 %v579
      %v618 = vunpack.c.h.b16 %v579
      %v619 = vunpack.c.l.b16 %v580
      %v620 = vunpack.c.h.b16 %v580
      %v621 = vunpack.c.l.b16 %v581
      %v622 = vunpack.c.h.b16 %v581
      %v623 = vunpack.c.l.b16 %v582
      %v624 = vunpack.c.h.b16 %v582
      %v625 = vunpack.c.l.b16 %v583
      %v626 = vunpack.c.h.b16 %v583
      %v627 = vunpack.c.l.b16 %v584
      %v628 = vunpack.c.h.b16 %v584
      %v629 = vunpack.c.l.b16 %v585
      %v630 = vunpack.c.h.b16 %v585
      %v631 = vunpack.c.l.b16 %v586
      %v632 = vunpack.c.h.b16 %v586
      %v633 = vunpack.c.l.b16 %v587
      %v634 = vunpack.c.h.b16 %v587
      %v635 = vunpack.c.l.b16 %v588
      %v636 = vunpack.c.h.b16 %v588
      %v637 = vpack.c.b16 %v605, %v605
      %v638 = vpack.c.b16 %v606, %v606
      %v639 = vpack.c.b16 %v607, %v607
      %v640 = vpack.c.b16 %v608, %v608
      %v641 = vpack.c.b16 %v609, %v609
      %v642 = vpack.c.b16 %v610, %v610
      %v643 = vpack.c.b16 %v611, %v611
      %v644 = vpack.c.b16 %v612, %v612
      %v645 = vpack.c.b16 %v613, %v613
      %v646 = vpack.c.b16 %v614, %v614
      %v647 = vpack.c.b16 %v615, %v615
      %v648 = vpack.c.b16 %v616, %v616
      %v649 = vpack.c.b16 %v617, %v617
      %v650 = vpack.c.b16 %v618, %v618
      %v651 = vpack.c.b16 %v619, %v619
      %v652 = vpack.c.b16 %v620, %v620
      %v653 = vpack.c.b16 %v621, %v621
      %v654 = vpack.c.b16 %v622, %v622
      %v655 = vpack.c.b16 %v623, %v623
      %v656 = vpack.c.b16 %v624, %v624
      %v657 = vpack.c.b16 %v625, %v625
      %v658 = vpack.c.b16 %v626, %v626
      %v659 = vpack.c.b16 %v627, %v627
      %v660 = vpack.c.b16 %v628, %v628
      %v661 = vpack.c.b16 %v629, %v629
      %v662 = vpack.c.b16 %v630, %v630
      %v663 = vpack.c.b16 %v631, %v631
      %v664 = vpack.c.b16 %v632, %v632
      %v665 = vpack.c.b16 %v633, %v633
      %v666 = vpack.c.b16 %v634, %v634
      %v667 = vpack.c.b16 %v635, %v635
      %v668 = vpack.c.b16 %v636, %v636
      %701 = vst [vmem:[%s206] sm:$0xf] %v637
      %702 = vst [vmem:[%s206 + $0x4] sm:$0xf] %v638
      %703 = vst [vmem:[%s206 + $0x8] sm:$0xf] %v639
      %704 = vst [vmem:[%s206 + $0xc] sm:$0xf] %v640
      %705 = vst [vmem:[%s206 + $0x10] sm:$0xf] %v641
      %706 = vst [vmem:[%s206 + $0x14] sm:$0xf] %v642
      %707 = vst [vmem:[%s206 + $0x18] sm:$0xf] %v643
      %708 = vst [vmem:[%s206 + $0x1c] sm:$0xf] %v644
      %709 = vst [vmem:[%s206 + $0x20] sm:$0xf] %v645
      %710 = vst [vmem:[%s206 + $0x24] sm:$0xf] %v646
      %711 = vst [vmem:[%s206 + $0x28] sm:$0xf] %v647
      %712 = vst [vmem:[%s206 + $0x2c] sm:$0xf] %v648
      %713 = vst [vmem:[%s206 + $0x30] sm:$0xf] %v649
      %714 = vst [vmem:[%s206 + $0x34] sm:$0xf] %v650
      %715 = vst [vmem:[%s206 + $0x38] sm:$0xf] %v651
      %716 = vst [vmem:[%s206 + $0x3c] sm:$0xf] %v652
      %717 = vst [vmem:[%s206 + $0x40] sm:$0xf] %v653
      %718 = vst [vmem:[%s206 + $0x44] sm:$0xf] %v654
      %719 = vst [vmem:[%s206 + $0x48] sm:$0xf] %v655
      %720 = vst [vmem:[%s206 + $0x4c] sm:$0xf] %v656
      %721 = vst [vmem:[%s206 + $0x50] sm:$0xf] %v657
      %722 = vst [vmem:[%s206 + $0x54] sm:$0xf] %v658
      %723 = vst [vmem:[%s206 + $0x58] sm:$0xf] %v659
      %724 = vst [vmem:[%s206 + $0x5c] sm:$0xf] %v660
      %725 = vst [vmem:[%s206 + $0x60] sm:$0xf] %v661
      %726 = vst [vmem:[%s206 + $0x64] sm:$0xf] %v662
      %727 = vst [vmem:[%s206 + $0x68] sm:$0xf] %v663
      %728 = vst [vmem:[%s206 + $0x6c] sm:$0xf] %v664
      %729 = vst [vmem:[%s206 + $0x70] sm:$0xf] %v665
      %730 = vst [vmem:[%s206 + $0x74] sm:$0xf] %v666
      %731 = vst [vmem:[%s206 + $0x78] sm:$0xf] %v667
      %732 = vst [vmem:[%s206 + $0x7c] sm:$0xf] %v668
      %v733 = vadd.f32 %v447, %v450
      %v734 = vadd.f32 %v733, %v455
      %v735 = vadd.f32 %v734, %v458
      %v736 = vadd.f32 %v735, %v463
      %v737 = vadd.f32 %v736, %v466
      %v738 = vadd.f32 %v737, %v471
      %v739 = vadd.f32 %v738, %v474
      %v740 = vadd.f32 %v739, %v479
      %v741 = vadd.f32 %v740, %v482
      %v742 = vadd.f32 %v741, %v487
      %v743 = vadd.f32 %v742, %v490
      %v744 = vadd.f32 %v743, %v495
      %v745 = vadd.f32 %v744, %v498
      %v746 = vadd.f32 %v745, %v503
      %v747 = vadd.f32 %v746, %v506
      %v748 = vadd.f32 %v747, %v511
      %v749 = vadd.f32 %v748, %v514
      %v750 = vadd.f32 %v749, %v519
      %v751 = vadd.f32 %v750, %v522
      %v752 = vadd.f32 %v751, %v527
      %v753 = vadd.f32 %v752, %v530
      %v754 = vadd.f32 %v753, %v535
      %v755 = vadd.f32 %v754, %v538
      %v756 = vadd.f32 %v755, %v543
      %v757 = vadd.f32 %v756, %v546
      %v758 = vadd.f32 %v757, %v551
      %v759 = vadd.f32 %v758, %v554
      %v760 = vadd.f32 %v759, %v559
      %v761 = vadd.f32 %v760, %v562
      %v762 = vadd.f32 %v761, %v567
      %v763 = vadd.f32 %v762, %v570
      %v764 = vrot.slane %v763, 4
      %v765 = vadd.f32 %v763, %v764
      %v766 = vrot.slane %v765, 2
      %v767 = vadd.f32 %v765, %v766
      %v768 = vrot.slane %v767, 1
      %v769 = vadd.f32 %v767, %v768
      %770 = vst [vmem:[%s211] sm:$0x1] %v769
      %v771 = vmul.f32 %v447, %v447
      %v772 = vmul.f32 %v450, %v450
      %v773 = vmul.f32 %v455, %v455
      %v774 = vmul.f32 %v458, %v458
      %v775 = vmul.f32 %v463, %v463
      %v776 = vmul.f32 %v466, %v466
      %v777 = vmul.f32 %v471, %v471
      %v778 = vmul.f32 %v474, %v474
      %v779 = vmul.f32 %v479, %v479
      %v780 = vmul.f32 %v482, %v482
      %v781 = vmul.f32 %v487, %v487
      %v782 = vmul.f32 %v490, %v490
      %v783 = vmul.f32 %v495, %v495
      %v784 = vmul.f32 %v498, %v498
      %v785 = vmul.f32 %v503, %v503
      %v786 = vmul.f32 %v506, %v506
      %v787 = vmul.f32 %v511, %v511
      %v788 = vmul.f32 %v514, %v514
      %v789 = vmul.f32 %v519, %v519
      %v790 = vmul.f32 %v522, %v522
      %v791 = vmul.f32 %v527, %v527
      %v792 = vmul.f32 %v530, %v530
      %v793 = vmul.f32 %v535, %v535
      %v794 = vmul.f32 %v538, %v538
      %v795 = vmul.f32 %v543, %v543
      %v796 = vmul.f32 %v546, %v546
      %v797 = vmul.f32 %v551, %v551
      %v798 = vmul.f32 %v554, %v554
      %v799 = vmul.f32 %v559, %v559
      %v800 = vmul.f32 %v562, %v562
      %v801 = vmul.f32 %v567, %v567
      %v802 = vmul.f32 %v570, %v570
      %v803 = vadd.f32 %v771, %v772
      %v804 = vadd.f32 %v803, %v773
      %v805 = vadd.f32 %v804, %v774
      %v806 = vadd.f32 %v805, %v775
      %v807 = vadd.f32 %v806, %v776
      %v808 = vadd.f32 %v807, %v777
      %v809 = vadd.f32 %v808, %v778
      %v810 = vadd.f32 %v809, %v779
      %v811 = vadd.f32 %v810, %v780
      %v812 = vadd.f32 %v811, %v781
      %v813 = vadd.f32 %v812, %v782
      %v814 = vadd.f32 %v813, %v783
      %v815 = vadd.f32 %v814, %v784
      %v816 = vadd.f32 %v815, %v785
      %v817 = vadd.f32 %v816, %v786
      %v818 = vadd.f32 %v817, %v787
      %v819 = vadd.f32 %v818, %v788
      %v820 = vadd.f32 %v819, %v789
      %v821 = vadd.f32 %v820, %v790
      %v822 = vadd.f32 %v821, %v791
      %v823 = vadd.f32 %v822, %v792
      %v824 = vadd.f32 %v823, %v793
      %v825 = vadd.f32 %v824, %v794
      %v826 = vadd.f32 %v825, %v795
      %v827 = vadd.f32 %v826, %v796
      %v828 = vadd.f32 %v827, %v797
      %v829 = vadd.f32 %v828, %v798
      %v830 = vadd.f32 %v829, %v799
      %v831 = vadd.f32 %v830, %v800
      %v832 = vadd.f32 %v831, %v801
      %v833 = vadd.f32 %v832, %v802
      %v834 = vrot.slane %v833, 4
      %v835 = vadd.f32 %v833, %v834
      %v836 = vrot.slane %v835, 2
      %v837 = vadd.f32 %v835, %v836
      %v838 = vrot.slane %v837, 1
      %v839 = vadd.f32 %v837, %v838
      %840 = vst [vmem:[%s211 + $0x1] sm:$0x1] %v839
      %s841 = smul.u32 32, %s16
      %p842 = scmp.lt.s32.totalorder %s841, 63
      %s843 = scalar_select %p842, %s841, 63
      %s844 = smul.addr %s843, 4
      %s845 = scalar_lea.vmem %s3, %s844
      %p846 = scmp.lt.s32.totalorder %s16, 1
      %s847 = scalar_select %p846, %s16, 1
      %s848 = smul.addr %s847, 2
      %s849 = scalar_lea.vmem %s4, %s848
      // Predicated region
      $region33: #{mynet_forward.6} parent=31 // pred_check
        %p850 = pneg %p102
      $region34: #{mynet_forward.6} parent=31 // pred_check_branch
        %852 = sbr.rel (%p850) target = $region36
      $region35: #{mynet_forward.6} parent=31 // pred_region
        %s853 = smul.u32 32, %s16
      $region36: #{mynet_forward.6} parent=31 // pred_fallthru
        _
      // Predicated region
      $region37: #{mynet_forward.6} parent=31 // pred_check
        %p854 = pneg %p128
      $region38: #{mynet_forward.6} parent=31 // pred_check_branch
        %856 = sbr.rel (%p854) target = $region40
      $region39: #{mynet_forward.6} parent=31 // pred_region
        _
      $region40: #{mynet_forward.6} parent=31 // pred_fallthru
        _
    $region32: #{mynet_forward.6} parent=5 // pred_fallthru
      _
    %p857 = scmp.le.s32.totalorder 2, %s11
    // Predicated region
    $region41: #{mynet_forward.6} parent=5 // pred_check
      %p858 = pneg %p857
    $region42: #{mynet_forward.6} parent=5 // pred_check_branch
      %860 = sbr.rel (%p858) target = $region44
    $region43: #{mynet_forward.6} parent=5 // pred_region
      %s861 = ssub.s32 %s11, 2
      // Predicated region
      $region45: #{mynet_forward.6} parent=43 // pred_check
        %p862 = pneg %p108
      $region46: #{mynet_forward.6} parent=43 // pred_check_branch
        %864 = sbr.rel (%p862) target = $region48
      $region47: #{mynet_forward.6} parent=43 // pred_region
        %s865 = smul.u32 32, %s17
        %p866 = scmp.lt.s32.totalorder %s865, 63
        %s867 = scalar_select %p866, %s865, 63
        %s868 = smul.addr %s867, 4
        %s869 = scalar_lea.vmem %s3, %s868
      $region48: #{mynet_forward.6} parent=43 // pred_fallthru
        _
      // Predicated region
      $region49: #{mynet_forward.6} parent=43 // pred_check
        %p870 = pneg %p134
      $region50: #{mynet_forward.6} parent=43 // pred_check_branch
        %872 = sbr.rel (%p870) target = $region52
      $region51: #{mynet_forward.6} parent=43 // pred_region
        %p873 = scmp.lt.s32.totalorder %s17, 1
        %s874 = scalar_select %p873, %s17, 1
        %s875 = smul.addr %s874, 2
        %s876 = scalar_lea.vmem %s4, %s875
      $region52: #{mynet_forward.6} parent=43 // pred_fallthru
        _
    $region44: #{mynet_forward.6} parent=5 // pred_fallthru
      _
  $region6: #{mynet_forward.6} parent=0 // loop_footer
    %s15 = sadd.s32 1, %s11
  $region7: #{mynet_forward.6} parent=0 // loop_footer_branch
    %10 = sbr.rel target = $region3
  $region8: #{mynet_forward.6} parent=0 // loop_exit
    _

// kernel: mynet_forward.7
$region0: #{mynet_forward.7}
  #allocation0 [shape = 'u32[]', space=smem, size = 0x4, offset = 0x4, fixed_abs, tag = 'smem constant byte address 0x4 - core index']
  #allocation1 [shape = 'u32[144,128]{1,0:T(1,128)}', space=vmem, size = 0x12000, scoped, tag = 'internal scratch']
  %s0 = inlined_call_operand.vmem [shape: bf16[512,128], index: 0, kind: input, shape index: {}]
  %s1 = inlined_call_operand.vmem [shape: f32[2,128], index: 1, kind: input, shape index: {}]
  %s2 = inlined_call_operand.vmem [shape: f32[1,128], index: 2, kind: input, shape index: {}]
  %s3 = inlined_call_operand.vmem [shape: f32[1,128], index: 3, kind: input, shape index: {}]
  %s4 = inlined_call_operand.hbm [shape: f32[512,128], index: 4, kind: output, shape index: {}]
  %s5 = sld [smem:[#allocation0]]
  $region49: #{mynet_forward.7} parent=0
    _
  %s7 = ssub.s32 1, %s5
  %s8 = scalar_select 0, %s7, %s5
  $region1: #{mynet_forward.7} parent=0
    #allocation2 [shape = 'u8[262144]{0}', space=vmem, size = 0x40000, scoped, tag = 'output window, operand 0']
    #allocation3 [shape = 's32[2]{0}', space=sflag, size = 0x8, scoped, tag = 'scoped memory for mynet_forward.7']
    %9 = vsyncpa [#allocation3], 0
    %s10 = scalar_lea.sflag [#allocation3], 1
    %11 = vsyncpa %s10, 0
    loop: start=0, step=1, limit=4
    $region2: #{mynet_forward.7} parent=1 // loop_pre_header
      _
    $region3: #{mynet_forward.7} parent=1 // loop_header
      %s13 = sphi 0, %s17
      %p14 = scmp.ge.s32.totalorder %s13, 4
      %s23 = sphi 0, %s25
      %s26 = sphi 0, %s23
      %s27 = sphi 0, %s26
      %s43 = sphi 0, %s27
      %s47 = sphi 0, %s47
      %s49 = sphi 0, %s47
      %s50 = sphi 0, %s49
      %s64 = sphi 0, %s50
      %s68 = sphi 0, %s68
      %s70 = sphi 0, %s68
      %s71 = sphi 0, %s70
      %s85 = sphi 0, %s71
      %s89 = sphi 0, %s89
      %s91 = sphi 0, %s89
      %s92 = sphi 0, %s91
      %s106 = sphi 0, %s92
      %s112 = sphi 0, %s114
      %s115 = sphi 0, %s112
      %s116 = sphi 0, %s115
      %s132 = sphi 0, %s116
    $region4: #{mynet_forward.7} parent=1 // loop_header_branch
      %16 = sbr.rel (%p14) target = $region8
    $region5: #{mynet_forward.7} parent=1 // loop_body
      %s18 = ssub.s32 %s13, 1
      %s19 = ssub.s32 %s13, 2
      %s20 = sadd.s32 %s13, 1
      %s21 = ssub.s32 %s13, %s20
      %p22 = scmp.eq.s32.totalorder %s21, 0
      %s24 = sadd.s32 %s23, 1
      %s25 = scalar_select %p22, %s23, %s24
      %p28 = pneg %p22
      %p29 = scmp.eq.s32.totalorder %s13, 1
      %p30 = por %p28, %p29
      %p31 = scmp.ne.s32.totalorder %s23, %s26
      %p32 = scmp.eq.s32.totalorder %s13, 0
      %p33 = por %p31, %p32
      %p34 = scmp.ne.s32.totalorder %s23, %s26
      %p35 = scmp.eq.s32.totalorder %s18, 1
      %p36 = por %p34, %p35
      %p37 = scmp.ne.s32.totalorder %s26, %s27
      %p38 = scmp.eq.s32.totalorder %s18, 0
      %p39 = por %p37, %p38
      %p40 = scmp.ne.s32.totalorder %s26, %s27
      %p41 = scmp.eq.s32.totalorder %s19, 1
      %p42 = por %p40, %p41
      %p44 = scmp.ne.s32.totalorder %s27, %s43
      %p45 = scmp.eq.s32.totalorder %s19, 0
      %p46 = por %p44, %p45
      %s48 = sadd.s32 %s47, 1
      %p51 = scmp.eq.s32.totalorder %s13, 1
      %p52 = scmp.ne.s32.totalorder %s47, %s49
      %p53 = scmp.eq.s32.totalorder %s13, 0
      %p54 = por %p52, %p53
      %p55 = scmp.ne.s32.totalorder %s47, %s49
      %p56 = scmp.eq.s32.totalorder %s18, 1
      %p57 = por %p55, %p56
      %p58 = scmp.ne.s32.totalorder %s49, %s50
      %p59 = scmp.eq.s32.totalorder %s18, 0
      %p60 = por %p58, %p59
      %p61 = scmp.ne.s32.totalorder %s49, %s50
      %p62 = scmp.eq.s32.totalorder %s19, 1
      %p63 = por %p61, %p62
      %p65 = scmp.ne.s32.totalorder %s50, %s64
      %p66 = scmp.eq.s32.totalorder %s19, 0
      %p67 = por %p65, %p66
      %s69 = sadd.s32 %s68, 1
      %p72 = scmp.eq.s32.totalorder %s13, 1
      %p73 = scmp.ne.s32.totalorder %s68, %s70
      %p74 = scmp.eq.s32.totalorder %s13, 0
      %p75 = por %p73, %p74
      %p76 = scmp.ne.s32.totalorder %s68, %s70
      %p77 = scmp.eq.s32.totalorder %s18, 1
      %p78 = por %p76, %p77
      %p79 = scmp.ne.s32.totalorder %s70, %s71
      %p80 = scmp.eq.s32.totalorder %s18, 0
      %p81 = por %p79, %p80
      %p82 = scmp.ne.s32.totalorder %s70, %s71
      %p83 = scmp.eq.s32.totalorder %s19, 1
      %p84 = por %p82, %p83
      %p86 = scmp.ne.s32.totalorder %s71, %s85
      %p87 = scmp.eq.s32.totalorder %s19, 0
      %p88 = por %p86, %p87
      %s90 = sadd.s32 %s89, 1
      %p93 = scmp.eq.s32.totalorder %s13, 1
      %p94 = scmp.ne.s32.totalorder %s89, %s91
      %p95 = scmp.eq.s32.totalorder %s13, 0
      %p96 = por %p94, %p95
      %p97 = scmp.ne.s32.totalorder %s89, %s91
      %p98 = scmp.eq.s32.totalorder %s18, 1
      %p99 = por %p97, %p98
      %p100 = scmp.ne.s32.totalorder %s91, %s92
      %p101 = scmp.eq.s32.totalorder %s18, 0
      %p102 = por %p100, %p101
      %p103 = scmp.ne.s32.totalorder %s91, %s92
      %p104 = scmp.eq.s32.totalorder %s19, 1
      %p105 = por %p103, %p104
      %p107 = scmp.ne.s32.totalorder %s92, %s106
      %p108 = scmp.eq.s32.totalorder %s19, 0
      %p109 = por %p107, %p108
      %s110 = ssub.s32 %s13, %s20
      %p111 = scmp.eq.s32.totalorder %s110, 0
      %s113 = sadd.s32 %s112, 1
      %s114 = scalar_select %p111, %s112, %s113
      %p117 = pneg %p111
      %p118 = scmp.eq.s32.totalorder %s13, 1
      %p119 = por %p117, %p118
      %p120 = scmp.ne.s32.totalorder %s112, %s115
      %p121 = scmp.eq.s32.totalorder %s13, 0
      %p122 = por %p120, %p121
      %p123 = scmp.ne.s32.totalorder %s112, %s115
      %p124 = scmp.eq.s32.totalorder %s18, 1
      %p125 = por %p123, %p124
      %p126 = scmp.ne.s32.totalorder %s115, %s116
      %p127 = scmp.eq.s32.totalorder %s18, 0
      %p128 = por %p126, %p127
      %p129 = scmp.ne.s32.totalorder %s115, %s116
      %p130 = scmp.eq.s32.totalorder %s19, 1
      %p131 = por %p129, %p130
      %p133 = scmp.ne.s32.totalorder %s116, %s132
      %p134 = scmp.eq.s32.totalorder %s19, 0
      %p135 = por %p133, %p134
      %p136 = scmp.le.s32.totalorder 1, %s13
      %p137 = scmp.lt.s32.totalorder %s13, 3
      %p138 = pnand %p136, %p137
      %p139 = pneg %p138
      // Predicated region
      $region9: #{mynet_forward.7} parent=5 // pred_check
        _
      $region10: #{mynet_forward.7} parent=5 // pred_check_branch
        %141 = sbr.rel (%p138) target = $region12
      $region11: #{mynet_forward.7} parent=5 // pred_region
        %s142 = ssub.s32 %s13, 1
        // Predicated region
        $region13: #{mynet_forward.7} parent=11 // pred_check
          %p143 = pneg %p60
        $region14: #{mynet_forward.7} parent=11 // pred_check_branch
          %145 = sbr.rel (%p143) target = $region16
        $region15: #{mynet_forward.7} parent=11 // pred_region
          _
        $region16: #{mynet_forward.7} parent=11 // pred_fallthru
          _
        // Predicated region
        $region17: #{mynet_forward.7} parent=11 // pred_check
          %p146 = pneg %p81
        $region18: #{mynet_forward.7} parent=11 // pred_check_branch
          %148 = sbr.rel (%p146) target = $region20
        $region19: #{mynet_forward.7} parent=11 // pred_region
          _
        $region20: #{mynet_forward.7} parent=11 // pred_fallthru
          _
        // Predicated region
        $region21: #{mynet_forward.7} parent=11 // pred_check
          %p149 = pneg %p102
        $region22: #{mynet_forward.7} parent=11 // pred_check_branch
          %151 = sbr.rel (%p149) target = $region24
        $region23: #{mynet_forward.7} parent=11 // pred_region
          _
        $region24: #{mynet_forward.7} parent=11 // pred_fallthru
          _
      $region12: #{mynet_forward.7} parent=5 // pred_fallthru
        _
      %p152 = scmp.lt.s32.totalorder %s13, 2
      // Predicated region
      $region25: #{mynet_forward.7} parent=5 // pred_check
        %p153 = pneg %p152
      $region26: #{mynet_forward.7} parent=5 // pred_check_branch
        %155 = sbr.rel (%p153) target = $region28
      $region27: #{mynet_forward.7} parent=5 // pred_region
        // Predicated region
        $region29: #{mynet_forward.7} parent=27 // pred_check
          %p156 = pneg %p33
        $region30: #{mynet_forward.7} parent=27 // pred_check_branch
          %158 = sbr.rel (%p156) target = $region32
        $region31: #{mynet_forward.7} parent=27 // pred_region
          %s159 = smul.u32 32, %s13
          %p160 = scmp.lt.s32.totalorder %s159, 63
          %s161 = scalar_select %p160, %s159, 63
          %s162 = smul.addr %s161, 4
          %s163 = scalar_lea.vmem %s0, %s162
          %s164 = smul.u32 32, %s13
        $region32: #{mynet_forward.7} parent=27 // pred_fallthru
          _
      $region28: #{mynet_forward.7} parent=5 // pred_fallthru
        _
      %p165 = scmp.le.s32.totalorder 1, %s13
      %p166 = scmp.lt.s32.totalorder %s13, 3
      %p167 = pnand %p165, %p166
      %p168 = pneg %p167
      // Predicated region
      $region33: #{mynet_forward.7} parent=5 // pred_check
        _
      $region34: #{mynet_forward.7} parent=5 // pred_check_branch
        %170 = sbr.rel (%p167) target = $region36
      $region35: #{mynet_forward.7} parent=5 // pred_region
        %s171 = ssub.s32 %s13, 1
        %s172 = smul.u32 32, %s18
        %p173 = scmp.lt.s32.totalorder %s172, 63
        %s174 = scalar_select %p173, %s172, 63
        %s175 = smul.addr %s174, 4
        %s176 = scalar_lea.vmem %s0, %s175
        %p177 = pneg %p39
        %p178 = pneg %p36
        %p179 = pneg %p60
        %p180 = pneg %p57
        %p181 = pneg %p81
        %p182 = pneg %p78
        %p183 = pneg %p102
        %p184 = pneg %p99
        %p185 = pneg %p128
        %p186 = pneg %p125
        %s187 = sand.u32 %s115, 1
        %s188 = scalar_lea.sflag [#allocation3], %s187
        %s189 = sand.u32 %s115, 1
        %s190 = smul.addr %s189, 256
        %s191 = scalar_lea.vmem [#allocation2], %s190
        %s192 = smul.u32 32, %s18
        %p193 = scmp.lt.s32.totalorder %s192, 63
        %s194 = scalar_select %p193, %s192, 63
        %s195 = smul.addr %s194, 4
        %s196 = scalar_lea.vmem %s0, %s195
        %s197 = smul.u32 32, %s18
        %s198 = smul.u32 32, %s18
        %v199 = vld [vmem:[%s1] sm:$0x1]
        %v200 = vmul.f32 %v199, 0.001953125
        %v201 = vld [vmem:[%s1 + $0x1] sm:$0x1]
        %v202 = vmul.f32 %v201, 0.001953125
        %v203 = vmul.f32 %v200, %v200
        %v204 = vsub.f32 %v202, %v203
        %v205 = vld [vmem:[%s2] sm:$0x1]
        %v206 = vadd.f32 %v204, 1e-05
        %v207 = vrsqrt.pop %v206
        %v208 = vmul.f32 %v205, %v207
        %v209 = vld [vmem:[%s3] sm:$0x1]
        %v210 = vmul.f32 %v200, %v208
        %v211 = vsub.f32 %v209, %v210
        %v212 = vld [vmem:[%s196] sm:$0xf]
        %v213 = vld [vmem:[%s196 + $0x4] sm:$0xf]
        %v214 = vld [vmem:[%s196 + $0x8] sm:$0xf]
        %v215 = vld [vmem:[%s196 + $0xc] sm:$0xf]
        %v216 = vld [vmem:[%s196 + $0x10] sm:$0xf]
        %v217 = vld [vmem:[%s196 + $0x14] sm:$0xf]
        %v218 = vld [vmem:[%s196 + $0x18] sm:$0xf]
        %v219 = vld [vmem:[%s196 + $0x1c] sm:$0xf]
        %v220 = vld [vmem:[%s196 + $0x20] sm:$0xf]
        %v221 = vld [vmem:[%s196 + $0x24] sm:$0xf]
        %v222 = vld [vmem:[%s196 + $0x28] sm:$0xf]
        %v223 = vld [vmem:[%s196 + $0x2c] sm:$0xf]
        %v224 = vld [vmem:[%s196 + $0x30] sm:$0xf]
        %v225 = vld [vmem:[%s196 + $0x34] sm:$0xf]
        %v226 = vld [vmem:[%s196 + $0x38] sm:$0xf]
        %v227 = vld [vmem:[%s196 + $0x3c] sm:$0xf]
        %v228 = vld [vmem:[%s196 + $0x40] sm:$0xf]
        %v229 = vld [vmem:[%s196 + $0x44] sm:$0xf]
        %v230 = vld [vmem:[%s196 + $0x48] sm:$0xf]
        %v231 = vld [vmem:[%s196 + $0x4c] sm:$0xf]
        %v232 = vld [vmem:[%s196 + $0x50] sm:$0xf]
        %v233 = vld [vmem:[%s196 + $0x54] sm:$0xf]
        %v234 = vld [vmem:[%s196 + $0x58] sm:$0xf]
        %v235 = vld [vmem:[%s196 + $0x5c] sm:$0xf]
        %v236 = vld [vmem:[%s196 + $0x60] sm:$0xf]
        %v237 = vld [vmem:[%s196 + $0x64] sm:$0xf]
        %v238 = vld [vmem:[%s196 + $0x68] sm:$0xf]
        %v239 = vld [vmem:[%s196 + $0x6c] sm:$0xf]
        %v240 = vld [vmem:[%s196 + $0x70] sm:$0xf]
        %v241 = vld [vmem:[%s196 + $0x74] sm:$0xf]
        %v242 = vld [vmem:[%s196 + $0x78] sm:$0xf]
        %v243 = vld [vmem:[%s196 + $0x7c] sm:$0xf]
        %v244 = vunpack.c.l.bf16 %v212
        %v245 = vunpack.c.l.bf16 %v213
        %v246 = vunpack.c.l.bf16 %v214
        %v247 = vunpack.c.l.bf16 %v215
        %v248 = vunpack.c.l.bf16 %v216
        %v249 = vunpack.c.l.bf16 %v217
        %v250 = vunpack.c.l.bf16 %v218
        %v251 = vunpack.c.l.bf16 %v219
        %v252 = vunpack.c.l.bf16 %v220
        %v253 = vunpack.c.l.bf16 %v221
        %v254 = vunpack.c.l.bf16 %v222
        %v255 = vunpack.c.l.bf16 %v223
        %v256 = vunpack.c.l.bf16 %v224
        %v257 = vunpack.c.l.bf16 %v225
        %v258 = vunpack.c.l.bf16 %v226
        %v259 = vunpack.c.l.bf16 %v227
        %v260 = vunpack.c.l.bf16 %v228
        %v261 = vunpack.c.l.bf16 %v229
        %v262 = vunpack.c.l.bf16 %v230
        %v263 = vunpack.c.l.bf16 %v231
        %v264 = vunpack.c.l.bf16 %v232
        %v265 = vunpack.c.l.bf16 %v233
        %v266 = vunpack.c.l.bf16 %v234
        %v267 = vunpack.c.l.bf16 %v235
        %v268 = vunpack.c.l.bf16 %v236
        %v269 = vunpack.c.l.bf16 %v237
        %v270 = vunpack.c.l.bf16 %v238
        %v271 = vunpack.c.l.bf16 %v239
        %v272 = vunpack.c.l.bf16 %v240
        %v273 = vunpack.c.l.bf16 %v241
        %v274 = vunpack.c.l.bf16 %v242
        %v275 = vunpack.c.l.bf16 %v243
        %v277 = vlaneseq
        %v278 = vshrl.u32 %v277, 7
        %v279 = vsub.s32 0, %v278
        %v280 = vrot.slane %v208, %v279
        %v282 = vmul.f32 %v244, %v280
        %v283 = vmul.f32 %v245, %v280
        %v284 = vmul.f32 %v246, %v280
        %v285 = vmul.f32 %v247, %v280
        %v286 = vmul.f32 %v248, %v280
        %v287 = vmul.f32 %v249, %v280
        %v288 = vmul.f32 %v250, %v280
        %v289 = vmul.f32 %v251, %v280
        %v290 = vmul.f32 %v252, %v280
        %v291 = vmul.f32 %v253, %v280
        %v292 = vmul.f32 %v254, %v280
        %v293 = vmul.f32 %v255, %v280
        %v294 = vmul.f32 %v256, %v280
        %v295 = vmul.f32 %v257, %v280
        %v296 = vmul.f32 %v258, %v280
        %v297 = vmul.f32 %v259, %v280
        %v298 = vmul.f32 %v260, %v280
        %v299 = vmul.f32 %v261, %v280
        %v300 = vmul.f32 %v262, %v280
        %v301 = vmul.f32 %v263, %v280
        %v302 = vmul.f32 %v264, %v280
        %v303 = vmul.f32 %v265, %v280
        %v304 = vmul.f32 %v266, %v280
        %v305 = vmul.f32 %v267, %v280
        %v306 = vmul.f32 %v268, %v280
        %v307 = vmul.f32 %v269, %v280
        %v308 = vmul.f32 %v270, %v280
        %v309 = vmul.f32 %v271, %v280
        %v310 = vmul.f32 %v272, %v280
        %v311 = vmul.f32 %v273, %v280
        %v312 = vmul.f32 %v274, %v280
        %v313 = vmul.f32 %v275, %v280
        %v315 = vlaneseq
        %v316 = vshrl.u32 %v315, 7
        %v317 = vsub.s32 0, %v316
        %v318 = vrot.slane %v211, %v317
        %v320 = vadd.f32 %v282, %v318
        %v321 = vadd.f32 %v283, %v318
        %v322 = vadd.f32 %v284, %v318
        %v323 = vadd.f32 %v285, %v318
        %v324 = vadd.f32 %v286, %v318
        %v325 = vadd.f32 %v287, %v318
        %v326 = vadd.f32 %v288, %v318
        %v327 = vadd.f32 %v289, %v318
        %v328 = vadd.f32 %v290, %v318
        %v329 = vadd.f32 %v291, %v318
        %v330 = vadd.f32 %v292, %v318
        %v331 = vadd.f32 %v293, %v318
        %v332 = vadd.f32 %v294, %v318
        %v333 = vadd.f32 %v295, %v318
        %v334 = vadd.f32 %v296, %v318
        %v335 = vadd.f32 %v297, %v318
        %v336 = vadd.f32 %v298, %v318
        %v337 = vadd.f32 %v299, %v318
        %v338 = vadd.f32 %v300, %v318
        %v339 = vadd.f32 %v301, %v318
        %v340 = vadd.f32 %v302, %v318
        %v341 = vadd.f32 %v303, %v318
        %v342 = vadd.f32 %v304, %v318
        %v343 = vadd.f32 %v305, %v318
        %v344 = vadd.f32 %v306, %v318
        %v345 = vadd.f32 %v307, %v318
        %v346 = vadd.f32 %v308, %v318
        %v347 = vadd.f32 %v309, %v318
        %v348 = vadd.f32 %v310, %v318
        %v349 = vadd.f32 %v311, %v318
        %v350 = vadd.f32 %v312, %v318
        %v351 = vadd.f32 %v313, %v318
        %352 = vst [vmem:[%s191] sm:$0xff] %v320
        %353 = vst [vmem:[%s191 + $0x8] sm:$0xff] %v321
        %354 = vst [vmem:[%s191 + $0x10] sm:$0xff] %v322
        %355 = vst [vmem:[%s191 + $0x18] sm:$0xff] %v323
        %356 = vst [vmem:[%s191 + $0x20] sm:$0xff] %v324
        %357 = vst [vmem:[%s191 + $0x28] sm:$0xff] %v325
        %358 = vst [vmem:[%s191 + $0x30] sm:$0xff] %v326
        %359 = vst [vmem:[%s191 + $0x38] sm:$0xff] %v327
        %360 = vst [vmem:[%s191 + $0x40] sm:$0xff] %v328
        %361 = vst [vmem:[%s191 + $0x48] sm:$0xff] %v329
        %362 = vst [vmem:[%s191 + $0x50] sm:$0xff] %v330
        %363 = vst [vmem:[%s191 + $0x58] sm:$0xff] %v331
        %364 = vst [vmem:[%s191 + $0x60] sm:$0xff] %v332
        %365 = vst [vmem:[%s191 + $0x68] sm:$0xff] %v333
        %366 = vst [vmem:[%s191 + $0x70] sm:$0xff] %v334
        %367 = vst [vmem:[%s191 + $0x78] sm:$0xff] %v335
        %368 = vst [vmem:[%s191 + $0x80] sm:$0xff] %v336
        %369 = vst [vmem:[%s191 + $0x88] sm:$0xff] %v337
        %370 = vst [vmem:[%s191 + $0x90] sm:$0xff] %v338
        %371 = vst [vmem:[%s191 + $0x98] sm:$0xff] %v339
        %372 = vst [vmem:[%s191 + $0xa0] sm:$0xff] %v340
        %373 = vst [vmem:[%s191 + $0xa8] sm:$0xff] %v341
        %374 = vst [vmem:[%s191 + $0xb0] sm:$0xff] %v342
        %375 = vst [vmem:[%s191 + $0xb8] sm:$0xff] %v343
        %376 = vst [vmem:[%s191 + $0xc0] sm:$0xff] %v344
        %377 = vst [vmem:[%s191 + $0xc8] sm:$0xff] %v345
        %378 = vst [vmem:[%s191 + $0xd0] sm:$0xff] %v346
        %379 = vst [vmem:[%s191 + $0xd8] sm:$0xff] %v347
        %380 = vst [vmem:[%s191 + $0xe0] sm:$0xff] %v348
        %381 = vst [vmem:[%s191 + $0xe8] sm:$0xff] %v349
        %382 = vst [vmem:[%s191 + $0xf0] sm:$0xff] %v350
        %383 = vst [vmem:[%s191 + $0xf8] sm:$0xff] %v351
        %s384 = sand.u32 %s115, 1
        %s385 = scalar_lea.sflag [#allocation3], %s384
        %s386 = sand.u32 %s115, 1
        %s387 = smul.addr %s386, 256
        %s388 = scalar_lea.vmem [#allocation2], %s387
        // Predicated region
        $region37: #{mynet_forward.7} parent=35 // pred_check
          %p389 = pneg %p125
        $region38: #{mynet_forward.7} parent=35 // pred_check_branch
          %391 = sbr.rel (%p389) target = $region40
        $region39: #{mynet_forward.7} parent=35 // pred_region
          %s392 = smul.u32 32, %s18
          %s394 = ssub.s32 4096, 4096
          %395 = vsyncadd %s385, %s394
          %s396 = smul.addr %s392, 128
          %s397 = scalar_lea.hbm %s4, %s396
          %s398 = sshll.u32 %s388, 4
          %s399 = int_to_ptr.vmem [resolvable:$true] %s398
          %404 = dma.vmem_to_hbm [thread:$0]  %s399, 4096, %s397, %s385, 128, 128, 8
        $region40: #{mynet_forward.7} parent=35 // pred_fallthru
          _
      $region36: #{mynet_forward.7} parent=5 // pred_fallthru
        _
      %p405 = scmp.le.s32.totalorder 2, %s13
      // Predicated region
      $region41: #{mynet_forward.7} parent=5 // pred_check
        %p406 = pneg %p405
      $region42: #{mynet_forward.7} parent=5 // pred_check_branch
        %408 = sbr.rel (%p406) target = $region44
      $region43: #{mynet_forward.7} parent=5 // pred_region
        %s409 = ssub.s32 %s13, 2
        // Predicated region
        $region45: #{mynet_forward.7} parent=43 // pred_check
          %p410 = pneg %p131
        $region46: #{mynet_forward.7} parent=43 // pred_check_branch
          %412 = sbr.rel (%p410) target = $region48
        $region47: #{mynet_forward.7} parent=43 // pred_region
          %s413 = sand.u32 %s116, 1
          %s414 = scalar_lea.sflag [#allocation3], %s413
          %s415 = sand.u32 %s116, 1
          %s416 = smul.addr %s415, 256
          %s417 = scalar_lea.vmem [#allocation2], %s416
          %418 = dma.done %s414, 4096
        $region48: #{mynet_forward.7} parent=43 // pred_fallthru
          _
      $region44: #{mynet_forward.7} parent=5 // pred_fallthru
        _
    $region6: #{mynet_forward.7} parent=1 // loop_footer
      %s17 = sadd.s32 1, %s13
    $region7: #{mynet_forward.7} parent=1 // loop_footer_branch
      %12 = sbr.rel target = $region3
    $region8: #{mynet_forward.7} parent=1 // loop_exit
      _
    %419 = vsyncpa [#allocation3], 1
    %s420 = scalar_lea.sflag [#allocation3], 1
    %421 = vsyncpa %s420, 1

// kernel: mynet_forward.5
$region0: #{mynet_forward.5}
  #allocation0 [shape = 'u32[]', space=smem, size = 0x4, offset = 0x4, fixed_abs, tag = 'smem constant byte address 0x4 - core index']
  #allocation1 [shape = 'u32[144,128]{1,0:T(1,128)}', space=vmem, size = 0x12000, scoped, tag = 'internal scratch']
  #allocation2 [shape = 'bf16[1,16,128]{2,1,0:T(8,128)(2,1)}', space=vmem, size = 0x1000, scoped, tag = 'scratch operand']
  #allocation3 [shape = 'bf16[1,16,128]{2,1,0:T(8,128)(2,1)}', space=vmem, size = 0x1000, scoped, tag = 'scratch operand']
  #allocation4 [shape = 's32[2]{0}', space=sflag, size = 0x8, scoped, tag = 'scratch operand']
  #allocation5 [shape = 's32[]', space=sflag, size = 0x4, offset = 0, fixed_abs, tag = 'sflag constant byte address 0x0 - dummy sync flag']
  #allocation6 [shape = 's32[]', space=sflag, size = 0x4, offset = 0, fixed_abs, tag = 'sflag constant byte address 0x0 - dummy sync flag']
  %s0 = inlined_call_operand.vmem [shape: bf16[2,16,16,128], index: 0, kind: input, shape index: {}, may-alias: {0,5}]
  %s1 = inlined_call_operand.vmem [shape: f32[1,128], index: 1, kind: input, shape index: {}]
  %s2 = inlined_call_operand.vmem [shape: f32[1,128], index: 2, kind: input, shape index: {}]
  %s3 = inlined_call_operand.vmem [shape: bf16[9,128,128], index: 3, kind: input, shape index: {}]
  %s4 = inlined_call_operand.vmem [shape: f32[1,128], index: 4, kind: input, shape index: {}]
  %s5 = inlined_call_operand.vmem [shape: bf16[2,16,16,128], index: 5, kind: input, shape index: {}, may-alias: {0,5}]
  %s6 = inlined_call_operand.vmem [shape: bf16[2,16,16,128], index: 6, kind: output, shape index: {0}]
  %s7 = inlined_call_operand.vmem [shape: f32[2,2,2,128], index: 7, kind: output, shape index: {1}]
  %8 = xla_tuple %s6, %s7
  %s9 = sld [smem:[#allocation0]]
  $region145: #{mynet_forward.5} parent=0
    _
  %s11 = ssub.s32 1, %s9
  %s12 = scalar_select 0, %s11, %s9
  loop: start=0, step=1, limit=6
  $region2: #{mynet_forward.5} parent=0 // loop_pre_header
    _
  $region3: #{mynet_forward.5} parent=0 // loop_header
    %s14 = sphi 0, %s18
    %p15 = scmp.ge.s32.totalorder %s14, 6
    %s21 = sphi 0, %s33
    %s22 = sphi 0, %s29
    %s23 = sphi 0, %s21
    %s24 = sphi 0, %s22
    %s25 = sphi 0, %s23
    %s26 = sphi 0, %s24
    %s38 = sphi 0, %s40
    %s41 = sphi 0, %s38
    %s42 = sphi 0, %s41
    %s58 = sphi 0, %s42
    %s62 = sphi 0, %s62
    %s64 = sphi 0, %s62
    %s65 = sphi 0, %s64
    %s79 = sphi 0, %s65
    %s83 = sphi 0, %s83
    %s85 = sphi 0, %s83
    %s86 = sphi 0, %s85
    %s100 = sphi 0, %s86
    %s104 = sphi 0, %s104
    %s106 = sphi 0, %s104
    %s107 = sphi 0, %s106
    %s121 = sphi 0, %s107
    %s125 = sphi 0, %s125
    %s127 = sphi 0, %s125
    %s128 = sphi 0, %s127
    %s142 = sphi 0, %s128
    %s150 = sphi 0, %s152
    %s153 = sphi 0, %s150
    %s154 = sphi 0, %s153
    %s170 = sphi 0, %s154
    %s178 = sphi 0, %s180
    %s181 = sphi 0, %s178
    %s182 = sphi 0, %s181
    %s198 = sphi 0, %s182
  $region4: #{mynet_forward.5} parent=0 // loop_header_branch
    %17 = sbr.rel (%p15) target = $region8
  $region5: #{mynet_forward.5} parent=0 // loop_body
    %s19 = ssub.s32 %s14, 1
    %s20 = ssub.s32 %s14, 2
    %s27 = sadd.s32 1, %s22
    %p28 = scmp.ge.s32.totalorder %s27, 2
    %s29 = scalar_select %p28, 0, %s27
    %s30 = sadd.s32 1, %s21
    %s31 = scalar_select %p28, %s30, %s21
    %p32 = scmp.ge.s32.totalorder %s31, 2
    %s33 = scalar_select %p32, 0, %s31
    %s34 = ssub.s32 %s21, %s33
    %s35 = ssub.s32 %s22, %s29
    %s36 = sor.u32 %s34, %s35
    %p37 = scmp.eq.s32.totalorder %s36, 0
    %s39 = sadd.s32 %s38, 1
    %s40 = scalar_select %p37, %s38, %s39
    %p43 = pneg %p37
    %p44 = scmp.eq.s32.totalorder %s14, 3
    %p45 = por %p43, %p44
    %p46 = scmp.ne.s32.totalorder %s38, %s41
    %p47 = scmp.eq.s32.totalorder %s14, 0
    %p48 = por %p46, %p47
    %p49 = scmp.ne.s32.totalorder %s38, %s41
    %p50 = scmp.eq.s32.totalorder %s19, 3
    %p51 = por %p49, %p50
    %p52 = scmp.ne.s32.totalorder %s41, %s42
    %p53 = scmp.eq.s32.totalorder %s19, 0
    %p54 = por %p52, %p53
    %p55 = scmp.ne.s32.totalorder %s41, %s42
    %p56 = scmp.eq.s32.totalorder %s20, 3
    %p57 = por %p55, %p56
    %p59 = scmp.ne.s32.totalorder %s42, %s58
    %p60 = scmp.eq.s32.totalorder %s20, 0
    %p61 = por %p59, %p60
    %s63 = sadd.s32 %s62, 1
    %p66 = scmp.eq.s32.totalorder %s14, 3
    %p67 = scmp.ne.s32.totalorder %s62, %s64
    %p68 = scmp.eq.s32.totalorder %s14, 0
    %p69 = por %p67, %p68
    %p70 = scmp.ne.s32.totalorder %s62, %s64
    %p71 = scmp.eq.s32.totalorder %s19, 3
    %p72 = por %p70, %p71
    %p73 = scmp.ne.s32.totalorder %s64, %s65
    %p74 = scmp.eq.s32.totalorder %s19, 0
    %p75 = por %p73, %p74
    %p76 = scmp.ne.s32.totalorder %s64, %s65
    %p77 = scmp.eq.s32.totalorder %s20, 3
    %p78 = por %p76, %p77
    %p80 = scmp.ne.s32.totalorder %s65, %s79
    %p81 = scmp.eq.s32.totalorder %s20, 0
    %p82 = por %p80, %p81
    %s84 = sadd.s32 %s83, 1
    %p87 = scmp.eq.s32.totalorder %s14, 3
    %p88 = scmp.ne.s32.totalorder %s83, %s85
    %p89 = scmp.eq.s32.totalorder %s14, 0
    %p90 = por %p88, %p89
    %p91 = scmp.ne.s32.totalorder %s83, %s85
    %p92 = scmp.eq.s32.totalorder %s19, 3
    %p93 = por %p91, %p92
    %p94 = scmp.ne.s32.totalorder %s85, %s86
    %p95 = scmp.eq.s32.totalorder %s19, 0
    %p96 = por %p94, %p95
    %p97 = scmp.ne.s32.totalorder %s85, %s86
    %p98 = scmp.eq.s32.totalorder %s20, 3
    %p99 = por %p97, %p98
    %p101 = scmp.ne.s32.totalorder %s86, %s100
    %p102 = scmp.eq.s32.totalorder %s20, 0
    %p103 = por %p101, %p102
    %s105 = sadd.s32 %s104, 1
    %p108 = scmp.eq.s32.totalorder %s14, 3
    %p109 = scmp.ne.s32.totalorder %s104, %s106
    %p110 = scmp.eq.s32.totalorder %s14, 0
    %p111 = por %p109, %p110
    %p112 = scmp.ne.s32.totalorder %s104, %s106
    %p113 = scmp.eq.s32.totalorder %s19, 3
    %p114 = por %p112, %p113
    %p115 = scmp.ne.s32.totalorder %s106, %s107
    %p116 = scmp.eq.s32.totalorder %s19, 0
    %p117 = por %p115, %p116
    %p118 = scmp.ne.s32.totalorder %s106, %s107
    %p119 = scmp.eq.s32.totalorder %s20, 3
    %p120 = por %p118, %p119
    %p122 = scmp.ne.s32.totalorder %s107, %s121
    %p123 = scmp.eq.s32.totalorder %s20, 0
    %p124 = por %p122, %p123
    %s126 = sadd.s32 %s125, 1
    %p129 = scmp.eq.s32.totalorder %s14, 3
    %p130 = scmp.ne.s32.totalorder %s125, %s127
    %p131 = scmp.eq.s32.totalorder %s14, 0
    %p132 = por %p130, %p131
    %p133 = scmp.ne.s32.totalorder %s125, %s127
    %p134 = scmp.eq.s32.totalorder %s19, 3
    %p135 = por %p133, %p134
    %p136 = scmp.ne.s32.totalorder %s127, %s128
    %p137 = scmp.eq.s32.totalorder %s19, 0
    %p138 = por %p136, %p137
    %p139 = scmp.ne.s32.totalorder %s127, %s128
    %p140 = scmp.eq.s32.totalorder %s20, 3
    %p141 = por %p139, %p140
    %p143 = scmp.ne.s32.totalorder %s128, %s142
    %p144 = scmp.eq.s32.totalorder %s20, 0
    %p145 = por %p143, %p144
    %s146 = ssub.s32 %s21, %s33
    %s147 = ssub.s32 %s22, %s29
    %s148 = sor.u32 %s146, %s147
    %p149 = scmp.eq.s32.totalorder %s148, 0
    %s151 = sadd.s32 %s150, 1
    %s152 = scalar_select %p149, %s150, %s151
    %p155 = pneg %p149
    %p156 = scmp.eq.s32.totalorder %s14, 3
    %p157 = por %p155, %p156
    %p158 = scmp.ne.s32.totalorder %s150, %s153
    %p159 = scmp.eq.s32.totalorder %s14, 0
    %p160 = por %p158, %p159
    %p161 = scmp.ne.s32.totalorder %s150, %s153
    %p162 = scmp.eq.s32.totalorder %s19, 3
    %p163 = por %p161, %p162
    %p164 = scmp.ne.s32.totalorder %s153, %s154
    %p165 = scmp.eq.s32.totalorder %s19, 0
    %p166 = por %p164, %p165
    %p167 = scmp.ne.s32.totalorder %s153, %s154
    %p168 = scmp.eq.s32.totalorder %s20, 3
    %p169 = por %p167, %p168
    %p171 = scmp.ne.s32.totalorder %s154, %s170
    %p172 = scmp.eq.s32.totalorder %s20, 0
    %p173 = por %p171, %p172
    %s174 = ssub.s32 %s21, %s33
    %s175 = ssub.s32 %s22, %s29
    %s176 = sor.u32 %s174, %s175
    %p177 = scmp.eq.s32.totalorder %s176, 0
    %s179 = sadd.s32 %s178, 1
    %s180 = scalar_select %p177, %s178, %s179
    %p183 = pneg %p177
    %p184 = scmp.eq.s32.totalorder %s14, 3
    %p185 = por %p183, %p184
    %p186 = scmp.ne.s32.totalorder %s178, %s181
    %p187 = scmp.eq.s32.totalorder %s14, 0
    %p188 = por %p186, %p187
    %p189 = scmp.ne.s32.totalorder %s178, %s181
    %p190 = scmp.eq.s32.totalorder %s19, 3
    %p191 = por %p189, %p190
    %p192 = scmp.ne.s32.totalorder %s181, %s182
    %p193 = scmp.eq.s32.totalorder %s19, 0
    %p194 = por %p192, %p193
    %p195 = scmp.ne.s32.totalorder %s181, %s182
    %p196 = scmp.eq.s32.totalorder %s20, 3
    %p197 = por %p195, %p196
    %p199 = scmp.ne.s32.totalorder %s182, %s198
    %p200 = scmp.eq.s32.totalorder %s20, 0
    %p201 = por %p199, %p200
    %p202 = scmp.le.s32.totalorder 1, %s14
    %p203 = scmp.lt.s32.totalorder %s14, 5
    %p204 = pnand %p202, %p203
    %p205 = pneg %p204
    // Predicated region
    $region9: #{mynet_forward.5} parent=5 // pred_check
      _
    $region10: #{mynet_forward.5} parent=5 // pred_check_branch
      %207 = sbr.rel (%p204) target = $region12
    $region11: #{mynet_forward.5} parent=5 // pred_region
      %s208 = ssub.s32 %s14, 1
      // Predicated region
      $region13: #{mynet_forward.5} parent=11 // pred_check
        %p209 = pneg %p75
      $region14: #{mynet_forward.5} parent=11 // pred_check_branch
        %211 = sbr.rel (%p209) target = $region16
      $region15: #{mynet_forward.5} parent=11 // pred_region
        _
      $region16: #{mynet_forward.5} parent=11 // pred_fallthru
        _
      // Predicated region
      $region17: #{mynet_forward.5} parent=11 // pred_check
        %p212 = pneg %p96
      $region18: #{mynet_forward.5} parent=11 // pred_check_branch
        %214 = sbr.rel (%p212) target = $region20
      $region19: #{mynet_forward.5} parent=11 // pred_region
        _
      $region20: #{mynet_forward.5} parent=11 // pred_fallthru
        _
      // Predicated region
      $region21: #{mynet_forward.5} parent=11 // pred_check
        %p215 = pneg %p117
      $region22: #{mynet_forward.5} parent=11 // pred_check_branch
        %217 = sbr.rel (%p215) target = $region24
      $region23: #{mynet_forward.5} parent=11 // pred_region
        _
      $region24: #{mynet_forward.5} parent=11 // pred_fallthru
        _
      // Predicated region
      $region25: #{mynet_forward.5} parent=11 // pred_check
        %p218 = pneg %p138
      $region26: #{mynet_forward.5} parent=11 // pred_check_branch
        %220 = sbr.rel (%p218) target = $region28
      $region27: #{mynet_forward.5} parent=11 // pred_region
        _
      $region28: #{mynet_forward.5} parent=11 // pred_fallthru
        _
    $region12: #{mynet_forward.5} parent=5 // pred_fallthru
      _
    %p221 = scmp.lt.s32.totalorder %s14, 4
    // Predicated region
    $region29: #{mynet_forward.5} parent=5 // pred_check
      %p222 = pneg %p221
    $region30: #{mynet_forward.5} parent=5 // pred_check_branch
      %224 = sbr.rel (%p222) target = $region32
    $region31: #{mynet_forward.5} parent=5 // pred_region
      // Predicated region
      $region33: #{mynet_forward.5} parent=31 // pred_check
        %p225 = pneg %p48
      $region34: #{mynet_forward.5} parent=31 // pred_check_branch
        %227 = sbr.rel (%p225) target = $region36
      $region35: #{mynet_forward.5} parent=31 // pred_region
        %s228 = smul.u32 8, %s22
        %p229 = scmp.lt.s32.totalorder %s21, 1
        %s230 = scalar_select %p229, %s21, 1
        %p231 = scmp.lt.s32.totalorder %s228, 15
        %s232 = scalar_select %p231, %s228, 15
        %s233 = smul.addr %s232, 2
        %s234 = smul.addr %s230, 32
        %s235 = sadd.s32 %s233, %s234
        %s236 = smul.addr %s235, 4
        %s237 = scalar_lea.vmem %s0, %s236
        %s238 = smul.u32 8, %s22
      $region36: #{mynet_forward.5} parent=31 // pred_fallthru
        _
    $region32: #{mynet_forward.5} parent=5 // pred_fallthru
      _
    %p239 = scmp.le.s32.totalorder 1, %s14
    %p240 = scmp.lt.s32.totalorder %s14, 5
    %p241 = pnand %p239, %p240
    %p242 = pneg %p241
    // Predicated region
    $region37: #{mynet_forward.5} parent=5 // pred_check
      _
    $region38: #{mynet_forward.5} parent=5 // pred_check_branch
      %244 = sbr.rel (%p241) target = $region40
    $region39: #{mynet_forward.5} parent=5 // pred_region
      %s245 = ssub.s32 %s14, 1
      %s246 = smul.u32 8, %s24
      %p247 = scmp.lt.s32.totalorder %s23, 1
      %s248 = scalar_select %p247, %s23, 1
      %p249 = scmp.lt.s32.totalorder %s246, 15
      %s250 = scalar_select %p249, %s246, 15
      %s251 = smul.addr %s250, 2
      %s252 = smul.addr %s248, 32
      %s253 = sadd.s32 %s251, %s252
      %s254 = smul.addr %s253, 4
      %s255 = scalar_lea.vmem %s0, %s254
      %p256 = pneg %p54
      %p257 = pneg %p51
      %p258 = pneg %p75
      %p259 = pneg %p72
      %p260 = pneg %p96
      %p261 = pneg %p93
      %p262 = pneg %p117
      %p263 = pneg %p114
      %p264 = pneg %p138
      %p265 = pneg %p135
      %p266 = pneg %p166
      %p267 = pneg %p163
      %s268 = smul.u32 8, %s24
      %p269 = scmp.lt.s32.totalorder %s23, 1
      %s270 = scalar_select %p269, %s23, 1
      %p271 = scmp.lt.s32.totalorder %s268, 15
      %s272 = scalar_select %p271, %s268, 15
      %s273 = smul.addr %s272, 2
      %s274 = smul.addr %s270, 32
      %s275 = sadd.s32 %s273, %s274
      %s276 = smul.addr %s275, 4
      %s277 = scalar_lea.vmem %s6, %s276
      %p278 = pneg %p194
      %p279 = pneg %p191
      %p280 = scmp.lt.s32.totalorder %s23, 1
      %s281 = scalar_select %p280, %s23, 1
      %p282 = scmp.lt.s32.totalorder %s24, 1
      %s283 = scalar_select %p282, %s24, 1
      %s284 = smul.addr %s281, 2
      %s285 = sadd.s32 %s283, %s284
      %s286 = smul.addr %s285, 2
      %s287 = scalar_lea.vmem %s7, %s286
      %s288 = smul.u32 8, %s24
      %p289 = scmp.lt.s32.totalorder %s23, 1
      %s290 = scalar_select %p289, %s23, 1
      %p291 = scmp.lt.s32.totalorder %s288, 15
      %s292 = scalar_select %p291, %s288, 15
      %s293 = smul.addr %s292, 2
      %s294 = smul.addr %s290, 32
      %s295 = sadd.s32 %s293, %s294
      %s296 = smul.addr %s295, 4
      %s297 = scalar_lea.vmem %s0, %s296
      %s298 = smul.u32 8, %s24
      %s299 = smul.u32 8, %s24
      %p300 = scmp.lt.s32.totalorder %s23, 1
      %s301 = scalar_select %p300, %s23, 1
      %p302 = scmp.lt.s32.totalorder %s299, 15
      %s303 = scalar_select %p302, %s299, 15
      %s304 = smul.addr %s303, 2
      %s305 = smul.addr %s301, 32
      %s306 = sadd.s32 %s304, %s305
      %s307 = smul.addr %s306, 4
      %s308 = scalar_lea.vmem %s6, %s307
      %s309 = smul.u32 8, %s24
      %p310 = scmp.lt.s32.totalorder %s23, 1
      %s311 = scalar_select %p310, %s23, 1
      %p312 = scmp.lt.s32.totalorder %s24, 1
      %s313 = scalar_select %p312, %s24, 1
      %s314 = smul.addr %s311, 2
      %s315 = sadd.s32 %s313, %s314
      %s316 = smul.addr %s315, 2
      %s317 = scalar_lea.vmem %s7, %s316
      %s319 = smul.u32 %s24, 8
      %p320 = scmp.gt.s32.totalorder %s24, 0
      // Predicated region
      $region41: #{mynet_forward.5} parent=39 // pred_check
        %p321 = pneg %p320
      $region42: #{mynet_forward.5} parent=39 // pred_check_branch
        %323 = sbr.rel (%p321) target = $region44
      $region43: #{mynet_forward.5} parent=39 // pred_region
        %s324 = ssub.s32 %s319, 1
        %s325 = smul.u32 %s324, 2
        %s326 = smul.u32 %s23, 32
        %s327 = sadd.s32 %s325, %s326
        %s328 = smul.addr %s327, 4
        %s329 = scalar_lea.vmem %s5, %s328
        %p331 = scmp.lt.u32.totalorder 8, 8
        %p332 = pneg %p331
        // Predicated region
        $region45: #{mynet_forward.5} parent=43 // pred_check
          _
        $region46: #{mynet_forward.5} parent=43 // pred_check_branch
          %334 = sbr.rel (%p331) target = $region48
        $region47: #{mynet_forward.5} parent=43 // pred_region
          %s350 = sand.u32 8, 7
          %p351 = scmp.eq.s32.totalorder %s350, 0
          // Predicated region
          $region60: #{mynet_forward.5} parent=47 // pred_check
            %p352 = pneg %p351
          $region61: #{mynet_forward.5} parent=47 // pred_check_branch
            %354 = sbr.rel (%p352) target = $region63
          $region62: #{mynet_forward.5} parent=47 // pred_region
            loop: start=0, step=1, limit=1
            $region64: #{mynet_forward.5} parent=62 // loop_pre_header
              _
            $region65: #{mynet_forward.5} parent=62 // loop_header
              %s356 = sphi 0, %s360
              %p357 = scmp.ge.s32.totalorder %s356, 1
              %s361 = sphi %s329, %s329
              %s362 = sphi [#allocation2], [#allocation2]
            $region66: #{mynet_forward.5} parent=62 // loop_header_branch
              %359 = sbr.rel (%p357) target = $region70
            $region67: #{mynet_forward.5} parent=62 // loop_body
              %v363 = vld [vmem:[%s361] sm:$0xff]
              %364 = vst [vmem:[%s362] sm:$0xff] %v363
            $region68: #{mynet_forward.5} parent=62 // loop_footer
              %s360 = sadd.s32 1, %s356
            $region69: #{mynet_forward.5} parent=62 // loop_footer_branch
              %355 = sbr.rel target = $region65
            $region70: #{mynet_forward.5} parent=62 // loop_exit
              _
          $region63: #{mynet_forward.5} parent=47 // pred_fallthru
            _
          %p365 = pneg %p351
          // Predicated region
          $region71: #{mynet_forward.5} parent=47 // pred_check
            _
          $region72: #{mynet_forward.5} parent=47 // pred_check_branch
            %367 = sbr.rel (%p351) target = $region74
          $region73: #{mynet_forward.5} parent=47 // pred_region
            %s368 = sand.u32 8, 7
          $region74: #{mynet_forward.5} parent=47 // pred_fallthru
            _
        $region48: #{mynet_forward.5} parent=43 // pred_fallthru
          _
        // Predicated region
        $region49: #{mynet_forward.5} parent=43 // pred_check
          %p335 = pneg %p331
        $region50: #{mynet_forward.5} parent=43 // pred_check_branch
          %337 = sbr.rel (%p335) target = $region52
        $region51: #{mynet_forward.5} parent=43 // pred_region
          %s338 = sshll.u32 1, 8
          %s339 = ssub.s32 %s338, 1
          loop: start=0, step=1, limit=1
          $region53: #{mynet_forward.5} parent=51 // loop_pre_header
            _
          $region54: #{mynet_forward.5} parent=51 // loop_header
            %s341 = sphi 0, %s345
            %p342 = scmp.ge.s32.totalorder %s341, 1
            %s346 = sphi %s329, %s329
            %s347 = sphi [#allocation2], [#allocation2]
          $region55: #{mynet_forward.5} parent=51 // loop_header_branch
            %344 = sbr.rel (%p342) target = $region59
          $region56: #{mynet_forward.5} parent=51 // loop_body
            %v348 = vld [vmem:[%s346] sm:%s339]
            %349 = vst [vmem:[%s347] sm:%s339] %v348
          $region57: #{mynet_forward.5} parent=51 // loop_footer
            %s345 = sadd.s32 1, %s341
          $region58: #{mynet_forward.5} parent=51 // loop_footer_branch
            %340 = sbr.rel target = $region54
          $region59: #{mynet_forward.5} parent=51 // loop_exit
            _
        $region52: #{mynet_forward.5} parent=43 // pred_fallthru
          _
        // Predicated region
        $region75: #{mynet_forward.5} parent=43 // pred_check
          _
        $region76: #{mynet_forward.5} parent=43 // pred_check_branch
          %371 = sbr.rel (0) target = $region78
        $region77: #{mynet_forward.5} parent=43 // pred_region
          %372 = vsyncadd [#allocation4], 128
        $region78: #{mynet_forward.5} parent=43 // pred_fallthru
          _
      $region44: #{mynet_forward.5} parent=39 // pred_fallthru
        _
      %p373 = scmp.lt.s32.totalorder %s24, 1
      // Predicated region
      $region79: #{mynet_forward.5} parent=39 // pred_check
        %p374 = pneg %p373
      $region80: #{mynet_forward.5} parent=39 // pred_check_branch
        %376 = sbr.rel (%p374) target = $region82
      $region81: #{mynet_forward.5} parent=39 // pred_region
        %s377 = sadd.s32 %s319, 8
        %s378 = smul.u32 %s377, 2
        %s379 = smul.u32 %s23, 32
        %s380 = sadd.s32 %s378, %s379
        %s381 = smul.addr %s380, 4
        %s382 = scalar_lea.vmem %s5, %s381
        %s383 = scalar_lea.sflag [#allocation4], 1
        %p385 = scmp.lt.u32.totalorder 8, 8
        %p386 = pneg %p385
        // Predicated region
        $region83: #{mynet_forward.5} parent=81 // pred_check
          _
        $region84: #{mynet_forward.5} parent=81 // pred_check_branch
          %388 = sbr.rel (%p385) target = $region86
        $region85: #{mynet_forward.5} parent=81 // pred_region
          %s404 = sand.u32 8, 7
          %p405 = scmp.eq.s32.totalorder %s404, 0
          // Predicated region
          $region98: #{mynet_forward.5} parent=85 // pred_check
            %p406 = pneg %p405
          $region99: #{mynet_forward.5} parent=85 // pred_check_branch
            %408 = sbr.rel (%p406) target = $region101
          $region100: #{mynet_forward.5} parent=85 // pred_region
            loop: start=0, step=1, limit=1
            $region102: #{mynet_forward.5} parent=100 // loop_pre_header
              _
            $region103: #{mynet_forward.5} parent=100 // loop_header
              %s410 = sphi 0, %s414
              %p411 = scmp.ge.s32.totalorder %s410, 1
              %s415 = sphi %s382, %s382
              %s416 = sphi [#allocation3], [#allocation3]
            $region104: #{mynet_forward.5} parent=100 // loop_header_branch
              %413 = sbr.rel (%p411) target = $region108
            $region105: #{mynet_forward.5} parent=100 // loop_body
              %v417 = vld [vmem:[%s415] sm:$0xff]
              %418 = vst [vmem:[%s416] sm:$0xff] %v417
            $region106: #{mynet_forward.5} parent=100 // loop_footer
              %s414 = sadd.s32 1, %s410
            $region107: #{mynet_forward.5} parent=100 // loop_footer_branch
              %409 = sbr.rel target = $region103
            $region108: #{mynet_forward.5} parent=100 // loop_exit
              _
          $region101: #{mynet_forward.5} parent=85 // pred_fallthru
            _
          %p419 = pneg %p405
          // Predicated region
          $region109: #{mynet_forward.5} parent=85 // pred_check
            _
          $region110: #{mynet_forward.5} parent=85 // pred_check_branch
            %421 = sbr.rel (%p405) target = $region112
          $region111: #{mynet_forward.5} parent=85 // pred_region
            %s422 = sand.u32 8, 7
          $region112: #{mynet_forward.5} parent=85 // pred_fallthru
            _
        $region86: #{mynet_forward.5} parent=81 // pred_fallthru
          _
        // Predicated region
        $region87: #{mynet_forward.5} parent=81 // pred_check
          %p389 = pneg %p385
        $region88: #{mynet_forward.5} parent=81 // pred_check_branch
          %391 = sbr.rel (%p389) target = $region90
        $region89: #{mynet_forward.5} parent=81 // pred_region
          %s392 = sshll.u32 1, 8
          %s393 = ssub.s32 %s392, 1
          loop: start=0, step=1, limit=1
          $region91: #{mynet_forward.5} parent=89 // loop_pre_header
            _
          $region92: #{mynet_forward.5} parent=89 // loop_header
            %s395 = sphi 0, %s399
            %p396 = scmp.ge.s32.totalorder %s395, 1
            %s400 = sphi %s382, %s382
            %s401 = sphi [#allocation3], [#allocation3]
          $region93: #{mynet_forward.5} parent=89 // loop_header_branch
            %398 = sbr.rel (%p396) target = $region97
          $region94: #{mynet_forward.5} parent=89 // loop_body
            %v402 = vld [vmem:[%s400] sm:%s393]
            %403 = vst [vmem:[%s401] sm:%s393] %v402
          $region95: #{mynet_forward.5} parent=89 // loop_footer
            %s399 = sadd.s32 1, %s395
          $region96: #{mynet_forward.5} parent=89 // loop_footer_branch
            %394 = sbr.rel target = $region92
          $region97: #{mynet_forward.5} parent=89 // loop_exit
            _
        $region90: #{mynet_forward.5} parent=81 // pred_fallthru
          _
        // Predicated region
        $region113: #{mynet_forward.5} parent=81 // pred_check
          _
        $region114: #{mynet_forward.5} parent=81 // pred_check_branch
          %425 = sbr.rel (0) target = $region116
        $region115: #{mynet_forward.5} parent=81 // pred_region
          %426 = vsyncadd %s383, 128
        $region116: #{mynet_forward.5} parent=81 // pred_fallthru
          _
      $region82: #{mynet_forward.5} parent=39 // pred_fallthru
        _
      %v427 = vld [vmem:[%s1] sm:$0x1]
      %v428 = vld [vmem:[%s2] sm:$0x1]
      %v429 = vld [vmem:[%s297] sm:$0xf]
      %v430 = vld [vmem:[%s297 + $0x4] sm:$0xf]
      %v431 = vld [vmem:[%s297 + $0x8] sm:$0xf]
      %v432 = vld [vmem:[%s297 + $0xc] sm:$0xf]
      %v433 = vld [vmem:[%s297 + $0x10] sm:$0xf]
      %v434 = vld [vmem:[%s297 + $0x14] sm:$0xf]
      %v435 = vld [vmem:[%s297 + $0x18] sm:$0xf]
      %v436 = vld [vmem:[%s297 + $0x1c] sm:$0xf]
      %v437 = vld [vmem:[%s297 + $0x20] sm:$0xf]
      %v438 = vld [vmem:[%s297 + $0x24] sm:$0xf]
      %v439 = vld [vmem:[%s297 + $0x28] sm:$0xf]
      %v440 = vld [vmem:[%s297 + $0x2c] sm:$0xf]
      %v441 = vld [vmem:[%s297 + $0x30] sm:$0xf]
      %v442 = vld [vmem:[%s297 + $0x34] sm:$0xf]
      %v443 = vld [vmem:[%s297 + $0x38] sm:$0xf]
      %v444 = vld [vmem:[%s297 + $0x3c] sm:$0xf]
      %v445 = vunpack.c.l.bf16 %v429
      %v446 = vunpack.c.l.bf16 %v430
      %v447 = vunpack.c.l.bf16 %v431
      %v448 = vunpack.c.l.bf16 %v432
      %v449 = vunpack.c.l.bf16 %v433
      %v450 = vunpack.c.l.bf16 %v434
      %v451 = vunpack.c.l.bf16 %v435
      %v452 = vunpack.c.l.bf16 %v436
      %v453 = vunpack.c.l.bf16 %v437
      %v454 = vunpack.c.l.bf16 %v438
      %v455 = vunpack.c.l.bf16 %v439
      %v456 = vunpack.c.l.bf16 %v440
      %v457 = vunpack.c.l.bf16 %v441
      %v458 = vunpack.c.l.bf16 %v442
      %v459 = vunpack.c.l.bf16 %v443
      %v460 = vunpack.c.l.bf16 %v444
      %v462 = vlaneseq
      %v463 = vshrl.u32 %v462, 7
      %v464 = vsub.s32 0, %v463
      %v465 = vrot.slane %v427, %v464
      %v467 = vmul.f32 %v445, %v465
      %v468 = vmul.f32 %v446, %v465
      %v469 = vmul.f32 %v447, %v465
      %v470 = vmul.f32 %v448, %v465
      %v471 = vmul.f32 %v449, %v465
      %v472 = vmul.f32 %v450, %v465
      %v473 = vmul.f32 %v451, %v465
      %v474 = vmul.f32 %v452, %v465
      %v475 = vmul.f32 %v453, %v465
      %v476 = vmul.f32 %v454, %v465
      %v477 = vmul.f32 %v455, %v465
      %v478 = vmul.f32 %v456, %v465
      %v479 = vmul.f32 %v457, %v465
      %v480 = vmul.f32 %v458, %v465
      %v481 = vmul.f32 %v459, %v465
      %v482 = vmul.f32 %v460, %v465
      %v484 = vlaneseq
      %v485 = vshrl.u32 %v484, 7
      %v486 = vsub.s32 0, %v485
      %v487 = vrot.slane %v428, %v486
      %v489 = vadd.f32 %v467, %v487
      %v490 = vadd.f32 %v468, %v487
      %v491 = vadd.f32 %v469, %v487
      %v492 = vadd.f32 %v470, %v487
      %v493 = vadd.f32 %v471, %v487
      %v494 = vadd.f32 %v472, %v487
      %v495 = vadd.f32 %v473, %v487
      %v496 = vadd.f32 %v474, %v487
      %v497 = vadd.f32 %v475, %v487
      %v498 = vadd.f32 %v476, %v487
      %v499 = vadd.f32 %v477, %v487
      %v500 = vadd.f32 %v478, %v487
      %v501 = vadd.f32 %v479, %v487
      %v502 = vadd.f32 %v480, %v487
      %v503 = vadd.f32 %v481, %v487
      %v504 = vadd.f32 %v482, %v487
      // Predicated region
      $region117: #{mynet_forward.5} parent=39 // pred_check
        %p505 = pneg %p320
      $region118: #{mynet_forward.5} parent=39 // pred_check_branch
        %507 = sbr.rel (%p505) target = $region120
      $region119: #{mynet_forward.5} parent=39 // pred_region
        %s508 = smul.u32 4, 1
        %s509 = smul.u32 %s508, 2
        %s510 = smul.u32 %s509, 1
        %s511 = sshll.u32 %s510, 4
        %512 = dma.done [#allocation4], %s511
      $region120: #{mynet_forward.5} parent=39 // pred_fallthru
        _
      // Predicated region
      $region121: #{mynet_forward.5} parent=39 // pred_check
        %p513 = pneg %p373
      $region122: #{mynet_forward.5} parent=39 // pred_check_branch
        %515 = sbr.rel (%p513) target = $region124
      $region123: #{mynet_forward.5} parent=39 // pred_region
        %s516 = scalar_lea.sflag [#allocation4], 1
        %s517 = smul.u32 4, 1
        %s518 = smul.u32 %s517, 2
        %s519 = smul.u32 %s518, 1
        %s520 = sshll.u32 %s519, 4
        %521 = dma.done %s516, %s520
      $region124: #{mynet_forward.5} parent=39 // pred_fallthru
        _
      %v522 = vld [vmem:[#allocation2] sm:$0xf]
      %v523 = vld [vmem:[#allocation2 + $0x4] sm:$0xf]
      %v524 = vunpack.c.l.bf16 %v522
      %v525 = vunpack.c.l.bf16 %v523
      %v526 = vmul.f32 %v524, %v465
      %v527 = vmul.f32 %v525, %v465
      %v528 = vadd.f32 %v526, %v487
      %v529 = vadd.f32 %v527, %v487
      %s530 = scalar_select %p320, 1, 0
      %v531 = vstv %s530
      %vm532 = vcmp.eq.s32.totalorder %v531, 1
      %v533 = vsel %vm532, %v528, 0.0
      %v534 = vsel %vm532, %v529, 0.0
      %v535 = vld [vmem:[#allocation3] sm:$0xf]
      %v536 = vld [vmem:[#allocation3 + $0x4] sm:$0xf]
      %v537 = vunpack.c.l.bf16 %v535
      %v538 = vunpack.c.l.bf16 %v536
      %v539 = vmul.f32 %v537, %v465
      %v540 = vmul.f32 %v538, %v465
      %v541 = vadd.f32 %v539, %v487
      %v542 = vadd.f32 %v540, %v487
      %s543 = scalar_select %p373, 1, 0
      %v544 = vstv %s543
      %vm545 = vcmp.eq.s32.totalorder %v544, 1
      %v546 = vsel %vm545, %v541, 0.0
      %v547 = vsel %vm545, %v542, 0.0
      %v548 = vpack.c.bf16 %v534, %v533
      %v549 = vpack.c.bf16 %v490, %v489
      %v550 = vpack.c.bf16 %v492, %v491
      %v551 = vpack.c.bf16 %v494, %v493
      %v552 = vpack.c.bf16 %v496, %v495
      %v553 = vpack.c.bf16 %v498, %v497
      %v554 = vpack.c.bf16 %v500, %v499
      %v555 = vpack.c.bf16 %v502, %v501
      %v556 = vpack.c.bf16 %v504, %v503
      %v557 = vpack.c.bf16 %v547, %v546
      %v559 = vshrl.u32 %v548, 16
      %v561 = vrot.slane %v559, 7
      %v562 = vshll.u32 %v548, 16
      %v564 = vor.u32 %v561, %v562
      %v566 = vshrl.u32 %v549, 16
      %v568 = vrot.slane %v566, 7
      %v569 = vshll.u32 %v549, 16
      %v571 = vor.u32 %v568, %v569
      %v573 = vshrl.u32 %v550, 16
      %v575 = vrot.slane %v573, 7
      %v576 = vshll.u32 %v550, 16
      %v578 = vor.u32 %v575, %v576
      %v580 = vshrl.u32 %v551, 16
      %v582 = vrot.slane %v580, 7
      %v583 = vshll.u32 %v551, 16
      %v585 = vor.u32 %v582, %v583
      %v587 = vshrl.u32 %v552, 16
      %v589 = vrot.slane %v587, 7
      %v590 = vshll.u32 %v552, 16
      %v592 = vor.u32 %v589, %v590
      %v594 = vshrl.u32 %v553, 16
      %v596 = vrot.slane %v594, 7
      %v597 = vshll.u32 %v553, 16
      %v599 = vor.u32 %v596, %v597
      %v601 = vshrl.u32 %v554, 16
      %v603 = vrot.slane %v601, 7
      %v604 = vshll.u32 %v554, 16
      %v606 = vor.u32 %v603, %v604
      %v608 = vshrl.u32 %v555, 16
      %v610 = vrot.slane %v608, 7
      %v611 = vshll.u32 %v555, 16
      %v613 = vor.u32 %v610, %v611
      %v615 = vshrl.u32 %v556, 16
      %v617 = vrot.slane %v615, 7
      %v618 = vshll.u32 %v556, 16
      %v620 = vor.u32 %v617, %v618
      %v622 = vshrl.u32 %v557, 16
      %v624 = vrot.slane %v622, 7
      %v625 = vshll.u32 %v557, 16
      %v627 = vor.u32 %v624, %v625
      %vm638 = vcmask 1040384
      %vm639 = vsmask.f32 256
      %vm640 = vmand %vm638, %vm639
      %v641 = vsel %vm640, 0, %v564
      %v642 = vsel %vm640, 0, %v571
      %v643 = vsel %vm640, 0, %v578
      %v644 = vsel %vm640, 0, %v585
      %v645 = vsel %vm640, 0, %v592
      %v646 = vsel %vm640, 0, %v599
      %v647 = vsel %vm640, 0, %v606
      %v648 = vsel %vm640, 0, %v613
      %v649 = vsel %vm640, 0, %v620
      %v650 = vsel %vm640, 0, %v627
      %v651 = vrot.slane %v562, 1
      %v652 = vor.u32 %v559, %v651
      %v653 = vrot.slane %v569, 1
      %v654 = vor.u32 %v566, %v653
      %v655 = vrot.slane %v576, 1
      %v656 = vor.u32 %v573, %v655
      %v657 = vrot.slane %v583, 1
      %v658 = vor.u32 %v580, %v657
      %v659 = vrot.slane %v590, 1
      %v660 = vor.u32 %v587, %v659
      %v661 = vrot.slane %v597, 1
      %v662 = vor.u32 %v594, %v661
      %v663 = vrot.slane %v604, 1
      %v664 = vor.u32 %v601, %v663
      %v665 = vrot.slane %v611, 1
      %v666 = vor.u32 %v608, %v665
      %v667 = vrot.slane %v618, 1
      %v668 = vor.u32 %v615, %v667
      %v669 = vrot.slane %v625, 1
      %v670 = vor.u32 %v622, %v669
      %vm681 = vcmask 1047552
      %vm682 = vsmask.f32 7424
      %vm683 = vmand %vm681, %vm682
      %v684 = vsel %vm683, %v652, 0
      %v685 = vsel %vm683, %v654, 0
      %v686 = vsel %vm683, %v656, 0
      %v687 = vsel %vm683, %v658, 0
      %v688 = vsel %vm683, %v660, 0
      %v689 = vsel %vm683, %v662, 0
      %v690 = vsel %vm683, %v664, 0
      %v691 = vsel %vm683, %v666, 0
      %v692 = vsel %vm683, %v668, 0
      %v693 = vsel %vm683, %v670, 0
      %v694 = vld [vmem:[%s3] sm:$0xf]
      %v695 = vld [vmem:[%s3 + $0x4] sm:$0xf]
      %v696 = vld [vmem:[%s3 + $0x8] sm:$0xf]
      %v697 = vld [vmem:[%s3 + $0xc] sm:$0xf]
      %v698 = vld [vmem:[%s3 + $0x10] sm:$0xf]
      %v699 = vld [vmem:[%s3 + $0x14] sm:$0xf]
      %v700 = vld [vmem:[%s3 + $0x18] sm:$0xf]
      %v701 = vld [vmem:[%s3 + $0x1c] sm:$0xf]
      %v702 = vld [vmem:[%s3 + $0x20] sm:$0xf]
      %v703 = vld [vmem:[%s3 + $0x24] sm:$0xf]
      %v704 = vld [vmem:[%s3 + $0x28] sm:$0xf]
      %v705 = vld [vmem:[%s3 + $0x2c] sm:$0xf]
      %v706 = vld [vmem:[%s3 + $0x30] sm:$0xf]
      %v707 = vld [vmem:[%s3 + $0x34] sm:$0xf]
      %v708 = vld [vmem:[%s3 + $0x38] sm:$0xf]
      %v709 = vld [vmem:[%s3 + $0x3c] sm:$0xf]
      %s710 = scalar_lea.vmem %s3, 64
      %v711 = vld [vmem:[%s710] sm:$0xf]
      %v712 = vld [vmem:[%s710 + $0x4] sm:$0xf]
      %v713 = vld [vmem:[%s710 + $0x8] sm:$0xf]
      %v714 = vld [vmem:[%s710 + $0xc] sm:$0xf]
      %v715 = vld [vmem:[%s710 + $0x10] sm:$0xf]
      %v716 = vld [vmem:[%s710 + $0x14] sm:$0xf]
      %v717 = vld [vmem:[%s710 + $0x18] sm:$0xf]
      %v718 = vld [vmem:[%s710 + $0x1c] sm:$0xf]
      %v719 = vld [vmem:[%s710 + $0x20] sm:$0xf]
      %v720 = vld [vmem:[%s710 + $0x24] sm:$0xf]
      %v721 = vld [vmem:[%s710 + $0x28] sm:$0xf]
      %v722 = vld [vmem:[%s710 + $0x2c] sm:$0xf]
      %v723 = vld [vmem:[%s710 + $0x30] sm:$0xf]
      %v724 = vld [vmem:[%s710 + $0x34] sm:$0xf]
      %v725 = vld [vmem:[%s710 + $0x38] sm:$0xf]
      %v726 = vld [vmem:[%s710 + $0x3c] sm:$0xf]
      %v743 = vunpack.c.l.b16 %v711
      %v744 = vunpack.c.l.b16 %v712
      %v745 = vunpack.c.l.b16 %v713
      %v746 = vunpack.c.l.b16 %v714
      %v747 = vunpack.c.l.b16 %v715
      %v748 = vunpack.c.l.b16 %v716
      %v749 = vunpack.c.l.b16 %v717
      %v750 = vunpack.c.l.b16 %v718
      %v751 = vunpack.c.l.b16 %v719
      %v752 = vunpack.c.l.b16 %v720
      %v753 = vunpack.c.l.b16 %v721
      %v754 = vunpack.c.l.b16 %v722
      %v755 = vunpack.c.l.b16 %v723
      %v756 = vunpack.c.l.b16 %v724
      %v757 = vunpack.c.l.b16 %v725
      %v758 = vunpack.c.l.b16 %v726
      %v759 = vpack.c.b16 %v744, %v743
      %v760 = vpack.c.b16 %v746, %v745
      %v761 = vpack.c.b16 %v748, %v747
      %v762 = vpack.c.b16 %v750, %v749
      %v763 = vpack.c.b16 %v752, %v751
      %v764 = vpack.c.b16 %v754, %v753
      %v765 = vpack.c.b16 %v756, %v755
      %v766 = vpack.c.b16 %v758, %v757
      %775 = vmatprep.subr.bf16.mxu0 0
      %776 = vmatpush1.bf16.msra.mxu0 %v766
      %777 = vmatprep.subr.bf16.mxu0 0
      %778 = vmatpush1.bf16.msra.mxu0 %v765
      %779 = vmatprep.subr.bf16.mxu0 0
      %780 = vmatpush1.bf16.msra.mxu0 %v764
      %781 = vmatprep.subr.bf16.mxu0 0
      %782 = vmatpush1.bf16.msra.mxu0 %v763
      %783 = vmatprep.subr.bf16.mxu0 0
      %784 = vmatpush1.bf16.msra.mxu0 %v762
      %785 = vmatprep.subr.bf16.mxu0 0
      %786 = vmatpush1.bf16.msra.mxu0 %v761
      %787 = vmatprep.subr.bf16.mxu0 0
      %788 = vmatpush1.bf16.msra.mxu0 %v760
      %789 = vmatprep.subr.bf16.mxu0 0
      %790 = vmatpush1.bf16.msra.mxu0 %v759
      %791 = vmatprep.subr.bf16.mxu0 0
      %792 = vmatpush2.bf16.msra.mxu0 0
      %793 = vmatprep.subr.bf16.mxu0 0
      %794 = vmatpush2.bf16.msra.mxu0 0
      %795 = vmatprep.subr.bf16.mxu0 0
      %796 = vmatpush2.bf16.msra.mxu0 0
      %797 = vmatprep.subr.bf16.mxu0 0
      %798 = vmatpush2.bf16.msra.mxu0 0
      %799 = vmatprep.subr.bf16.mxu0 0
      %800 = vmatpush2.bf16.msra.mxu0 0
      %801 = vmatprep.subr.bf16.mxu0 0
      %802 = vmatpush2.bf16.msra.mxu0 0
      %803 = vmatprep.subr.bf16.mxu0 0
      %804 = vmatpush2.bf16.msra.mxu0 0
      %805 = vmatprep.subr.bf16.mxu0 0
      %806 = vmatpush2.bf16.msra.mxu0 0
      %807 = vmatprep.mubr.bf16.mxu0 0
      %808 = vmatmul.mubr.bf16.gmra.mxu0 %v548
      %v809 = vpop.f32.mrf.mxu0
      %v810 = vadd.f32 0.0, %v809
      %v811 = vpop.f32.mrf.mxu0
      %v812 = vpop.f32.mrf.mxu0
      %v813 = vadd.f32 0.0, %v812
      %v814 = vpop.f32.mrf.mxu0
      %815 = vmatprep.mubr.bf16.mxu0 0
      %816 = vmatmul.mubr.bf16.gmra.mxu0 %v549
      %v817 = vpop.f32.mrf.mxu0
      %v818 = vadd.f32 0.0, %v817
      %v819 = vpop.f32.mrf.mxu0
      %v820 = vpop.f32.mrf.mxu0
      %v821 = vadd.f32 0.0, %v820
      %v822 = vpop.f32.mrf.mxu0
      %823 = vmatprep.mubr.bf16.mxu0 0
      %824 = vmatmul.mubr.bf16.gmra.mxu0 %v550
      %v825 = vpop.f32.mrf.mxu0
      %v826 = vadd.f32 0.0, %v825
      %v827 = vpop.f32.mrf.mxu0
      %v828 = vpop.f32.mrf.mxu0
      %v829 = vadd.f32 0.0, %v828
      %v830 = vpop.f32.mrf.mxu0
      %831 = vmatprep.mubr.bf16.mxu0 0
      %832 = vmatmul.mubr.bf16.gmra.mxu0 %v551
      %v833 = vpop.f32.mrf.mxu0
      %v834 = vadd.f32 0.0, %v833
      %v835 = vpop.f32.mrf.mxu0
      %v836 = vpop.f32.mrf.mxu0
      %v837 = vadd.f32 0.0, %v836
      %v838 = vpop.f32.mrf.mxu0
      %839 = vmatprep.mubr.bf16.mxu0 0
      %840 = vmatmul.mubr.bf16.gmra.mxu0 %v552
      %v841 = vpop.f32.mrf.mxu0
      %v842 = vadd.f32 0.0, %v841
      %v843 = vpop.f32.mrf.mxu0
      %v844 = vpop.f32.mrf.mxu0
      %v845 = vadd.f32 0.0, %v844
      %v846 = vpop.f32.mrf.mxu0
      %847 = vmatprep.mubr.bf16.mxu0 0
      %848 = vmatmul.mubr.bf16.gmra.mxu0 %v553
      %v849 = vpop.f32.mrf.mxu0
      %v850 = vadd.f32 0.0, %v849
      %v851 = vpop.f32.mrf.mxu0
      %v852 = vpop.f32.mrf.mxu0
      %v853 = vadd.f32 0.0, %v852
      %v854 = vpop.f32.mrf.mxu0
      %855 = vmatprep.mubr.bf16.mxu0 0
      %856 = vmatmul.mubr.bf16.gmra.mxu0 %v554
      %v857 = vpop.f32.mrf.mxu0
      %v858 = vadd.f32 0.0, %v857
      %v859 = vpop.f32.mrf.mxu0
      %v860 = vpop.f32.mrf.mxu0
      %v861 = vadd.f32 0.0, %v860
      %v862 = vpop.f32.mrf.mxu0
      %863 = vmatprep.mubr.bf16.mxu0 0
      %864 = vmatmul.mubr.bf16.gmra.mxu0 %v555
      %v865 = vpop.f32.mrf.mxu0
      %v866 = vadd.f32 0.0, %v865
      %v867 = vpop.f32.mrf.mxu0
      %v868 = vpop.f32.mrf.mxu0
      %v869 = vadd.f32 0.0, %v868
      %v870 = vpop.f32.mrf.mxu0
      %871 = vdwg.mxu0
      %v888 = vunpack.c.l.b16 %v694
      %v889 = vunpack.c.l.b16 %v695
      %v890 = vunpack.c.l.b16 %v696
      %v891 = vunpack.c.l.b16 %v697
      %v892 = vunpack.c.l.b16 %v698
      %v893 = vunpack.c.l.b16 %v699
      %v894 = vunpack.c.l.b16 %v700
      %v895 = vunpack.c.l.b16 %v701
      %v896 = vunpack.c.l.b16 %v702
      %v897 = vunpack.c.l.b16 %v703
      %v898 = vunpack.c.l.b16 %v704
      %v899 = vunpack.c.l.b16 %v705
      %v900 = vunpack.c.l.b16 %v706
      %v901 = vunpack.c.l.b16 %v707
      %v902 = vunpack.c.l.b16 %v708
      %v903 = vunpack.c.l.b16 %v709
      %v904 = vpack.c.b16 %v889, %v888
      %v905 = vpack.c.b16 %v891, %v890
      %v906 = vpack.c.b16 %v893, %v892
      %v907 = vpack.c.b16 %v895, %v894
      %v908 = vpack.c.b16 %v897, %v896
      %v909 = vpack.c.b16 %v899, %v898
      %v910 = vpack.c.b16 %v901, %v900
      %v911 = vpack.c.b16 %v903, %v902
      %920 = vmatprep.subr.bf16.mxu0 0
      %921 = vmatpush1.bf16.msra.mxu0 %v911
      %922 = vmatprep.subr.bf16.mxu0 0
      %923 = vmatpush1.bf16.msra.mxu0 %v910
      %924 = vmatprep.subr.bf16.mxu0 0
      %925 = vmatpush1.bf16.msra.mxu0 %v909
      %926 = vmatprep.subr.bf16.mxu0 0
      %927 = vmatpush1.bf16.msra.mxu0 %v908
      %928 = vmatprep.subr.bf16.mxu0 0
      %929 = vmatpush1.bf16.msra.mxu0 %v907
      %930 = vmatprep.subr.bf16.mxu0 0
      %931 = vmatpush1.bf16.msra.mxu0 %v906
      %932 = vmatprep.subr.bf16.mxu0 0
      %933 = vmatpush1.bf16.msra.mxu0 %v905
      %934 = vmatprep.subr.bf16.mxu0 0
      %935 = vmatpush1.bf16.msra.mxu0 %v904
      %936 = vmatprep.subr.bf16.mxu0 0
      %937 = vmatpush2.bf16.msra.mxu0 0
      %938 = vmatprep.subr.bf16.mxu0 0
      %939 = vmatpush2.bf16.msra.mxu0 0
      %940 = vmatprep.subr.bf16.mxu0 0
      %941 = vmatpush2.bf16.msra.mxu0 0
      %942 = vmatprep.subr.bf16.mxu0 0
      %943 = vmatpush2.bf16.msra.mxu0 0
      %944 = vmatprep.subr.bf16.mxu0 0
      %945 = vmatpush2.bf16.msra.mxu0 0
      %946 = vmatprep.subr.bf16.mxu0 0
      %947 = vmatpush2.bf16.msra.mxu0 0
      %948 = vmatprep.subr.bf16.mxu0 0
      %949 = vmatpush2.bf16.msra.mxu0 0
      %950 = vmatprep.subr.bf16.mxu0 0
      %951 = vmatpush2.bf16.msra.mxu0 0
      %952 = vmatprep.mubr.bf16.mxu0 0
      %953 = vmatmul.mubr.bf16.gmra.mxu0 %v641
      %v954 = vpop.f32.mrf.mxu0
      %v955 = vadd.f32 %v810, %v954
      %v956 = vpop.f32.mrf.mxu0
      %v957 = vpop.f32.mrf.mxu0
      %v958 = vadd.f32 %v813, %v957
      %v959 = vpop.f32.mrf.mxu0
      %960 = vmatprep.mubr.bf16.mxu0 0
      %961 = vmatmul.mubr.bf16.gmra.mxu0 %v642
      %v962 = vpop.f32.mrf.mxu0
      %v963 = vadd.f32 %v818, %v962
      %v964 = vpop.f32.mrf.mxu0
      %v965 = vpop.f32.mrf.mxu0
      %v966 = vadd.f32 %v821, %v965
      %v967 = vpop.f32.mrf.mxu0
      %968 = vmatprep.mubr.bf16.mxu0 0
      %969 = vmatmul.mubr.bf16.gmra.mxu0 %v643
      %v970 = vpop.f32.mrf.mxu0
      %v971 = vadd.f32 %v826, %v970
      %v972 = vpop.f32.mrf.mxu0
      %v973 = vpop.f32.mrf.mxu0
      %v974 = vadd.f32 %v829, %v973
      %v975 = vpop.f32.mrf.mxu0
      %976 = vmatprep.mubr.bf16.mxu0 0
      %977 = vmatmul.mubr.bf16.gmra.mxu0 %v644
      %v978 = vpop.f32.mrf.mxu0
      %v979 = vadd.f32 %v834, %v978
      %v980 = vpop.f32.mrf.mxu0
      %v981 = vpop.f32.mrf.mxu0
      %v982 = vadd.f32 %v837, %v981
      %v983 = vpop.f32.mrf.mxu0
      %984 = vmatprep.mubr.bf16.mxu0 0
      %985 = vmatmul.mubr.bf16.gmra.mxu0 %v645
      %v986 = vpop.f32.mrf.mxu0
      %v987 = vadd.f32 %v842, %v986
      %v988 = vpop.f32.mrf.mxu0
      %v989 = vpop.f32.mrf.mxu0
      %v990 = vadd.f32 %v845, %v989
      %v991 = vpop.f32.mrf.mxu0
      %992 = vmatprep.mubr.bf16.mxu0 0
      %993 = vmatmul.mubr.bf16.gmra.mxu0 %v646
      %v994 = vpop.f32.mrf.mxu0
      %v995 = vadd.f32 %v850, %v994
      %v996 = vpop.f32.mrf.mxu0
      %v997 = vpop.f32.mrf.mxu0
      %v998 = vadd.f32 %v853, %v997
      %v999 = vpop.f32.mrf.mxu0
      %1000 = vmatprep.mubr.bf16.mxu0 0
      %1001 = vmatmul.mubr.bf16.gmra.mxu0 %v647
      %v1002 = vpop.f32.mrf.mxu0
      %v1003 = vadd.f32 %v858, %v1002
      %v1004 = vpop.f32.mrf.mxu0
      %v1005 = vpop.f32.mrf.mxu0
      %v1006 = vadd.f32 %v861, %v1005
      %v1007 = vpop.f32.mrf.mxu0
      %1008 = vmatprep.mubr.bf16.mxu0 0
      %1009 = vmatmul.mubr.bf16.gmra.mxu0 %v648
      %v1010 = vpop.f32.mrf.mxu0
      %v1011 = vadd.f32 %v866, %v1010
      %v1012 = vpop.f32.mrf.mxu0
      %v1013 = vpop.f32.mrf.mxu0
      %v1014 = vadd.f32 %v869, %v1013
      %v1015 = vpop.f32.mrf.mxu0
      %1016 = vdwg.mxu0
      %s1017 = scalar_lea.vmem %s3, 128
      %v1018 = vld [vmem:[%s1017] sm:$0xf]
      %v1019 = vld [vmem:[%s1017 + $0x4] sm:$0xf]
      %v1020 = vld [vmem:[%s1017 + $0x8] sm:$0xf]
      %v1021 = vld [vmem:[%s1017 + $0xc] sm:$0xf]
      %v1022 = vld [vmem:[%s1017 + $0x10] sm:$0xf]
      %v1023 = vld [vmem:[%s1017 + $0x14] sm:$0xf]
      %v1024 = vld [vmem:[%s1017 + $0x18] sm:$0xf]
      %v1025 = vld [vmem:[%s1017 + $0x1c] sm:$0xf]
      %v1026 = vld [vmem:[%s1017 + $0x20] sm:$0xf]
      %v1027 = vld [vmem:[%s1017 + $0x24] sm:$0xf]
      %v1028 = vld [vmem:[%s1017 + $0x28] sm:$0xf]
      %v1029 = vld [vmem:[%s1017 + $0x2c] sm:$0xf]
      %v1030 = vld [vmem:[%s1017 + $0x30] sm:$0xf]
      %v1031 = vld [vmem:[%s1017 + $0x34] sm:$0xf]
      %v1032 = vld [vmem:[%s1017 + $0x38] sm:$0xf]
      %v1033 = vld [vmem:[%s1017 + $0x3c] sm:$0xf]
      %v1050 = vunpack.c.l.b16 %v1018
      %v1051 = vunpack.c.l.b16 %v1019
      %v1052 = vunpack.c.l.b16 %v1020
      %v1053 = vunpack.c.l.b16 %v1021
      %v1054 = vunpack.c.l.b16 %v1022
      %v1055 = vunpack.c.l.b16 %v1023
      %v1056 = vunpack.c.l.b16 %v1024
      %v1057 = vunpack.c.l.b16 %v1025
      %v1058 = vunpack.c.l.b16 %v1026
      %v1059 = vunpack.c.l.b16 %v1027
      %v1060 = vunpack.c.l.b16 %v1028
      %v1061 = vunpack.c.l.b16 %v1029
      %v1062 = vunpack.c.l.b16 %v1030
      %v1063 = vunpack.c.l.b16 %v1031
      %v1064 = vunpack.c.l.b16 %v1032
      %v1065 = vunpack.c.l.b16 %v1033
      %v1066 = vpack.c.b16 %v1051, %v1050
      %v1067 = vpack.c.b16 %v1053, %v1052
      %v1068 = vpack.c.b16 %v1055, %v1054
      %v1069 = vpack.c.b16 %v1057, %v1056
      %v1070 = vpack.c.b16 %v1059, %v1058
      %v1071 = vpack.c.b16 %v1061, %v1060
      %v1072 = vpack.c.b16 %v1063, %v1062
      %v1073 = vpack.c.b16 %v1065, %v1064
      %1082 = vmatprep.subr.bf16.mxu0 0
      %1083 = vmatpush1.bf16.msra.mxu0 %v1073
      %1084 = vmatprep.subr.bf16.mxu0 0
      %1085 = vmatpush1.bf16.msra.mxu0 %v1072
      %1086 = vmatprep.subr.bf16.mxu0 0
      %1087 = vmatpush1.bf16.msra.mxu0 %v1071
      %1088 = vmatprep.subr.bf16.mxu0 0
      %1089 = vmatpush1.bf16.msra.mxu0 %v1070
      %1090 = vmatprep.subr.bf16.mxu0 0
      %1091 = vmatpush1.bf16.msra.mxu0 %v1069
      %1092 = vmatprep.subr.bf16.mxu0 0
      %1093 = vmatpush1.bf16.msra.mxu0 %v1068
      %1094 = vmatprep.subr.bf16.mxu0 0
      %1095 = vmatpush1.bf16.msra.mxu0 %v1067
      %1096 = vmatprep.subr.bf16.mxu0 0
      %1097 = vmatpush1.bf16.msra.mxu0 %v1066
      %1098 = vmatprep.subr.bf16.mxu0 0
      %1099 = vmatpush2.bf16.msra.mxu0 0
      %1100 = vmatprep.subr.bf16.mxu0 0
      %1101 = vmatpush2.bf16.msra.mxu0 0
      %1102 = vmatprep.subr.bf16.mxu0 0
      %1103 = vmatpush2.bf16.msra.mxu0 0
      %1104 = vmatprep.subr.bf16.mxu0 0
      %1105 = vmatpush2.bf16.msra.mxu0 0
      %1106 = vmatprep.subr.bf16.mxu0 0
      %1107 = vmatpush2.bf16.msra.mxu0 0
      %1108 = vmatprep.subr.bf16.mxu0 0
      %1109 = vmatpush2.bf16.msra.mxu0 0
      %1110 = vmatprep.subr.bf16.mxu0 0
      %1111 = vmatpush2.bf16.msra.mxu0 0
      %1112 = vmatprep.subr.bf16.mxu0 0
      %1113 = vmatpush2.bf16.msra.mxu0 0
      %1114 = vmatprep.mubr.bf16.mxu0 0
      %1115 = vmatmul.mubr.bf16.gmra.mxu0 %v684
      %v1116 = vpop.f32.mrf.mxu0
      %v1117 = vadd.f32 0.0, %v1116
      %v1118 = vpop.f32.mrf.mxu0
      %v1119 = vpop.f32.mrf.mxu0
      %v1120 = vadd.f32 0.0, %v1119
      %v1121 = vpop.f32.mrf.mxu0
      %1122 = vmatprep.mubr.bf16.mxu0 0
      %1123 = vmatmul.mubr.bf16.gmra.mxu0 %v685
      %v1124 = vpop.f32.mrf.mxu0
      %v1125 = vadd.f32 0.0, %v1124
      %v1126 = vpop.f32.mrf.mxu0
      %v1127 = vpop.f32.mrf.mxu0
      %v1128 = vadd.f32 0.0, %v1127
      %v1129 = vpop.f32.mrf.mxu0
      %1130 = vmatprep.mubr.bf16.mxu0 0
      %1131 = vmatmul.mubr.bf16.gmra.mxu0 %v686
      %v1132 = vpop.f32.mrf.mxu0
      %v1133 = vadd.f32 0.0, %v1132
      %v1134 = vpop.f32.mrf.mxu0
      %v1135 = vpop.f32.mrf.mxu0
      %v1136 = vadd.f32 0.0, %v1135
      %v1137 = vpop.f32.mrf.mxu0
      %1138 = vmatprep.mubr.bf16.mxu0 0
      %1139 = vmatmul.mubr.bf16.gmra.mxu0 %v687
      %v1140 = vpop.f32.mrf.mxu0
      %v1141 = vadd.f32 0.0, %v1140
      %v1142 = vpop.f32.mrf.mxu0
      %v1143 = vpop.f32.mrf.mxu0
      %v1144 = vadd.f32 0.0, %v1143
      %v1145 = vpop.f32.mrf.mxu0
      %1146 = vmatprep.mubr.bf16.mxu0 0
      %1147 = vmatmul.mubr.bf16.gmra.mxu0 %v688
      %v1148 = vpop.f32.mrf.mxu0
      %v1149 = vadd.f32 0.0, %v1148
      %v1150 = vpop.f32.mrf.mxu0
      %v1151 = vpop.f32.mrf.mxu0
      %v1152 = vadd.f32 0.0, %v1151
      %v1153 = vpop.f32.mrf.mxu0
      %1154 = vmatprep.mubr.bf16.mxu0 0
      %1155 = vmatmul.mubr.bf16.gmra.mxu0 %v689
      %v1156 = vpop.f32.mrf.mxu0
      %v1157 = vadd.f32 0.0, %v1156
      %v1158 = vpop.f32.mrf.mxu0
      %v1159 = vpop.f32.mrf.mxu0
      %v1160 = vadd.f32 0.0, %v1159
      %v1161 = vpop.f32.mrf.mxu0
      %1162 = vmatprep.mubr.bf16.mxu0 0
      %1163 = vmatmul.mubr.bf16.gmra.mxu0 %v690
      %v1164 = vpop.f32.mrf.mxu0
      %v1165 = vadd.f32 0.0, %v1164
      %v1166 = vpop.f32.mrf.mxu0
      %v1167 = vpop.f32.mrf.mxu0
      %v1168 = vadd.f32 0.0, %v1167
      %v1169 = vpop.f32.mrf.mxu0
      %1170 = vmatprep.mubr.bf16.mxu0 0
      %1171 = vmatmul.mubr.bf16.gmra.mxu0 %v691
      %v1172 = vpop.f32.mrf.mxu0
      %v1173 = vadd.f32 0.0, %v1172
      %v1174 = vpop.f32.mrf.mxu0
      %v1175 = vpop.f32.mrf.mxu0
      %v1176 = vadd.f32 0.0, %v1175
      %v1177 = vpop.f32.mrf.mxu0
      %1178 = vdwg.mxu0
      %v1179 = vadd.f32 %v955, %v1117
      %v1180 = vadd.f32 %v958, %v1120
      %v1181 = vadd.f32 %v963, %v1125
      %v1182 = vadd.f32 %v966, %v1128
      %v1183 = vadd.f32 %v971, %v1133
      %v1184 = vadd.f32 %v974, %v1136
      %v1185 = vadd.f32 %v979, %v1141
      %v1186 = vadd.f32 %v982, %v1144
      %v1187 = vadd.f32 %v987, %v1149
      %v1188 = vadd.f32 %v990, %v1152
      %v1189 = vadd.f32 %v995, %v1157
      %v1190 = vadd.f32 %v998, %v1160
      %v1191 = vadd.f32 %v1003, %v1165
      %v1192 = vadd.f32 %v1006, %v1168
      %v1193 = vadd.f32 %v1011, %v1173
      %v1194 = vadd.f32 %v1014, %v1176
      %s1195 = scalar_lea.vmem %s3, 192
      %v1196 = vld [vmem:[%s1195] sm:$0xf]
      %v1197 = vld [vmem:[%s1195 + $0x4] sm:$0xf]
      %v1198 = vld [vmem:[%s1195 + $0x8] sm:$0xf]
      %v1199 = vld [vmem:[%s1195 + $0xc] sm:$0xf]
      %v1200 = vld [vmem:[%s1195 + $0x10] sm:$0xf]
      %v1201 = vld [vmem:[%s1195 + $0x14] sm:$0xf]
      %v1202 = vld [vmem:[%s1195 + $0x18] sm:$0xf]
      %v1203 = vld [vmem:[%s1195 + $0x1c] sm:$0xf]
      %v1204 = vld [vmem:[%s1195 + $0x20] sm:$0xf]
      %v1205 = vld [vmem:[%s1195 + $0x24] sm:$0xf]
      %v1206 = vld [vmem:[%s1195 + $0x28] sm:$0xf]
      %v1207 = vld [vmem:[%s1195 + $0x2c] sm:$0xf]
      %v1208 = vld [vmem:[%s1195 + $0x30] sm:$0xf]
      %v1209 = vld [vmem:[%s1195 + $0x34] sm:$0xf]
      %v1210 = vld [vmem:[%s1195 + $0x38] sm:$0xf]
      %v1211 = vld [vmem:[%s1195 + $0x3c] sm:$0xf]
      %v1228 = vunpack.c.l.b16 %v1196
      %v1229 = vunpack.c.l.b16 %v1197
      %v1230 = vunpack.c.l.b16 %v1198
      %v1231 = vunpack.c.l.b16 %v1199
      %v1232 = vunpack.c.l.b16 %v1200
      %v1233 = vunpack.c.l.b16 %v1201
      %v1234 = vunpack.c.l.b16 %v1202
      %v1235 = vunpack.c.l.b16 %v1203
      %v1236 = vunpack.c.l.b16 %v1204
      %v1237 = vunpack.c.l.b16 %v1205
      %v1238 = vunpack.c.l.b16 %v1206
      %v1239 = vunpack.c.l.b16 %v1207
      %v1240 = vunpack.c.l.b16 %v1208
      %v1241 = vunpack.c.l.b16 %v1209
      %v1242 = vunpack.c.l.b16 %v1210
      %v1243 = vunpack.c.l.b16 %v1211
      %v1244 = vpack.c.b16 %v1229, %v1228
      %v1245 = vpack.c.b16 %v1231, %v1230
      %v1246 = vpack.c.b16 %v1233, %v1232
      %v1247 = vpack.c.b16 %v1235, %v1234
      %v1248 = vpack.c.b16 %v1237, %v1236
      %v1249 = vpack.c.b16 %v1239, %v1238
      %v1250 = vpack.c.b16 %v1241, %v1240
      %v1251 = vpack.c.b16 %v1243, %v1242
      %1260 = vmatprep.subr.bf16.mxu0 0
      %1261 = vmatpush1.bf16.msra.mxu0 %v1251
      %1262 = vmatprep.subr.bf16.mxu0 0
      %1263 = vmatpush1.bf16.msra.mxu0 %v1250
      %1264 = vmatprep.subr.bf16.mxu0 0
      %1265 = vmatpush1.bf16.msra.mxu0 %v1249
      %1266 = vmatprep.subr.bf16.mxu0 0
      %1267 = vmatpush1.bf16.msra.mxu0 %v1248
      %1268 = vmatprep.subr.bf16.mxu0 0
      %1269 = vmatpush1.bf16.msra.mxu0 %v1247
      %1270 = vmatprep.subr.bf16.mxu0 0
      %1271 = vmatpush1.bf16.msra.mxu0 %v1246
      %1272 = vmatprep.subr.bf16.mxu0 0
      %1273 = vmatpush1.bf16.msra.mxu0 %v1245
      %1274 = vmatprep.subr.bf16.mxu0 0
      %1275 = vmatpush1.bf16.msra.mxu0 %v1244
      %1276 = vmatprep.subr.bf16.mxu0 0
      %1277 = vmatpush2.bf16.msra.mxu0 0
      %1278 = vmatprep.subr.bf16.mxu0 0
      %1279 = vmatpush2.bf16.msra.mxu0 0
      %1280 = vmatprep.subr.bf16.mxu0 0
      %1281 = vmatpush2.bf16.msra.mxu0 0
      %1282 = vmatprep.subr.bf16.mxu0 0
      %1283 = vmatpush2.bf16.msra.mxu0 0
      %1284 = vmatprep.subr.bf16.mxu0 0
      %1285 = vmatpush2.bf16.msra.mxu0 0
      %1286 = vmatprep.subr.bf16.mxu0 0
      %1287 = vmatpush2.bf16.msra.mxu0 0
      %1288 = vmatprep.subr.bf16.mxu0 0
      %1289 = vmatpush2.bf16.msra.mxu0 0
      %1290 = vmatprep.subr.bf16.mxu0 0
      %1291 = vmatpush2.bf16.msra.mxu0 0
      %1292 = vmatprep.mubr.bf16.mxu0 0
      %1293 = vmatmul.mubr.bf16.gmra.mxu0 %v642
      %v1294 = vpop.f32.mrf.mxu0
      %v1295 = vadd.f32 0.0, %v1294
      %v1296 = vpop.f32.mrf.mxu0
      %v1297 = vpop.f32.mrf.mxu0
      %v1298 = vadd.f32 0.0, %v1297
      %v1299 = vpop.f32.mrf.mxu0
      %1300 = vmatprep.mubr.bf16.mxu0 0
      %1301 = vmatmul.mubr.bf16.gmra.mxu0 %v643
      %v1302 = vpop.f32.mrf.mxu0
      %v1303 = vadd.f32 0.0, %v1302
      %v1304 = vpop.f32.mrf.mxu0
      %v1305 = vpop.f32.mrf.mxu0
      %v1306 = vadd.f32 0.0, %v1305
      %v1307 = vpop.f32.mrf.mxu0
      %1308 = vmatprep.mubr.bf16.mxu0 0
      %1309 = vmatmul.mubr.bf16.gmra.mxu0 %v644
      %v1310 = vpop.f32.mrf.mxu0
      %v1311 = vadd.f32 0.0, %v1310
      %v1312 = vpop.f32.mrf.mxu0
      %v1313 = vpop.f32.mrf.mxu0
      %v1314 = vadd.f32 0.0, %v1313
      %v1315 = vpop.f32.mrf.mxu0
      %1316 = vmatprep.mubr.bf16.mxu0 0
      %1317 = vmatmul.mubr.bf16.gmra.mxu0 %v645
      %v1318 = vpop.f32.mrf.mxu0
      %v1319 = vadd.f32 0.0, %v1318
      %v1320 = vpop.f32.mrf.mxu0
      %v1321 = vpop.f32.mrf.mxu0
      %v1322 = vadd.f32 0.0, %v1321
      %v1323 = vpop.f32.mrf.mxu0
      %1324 = vmatprep.mubr.bf16.mxu0 0
      %1325 = vmatmul.mubr.bf16.gmra.mxu0 %v646
      %v1326 = vpop.f32.mrf.mxu0
      %v1327 = vadd.f32 0.0, %v1326
      %v1328 = vpop.f32.mrf.mxu0
      %v1329 = vpop.f32.mrf.mxu0
      %v1330 = vadd.f32 0.0, %v1329
      %v1331 = vpop.f32.mrf.mxu0
      %1332 = vmatprep.mubr.bf16.mxu0 0
      %1333 = vmatmul.mubr.bf16.gmra.mxu0 %v647
      %v1334 = vpop.f32.mrf.mxu0
      %v1335 = vadd.f32 0.0, %v1334
      %v1336 = vpop.f32.mrf.mxu0
      %v1337 = vpop.f32.mrf.mxu0
      %v1338 = vadd.f32 0.0, %v1337
      %v1339 = vpop.f32.mrf.mxu0
      %1340 = vmatprep.mubr.bf16.mxu0 0
      %1341 = vmatmul.mubr.bf16.gmra.mxu0 %v648
      %v1342 = vpop.f32.mrf.mxu0
      %v1343 = vadd.f32 0.0, %v1342
      %v1344 = vpop.f32.mrf.mxu0
      %v1345 = vpop.f32.mrf.mxu0
      %v1346 = vadd.f32 0.0, %v1345
      %v1347 = vpop.f32.mrf.mxu0
      %1348 = vmatprep.mubr.bf16.mxu0 0
      %1349 = vmatmul.mubr.bf16.gmra.mxu0 %v649
      %v1350 = vpop.f32.mrf.mxu0
      %v1351 = vadd.f32 0.0, %v1350
      %v1352 = vpop.f32.mrf.mxu0
      %v1353 = vpop.f32.mrf.mxu0
      %v1354 = vadd.f32 0.0, %v1353
      %v1355 = vpop.f32.mrf.mxu0
      %1356 = vdwg.mxu0
      %v1357 = vadd.f32 %v1179, %v1295
      %v1358 = vadd.f32 %v1180, %v1298
      %v1359 = vadd.f32 %v1181, %v1303
      %v1360 = vadd.f32 %v1182, %v1306
      %v1361 = vadd.f32 %v1183, %v1311
      %v1362 = vadd.f32 %v1184, %v1314
      %v1363 = vadd.f32 %v1185, %v1319
      %v1364 = vadd.f32 %v1186, %v1322
      %v1365 = vadd.f32 %v1187, %v1327
      %v1366 = vadd.f32 %v1188, %v1330
      %v1367 = vadd.f32 %v1189, %v1335
      %v1368 = vadd.f32 %v1190, %v1338
      %v1369 = vadd.f32 %v1191, %v1343
      %v1370 = vadd.f32 %v1192, %v1346
      %v1371 = vadd.f32 %v1193, %v1351
      %v1372 = vadd.f32 %v1194, %v1354
      %s1373 = scalar_lea.vmem %s3, 256
      %v1374 = vld [vmem:[%s1373] sm:$0xf]
      %v1375 = vld [vmem:[%s1373 + $0x4] sm:$0xf]
      %v1376 = vld [vmem:[%s1373 + $0x8] sm:$0xf]
      %v1377 = vld [vmem:[%s1373 + $0xc] sm:$0xf]
      %v1378 = vld [vmem:[%s1373 + $0x10] sm:$0xf]
      %v1379 = vld [vmem:[%s1373 + $0x14] sm:$0xf]
      %v1380 = vld [vmem:[%s1373 + $0x18] sm:$0xf]
      %v1381 = vld [vmem:[%s1373 + $0x1c] sm:$0xf]
      %v1382 = vld [vmem:[%s1373 + $0x20] sm:$0xf]
      %v1383 = vld [vmem:[%s1373 + $0x24] sm:$0xf]
      %v1384 = vld [vmem:[%s1373 + $0x28] sm:$0xf]
      %v1385 = vld [vmem:[%s1373 + $0x2c] sm:$0xf]
      %v1386 = vld [vmem:[%s1373 + $0x30] sm:$0xf]
      %v1387 = vld [vmem:[%s1373 + $0x34] sm:$0xf]
      %v1388 = vld [vmem:[%s1373 + $0x38] sm:$0xf]
      %v1389 = vld [vmem:[%s1373 + $0x3c] sm:$0xf]
      %v1406 = vunpack.c.l.b16 %v1374
      %v1407 = vunpack.c.l.b16 %v1375
      %v1408 = vunpack.c.l.b16 %v1376
      %v1409 = vunpack.c.l.b16 %v1377
      %v1410 = vunpack.c.l.b16 %v1378
      %v1411 = vunpack.c.l.b16 %v1379
      %v1412 = vunpack.c.l.b16 %v1380
      %v1413 = vunpack.c.l.b16 %v1381
      %v1414 = vunpack.c.l.b16 %v1382
      %v1415 = vunpack.c.l.b16 %v1383
      %v1416 = vunpack.c.l.b16 %v1384
      %v1417 = vunpack.c.l.b16 %v1385
      %v1418 = vunpack.c.l.b16 %v1386
      %v1419 = vunpack.c.l.b16 %v1387
      %v1420 = vunpack.c.l.b16 %v1388
      %v1421 = vunpack.c.l.b16 %v1389
      %v1422 = vpack.c.b16 %v1407, %v1406
      %v1423 = vpack.c.b16 %v1409, %v1408
      %v1424 = vpack.c.b16 %v1411, %v1410
      %v1425 = vpack.c.b16 %v1413, %v1412
      %v1426 = vpack.c.b16 %v1415, %v1414
      %v1427 = vpack.c.b16 %v1417, %v1416
      %v1428 = vpack.c.b16 %v1419, %v1418
      %v1429 = vpack.c.b16 %v1421, %v1420
      %1438 = vmatprep.subr.bf16.mxu0 0
      %1439 = vmatpush1.bf16.msra.mxu0 %v1429
      %1440 = vmatprep.subr.bf16.mxu0 0
      %1441 = vmatpush1.bf16.msra.mxu0 %v1428
      %1442 = vmatprep.subr.bf16.mxu0 0
      %1443 = vmatpush1.bf16.msra.mxu0 %v1427
      %1444 = vmatprep.subr.bf16.mxu0 0
      %1445 = vmatpush1.bf16.msra.mxu0 %v1426
      %1446 = vmatprep.subr.bf16.mxu0 0
      %1447 = vmatpush1.bf16.msra.mxu0 %v1425
      %1448 = vmatprep.subr.bf16.mxu0 0
      %1449 = vmatpush1.bf16.msra.mxu0 %v1424
      %1450 = vmatprep.subr.bf16.mxu0 0
      %1451 = vmatpush1.bf16.msra.mxu0 %v1423
      %1452 = vmatprep.subr.bf16.mxu0 0
      %1453 = vmatpush1.bf16.msra.mxu0 %v1422
      %1454 = vmatprep.subr.bf16.mxu0 0
      %1455 = vmatpush2.bf16.msra.mxu0 0
      %1456 = vmatprep.subr.bf16.mxu0 0
      %1457 = vmatpush2.bf16.msra.mxu0 0
      %1458 = vmatprep.subr.bf16.mxu0 0
      %1459 = vmatpush2.bf16.msra.mxu0 0
      %1460 = vmatprep.subr.bf16.mxu0 0
      %1461 = vmatpush2.bf16.msra.mxu0 0
      %1462 = vmatprep.subr.bf16.mxu0 0
      %1463 = vmatpush2.bf16.msra.mxu0 0
      %1464 = vmatprep.subr.bf16.mxu0 0
      %1465 = vmatpush2.bf16.msra.mxu0 0
      %1466 = vmatprep.subr.bf16.mxu0 0
      %1467 = vmatpush2.bf16.msra.mxu0 0
      %1468 = vmatprep.subr.bf16.mxu0 0
      %1469 = vmatpush2.bf16.msra.mxu0 0
      %1470 = vmatprep.mubr.bf16.mxu0 0
      %1471 = vmatmul.mubr.bf16.gmra.mxu0 %v549
      %v1472 = vpop.f32.mrf.mxu0
      %v1473 = vadd.f32 0.0, %v1472
      %v1474 = vpop.f32.mrf.mxu0
      %v1475 = vpop.f32.mrf.mxu0
      %v1476 = vadd.f32 0.0, %v1475
      %v1477 = vpop.f32.mrf.mxu0
      %1478 = vmatprep.mubr.bf16.mxu0 0
      %1479 = vmatmul.mubr.bf16.gmra.mxu0 %v550
      %v1480 = vpop.f32.mrf.mxu0
      %v1481 = vadd.f32 0.0, %v1480
      %v1482 = vpop.f32.mrf.mxu0
      %v1483 = vpop.f32.mrf.mxu0
      %v1484 = vadd.f32 0.0, %v1483
      %v1485 = vpop.f32.mrf.mxu0
      %1486 = vmatprep.mubr.bf16.mxu0 0
      %1487 = vmatmul.mubr.bf16.gmra.mxu0 %v551
      %v1488 = vpop.f32.mrf.mxu0
      %v1489 = vadd.f32 0.0, %v1488
      %v1490 = vpop.f32.mrf.mxu0
      %v1491 = vpop.f32.mrf.mxu0
      %v1492 = vadd.f32 0.0, %v1491
      %v1493 = vpop.f32.mrf.mxu0
      %1494 = vmatprep.mubr.bf16.mxu0 0
      %1495 = vmatmul.mubr.bf16.gmra.mxu0 %v552
      %v1496 = vpop.f32.mrf.mxu0
      %v1497 = vadd.f32 0.0, %v1496
      %v1498 = vpop.f32.mrf.mxu0
      %v1499 = vpop.f32.mrf.mxu0
      %v1500 = vadd.f32 0.0, %v1499
      %v1501 = vpop.f32.mrf.mxu0
      %1502 = vmatprep.mubr.bf16.mxu0 0
      %1503 = vmatmul.mubr.bf16.gmra.mxu0 %v553
      %v1504 = vpop.f32.mrf.mxu0
      %v1505 = vadd.f32 0.0, %v1504
      %v1506 = vpop.f32.mrf.mxu0
      %v1507 = vpop.f32.mrf.mxu0
      %v1508 = vadd.f32 0.0, %v1507
      %v1509 = vpop.f32.mrf.mxu0
      %1510 = vmatprep.mubr.bf16.mxu0 0
      %1511 = vmatmul.mubr.bf16.gmra.mxu0 %v554
      %v1512 = vpop.f32.mrf.mxu0
      %v1513 = vadd.f32 0.0, %v1512
      %v1514 = vpop.f32.mrf.mxu0
      %v1515 = vpop.f32.mrf.mxu0
      %v1516 = vadd.f32 0.0, %v1515
      %v1517 = vpop.f32.mrf.mxu0
      %1518 = vmatprep.mubr.bf16.mxu0 0
      %1519 = vmatmul.mubr.bf16.gmra.mxu0 %v555
      %v1520 = vpop.f32.mrf.mxu0
      %v1521 = vadd.f32 0.0, %v1520
      %v1522 = vpop.f32.mrf.mxu0
      %v1523 = vpop.f32.mrf.mxu0
      %v1524 = vadd.f32 0.0, %v1523
      %v1525 = vpop.f32.mrf.mxu0
      %1526 = vmatprep.mubr.bf16.mxu0 0
      %1527 = vmatmul.mubr.bf16.gmra.mxu0 %v556
      %v1528 = vpop.f32.mrf.mxu0
      %v1529 = vadd.f32 0.0, %v1528
      %v1530 = vpop.f32.mrf.mxu0
      %v1531 = vpop.f32.mrf.mxu0
      %v1532 = vadd.f32 0.0, %v1531
      %v1533 = vpop.f32.mrf.mxu0
      %1534 = vdwg.mxu0
      %v1535 = vadd.f32 %v1357, %v1473
      %v1536 = vadd.f32 %v1358, %v1476
      %v1537 = vadd.f32 %v1359, %v1481
      %v1538 = vadd.f32 %v1360, %v1484
      %v1539 = vadd.f32 %v1361, %v1489
      %v1540 = vadd.f32 %v1362, %v1492
      %v1541 = vadd.f32 %v1363, %v1497
      %v1542 = vadd.f32 %v1364, %v1500
      %v1543 = vadd.f32 %v1365, %v1505
      %v1544 = vadd.f32 %v1366, %v1508
      %v1545 = vadd.f32 %v1367, %v1513
      %v1546 = vadd.f32 %v1368, %v1516
      %v1547 = vadd.f32 %v1369, %v1521
      %v1548 = vadd.f32 %v1370, %v1524
      %v1549 = vadd.f32 %v1371, %v1529
      %v1550 = vadd.f32 %v1372, %v1532
      %s1551 = scalar_lea.vmem %s3, 320
      %v1552 = vld [vmem:[%s1551] sm:$0xf]
      %v1553 = vld [vmem:[%s1551 + $0x4] sm:$0xf]
      %v1554 = vld [vmem:[%s1551 + $0x8] sm:$0xf]
      %v1555 = vld [vmem:[%s1551 + $0xc] sm:$0xf]
      %v1556 = vld [vmem:[%s1551 + $0x10] sm:$0xf]
      %v1557 = vld [vmem:[%s1551 + $0x14] sm:$0xf]
      %v1558 = vld [vmem:[%s1551 + $0x18] sm:$0xf]
      %v1559 = vld [vmem:[%s1551 + $0x1c] sm:$0xf]
      %v1560 = vld [vmem:[%s1551 + $0x20] sm:$0xf]
      %v1561 = vld [vmem:[%s1551 + $0x24] sm:$0xf]
      %v1562 = vld [vmem:[%s1551 + $0x28] sm:$0xf]
      %v1563 = vld [vmem:[%s1551 + $0x2c] sm:$0xf]
      %v1564 = vld [vmem:[%s1551 + $0x30] sm:$0xf]
      %v1565 = vld [vmem:[%s1551 + $0x34] sm:$0xf]
      %v1566 = vld [vmem:[%s1551 + $0x38] sm:$0xf]
      %v1567 = vld [vmem:[%s1551 + $0x3c] sm:$0xf]
      %v1584 = vunpack.c.l.b16 %v1552
      %v1585 = vunpack.c.l.b16 %v1553
      %v1586 = vunpack.c.l.b16 %v1554
      %v1587 = vunpack.c.l.b16 %v1555
      %v1588 = vunpack.c.l.b16 %v1556
      %v1589 = vunpack.c.l.b16 %v1557
      %v1590 = vunpack.c.l.b16 %v1558
      %v1591 = vunpack.c.l.b16 %v1559
      %v1592 = vunpack.c.l.b16 %v1560
      %v1593 = vunpack.c.l.b16 %v1561
      %v1594 = vunpack.c.l.b16 %v1562
      %v1595 = vunpack.c.l.b16 %v1563
      %v1596 = vunpack.c.l.b16 %v1564
      %v1597 = vunpack.c.l.b16 %v1565
      %v1598 = vunpack.c.l.b16 %v1566
      %v1599 = vunpack.c.l.b16 %v1567
      %v1600 = vpack.c.b16 %v1585, %v1584
      %v1601 = vpack.c.b16 %v1587, %v1586
      %v1602 = vpack.c.b16 %v1589, %v1588
      %v1603 = vpack.c.b16 %v1591, %v1590
      %v1604 = vpack.c.b16 %v1593, %v1592
      %v1605 = vpack.c.b16 %v1595, %v1594
      %v1606 = vpack.c.b16 %v1597, %v1596
      %v1607 = vpack.c.b16 %v1599, %v1598
      %1616 = vmatprep.subr.bf16.mxu0 0
      %1617 = vmatpush1.bf16.msra.mxu0 %v1607
      %1618 = vmatprep.subr.bf16.mxu0 0
      %1619 = vmatpush1.bf16.msra.mxu0 %v1606
      %1620 = vmatprep.subr.bf16.mxu0 0
      %1621 = vmatpush1.bf16.msra.mxu0 %v1605
      %1622 = vmatprep.subr.bf16.mxu0 0
      %1623 = vmatpush1.bf16.msra.mxu0 %v1604
      %1624 = vmatprep.subr.bf16.mxu0 0
      %1625 = vmatpush1.bf16.msra.mxu0 %v1603
      %1626 = vmatprep.subr.bf16.mxu0 0
      %1627 = vmatpush1.bf16.msra.mxu0 %v1602
      %1628 = vmatprep.subr.bf16.mxu0 0
      %1629 = vmatpush1.bf16.msra.mxu0 %v1601
      %1630 = vmatprep.subr.bf16.mxu0 0
      %1631 = vmatpush1.bf16.msra.mxu0 %v1600
      %1632 = vmatprep.subr.bf16.mxu0 0
      %1633 = vmatpush2.bf16.msra.mxu0 0
      %1634 = vmatprep.subr.bf16.mxu0 0
      %1635 = vmatpush2.bf16.msra.mxu0 0
      %1636 = vmatprep.subr.bf16.mxu0 0
      %1637 = vmatpush2.bf16.msra.mxu0 0
      %1638 = vmatprep.subr.bf16.mxu0 0
      %1639 = vmatpush2.bf16.msra.mxu0 0
      %1640 = vmatprep.subr.bf16.mxu0 0
      %1641 = vmatpush2.bf16.msra.mxu0 0
      %1642 = vmatprep.subr.bf16.mxu0 0
      %1643 = vmatpush2.bf16.msra.mxu0 0
      %1644 = vmatprep.subr.bf16.mxu0 0
      %1645 = vmatpush2.bf16.msra.mxu0 0
      %1646 = vmatprep.subr.bf16.mxu0 0
      %1647 = vmatpush2.bf16.msra.mxu0 0
      %1648 = vmatprep.mubr.bf16.mxu0 0
      %1649 = vmatmul.mubr.bf16.gmra.mxu0 %v685
      %v1650 = vpop.f32.mrf.mxu0
      %v1651 = vadd.f32 0.0, %v1650
      %v1652 = vpop.f32.mrf.mxu0
      %v1653 = vpop.f32.mrf.mxu0
      %v1654 = vadd.f32 0.0, %v1653
      %v1655 = vpop.f32.mrf.mxu0
      %1656 = vmatprep.mubr.bf16.mxu0 0
      %1657 = vmatmul.mubr.bf16.gmra.mxu0 %v686
      %v1658 = vpop.f32.mrf.mxu0
      %v1659 = vadd.f32 0.0, %v1658
      %v1660 = vpop.f32.mrf.mxu0
      %v1661 = vpop.f32.mrf.mxu0
      %v1662 = vadd.f32 0.0, %v1661
      %v1663 = vpop.f32.mrf.mxu0
      %1664 = vmatprep.mubr.bf16.mxu0 0
      %1665 = vmatmul.mubr.bf16.gmra.mxu0 %v687
      %v1666 = vpop.f32.mrf.mxu0
      %v1667 = vadd.f32 0.0, %v1666
      %v1668 = vpop.f32.mrf.mxu0
      %v1669 = vpop.f32.mrf.mxu0
      %v1670 = vadd.f32 0.0, %v1669
      %v1671 = vpop.f32.mrf.mxu0
      %1672 = vmatprep.mubr.bf16.mxu0 0
      %1673 = vmatmul.mubr.bf16.gmra.mxu0 %v688
      %v1674 = vpop.f32.mrf.mxu0
      %v1675 = vadd.f32 0.0, %v1674
      %v1676 = vpop.f32.mrf.mxu0
      %v1677 = vpop.f32.mrf.mxu0
      %v1678 = vadd.f32 0.0, %v1677
      %v1679 = vpop.f32.mrf.mxu0
      %1680 = vmatprep.mubr.bf16.mxu0 0
      %1681 = vmatmul.mubr.bf16.gmra.mxu0 %v689
      %v1682 = vpop.f32.mrf.mxu0
      %v1683 = vadd.f32 0.0, %v1682
      %v1684 = vpop.f32.mrf.mxu0
      %v1685 = vpop.f32.mrf.mxu0
      %v1686 = vadd.f32 0.0, %v1685
      %v1687 = vpop.f32.mrf.mxu0
      %1688 = vmatprep.mubr.bf16.mxu0 0
      %1689 = vmatmul.mubr.bf16.gmra.mxu0 %v690
      %v1690 = vpop.f32.mrf.mxu0
      %v1691 = vadd.f32 0.0, %v1690
      %v1692 = vpop.f32.mrf.mxu0
      %v1693 = vpop.f32.mrf.mxu0
      %v1694 = vadd.f32 0.0, %v1693
      %v1695 = vpop.f32.mrf.mxu0
      %1696 = vmatprep.mubr.bf16.mxu0 0
      %1697 = vmatmul.mubr.bf16.gmra.mxu0 %v691
      %v1698 = vpop.f32.mrf.mxu0
      %v1699 = vadd.f32 0.0, %v1698
      %v1700 = vpop.f32.mrf.mxu0
      %v1701 = vpop.f32.mrf.mxu0
      %v1702 = vadd.f32 0.0, %v1701
      %v1703 = vpop.f32.mrf.mxu0
      %1704 = vmatprep.mubr.bf16.mxu0 0
      %1705 = vmatmul.mubr.bf16.gmra.mxu0 %v692
      %v1706 = vpop.f32.mrf.mxu0
      %v1707 = vadd.f32 0.0, %v1706
      %v1708 = vpop.f32.mrf.mxu0
      %v1709 = vpop.f32.mrf.mxu0
      %v1710 = vadd.f32 0.0, %v1709
      %v1711 = vpop.f32.mrf.mxu0
      %1712 = vdwg.mxu0
      %v1713 = vadd.f32 %v1535, %v1651
      %v1714 = vadd.f32 %v1536, %v1654
      %v1715 = vadd.f32 %v1537, %v1659
      %v1716 = vadd.f32 %v1538, %v1662
      %v1717 = vadd.f32 %v1539, %v1667
      %v1718 = vadd.f32 %v1540, %v1670
      %v1719 = vadd.f32 %v1541, %v1675
      %v1720 = vadd.f32 %v1542, %v1678
      %v1721 = vadd.f32 %v1543, %v1683
      %v1722 = vadd.f32 %v1544, %v1686
      %v1723 = vadd.f32 %v1545, %v1691
      %v1724 = vadd.f32 %v1546, %v1694
      %v1725 = vadd.f32 %v1547, %v1699
      %v1726 = vadd.f32 %v1548, %v1702
      %v1727 = vadd.f32 %v1549, %v1707
      %v1728 = vadd.f32 %v1550, %v1710
      %s1729 = scalar_lea.vmem %s3, 384
      %v1730 = vld [vmem:[%s1729] sm:$0xf]
      %v1731 = vld [vmem:[%s1729 + $0x4] sm:$0xf]
      %v1732 = vld [vmem:[%s1729 + $0x8] sm:$0xf]
      %v1733 = vld [vmem:[%s1729 + $0xc] sm:$0xf]
      %v1734 = vld [vmem:[%s1729 + $0x10] sm:$0xf]
      %v1735 = vld [vmem:[%s1729 + $0x14] sm:$0xf]
      %v1736 = vld [vmem:[%s1729 + $0x18] sm:$0xf]
      %v1737 = vld [vmem:[%s1729 + $0x1c] sm:$0xf]
      %v1738 = vld [vmem:[%s1729 + $0x20] sm:$0xf]
      %v1739 = vld [vmem:[%s1729 + $0x24] sm:$0xf]
      %v1740 = vld [vmem:[%s1729 + $0x28] sm:$0xf]
      %v1741 = vld [vmem:[%s1729 + $0x2c] sm:$0xf]
      %v1742 = vld [vmem:[%s1729 + $0x30] sm:$0xf]
      %v1743 = vld [vmem:[%s1729 + $0x34] sm:$0xf]
      %v1744 = vld [vmem:[%s1729 + $0x38] sm:$0xf]
      %v1745 = vld [vmem:[%s1729 + $0x3c] sm:$0xf]
      %v1762 = vunpack.c.l.b16 %v1730
      %v1763 = vunpack.c.l.b16 %v1731
      %v1764 = vunpack.c.l.b16 %v1732
      %v1765 = vunpack.c.l.b16 %v1733
      %v1766 = vunpack.c.l.b16 %v1734
      %v1767 = vunpack.c.l.b16 %v1735
      %v1768 = vunpack.c.l.b16 %v1736
      %v1769 = vunpack.c.l.b16 %v1737
      %v1770 = vunpack.c.l.b16 %v1738
      %v1771 = vunpack.c.l.b16 %v1739
      %v1772 = vunpack.c.l.b16 %v1740
      %v1773 = vunpack.c.l.b16 %v1741
      %v1774 = vunpack.c.l.b16 %v1742
      %v1775 = vunpack.c.l.b16 %v1743
      %v1776 = vunpack.c.l.b16 %v1744
      %v1777 = vunpack.c.l.b16 %v1745
      %v1778 = vpack.c.b16 %v1763, %v1762
      %v1779 = vpack.c.b16 %v1765, %v1764
      %v1780 = vpack.c.b16 %v1767, %v1766
      %v1781 = vpack.c.b16 %v1769, %v1768
      %v1782 = vpack.c.b16 %v1771, %v1770
      %v1783 = vpack.c.b16 %v1773, %v1772
      %v1784 = vpack.c.b16 %v1775, %v1774
      %v1785 = vpack.c.b16 %v1777, %v1776
      %1794 = vmatprep.subr.bf16.mxu0 0
      %1795 = vmatpush1.bf16.msra.mxu0 %v1785
      %1796 = vmatprep.subr.bf16.mxu0 0
      %1797 = vmatpush1.bf16.msra.mxu0 %v1784
      %1798 = vmatprep.subr.bf16.mxu0 0
      %1799 = vmatpush1.bf16.msra.mxu0 %v1783
      %1800 = vmatprep.subr.bf16.mxu0 0
      %1801 = vmatpush1.bf16.msra.mxu0 %v1782
      %1802 = vmatprep.subr.bf16.mxu0 0
      %1803 = vmatpush1.bf16.msra.mxu0 %v1781
      %1804 = vmatprep.subr.bf16.mxu0 0
      %1805 = vmatpush1.bf16.msra.mxu0 %v1780
      %1806 = vmatprep.subr.bf16.mxu0 0
      %1807 = vmatpush1.bf16.msra.mxu0 %v1779
      %1808 = vmatprep.subr.bf16.mxu0 0
      %1809 = vmatpush1.bf16.msra.mxu0 %v1778
      %1810 = vmatprep.subr.bf16.mxu0 0
      %1811 = vmatpush2.bf16.msra.mxu0 0
      %1812 = vmatprep.subr.bf16.mxu0 0
      %1813 = vmatpush2.bf16.msra.mxu0 0
      %1814 = vmatprep.subr.bf16.mxu0 0
      %1815 = vmatpush2.bf16.msra.mxu0 0
      %1816 = vmatprep.subr.bf16.mxu0 0
      %1817 = vmatpush2.bf16.msra.mxu0 0
      %1818 = vmatprep.subr.bf16.mxu0 0
      %1819 = vmatpush2.bf16.msra.mxu0 0
      %1820 = vmatprep.subr.bf16.mxu0 0
      %1821 = vmatpush2.bf16.msra.mxu0 0
      %1822 = vmatprep.subr.bf16.mxu0 0
      %1823 = vmatpush2.bf16.msra.mxu0 0
      %1824 = vmatprep.subr.bf16.mxu0 0
      %1825 = vmatpush2.bf16.msra.mxu0 0
      %1826 = vmatprep.mubr.bf16.mxu0 0
      %1827 = vmatmul.mubr.bf16.gmra.mxu0 %v643
      %v1828 = vpop.f32.mrf.mxu0
      %v1829 = vadd.f32 0.0, %v1828
      %v1830 = vpop.f32.mrf.mxu0
      %v1831 = vpop.f32.mrf.mxu0
      %v1832 = vadd.f32 0.0, %v1831
      %v1833 = vpop.f32.mrf.mxu0
      %1834 = vmatprep.mubr.bf16.mxu0 0
      %1835 = vmatmul.mubr.bf16.gmra.mxu0 %v644
      %v1836 = vpop.f32.mrf.mxu0
      %v1837 = vadd.f32 0.0, %v1836
      %v1838 = vpop.f32.mrf.mxu0
      %v1839 = vpop.f32.mrf.mxu0
      %v1840 = vadd.f32 0.0, %v1839
      %v1841 = vpop.f32.mrf.mxu0
      %1842 = vmatprep.mubr.bf16.mxu0 0
      %1843 = vmatmul.mubr.bf16.gmra.mxu0 %v645
      %v1844 = vpop.f32.mrf.mxu0
      %v1845 = vadd.f32 0.0, %v1844
      %v1846 = vpop.f32.mrf.mxu0
      %v1847 = vpop.f32.mrf.mxu0
      %v1848 = vadd.f32 0.0, %v1847
      %v1849 = vpop.f32.mrf.mxu0
      %1850 = vmatprep.mubr.bf16.mxu0 0
      %1851 = vmatmul.mubr.bf16.gmra.mxu0 %v646
      %v1852 = vpop.f32.mrf.mxu0
      %v1853 = vadd.f32 0.0, %v1852
      %v1854 = vpop.f32.mrf.mxu0
      %v1855 = vpop.f32.mrf.mxu0
      %v1856 = vadd.f32 0.0, %v1855
      %v1857 = vpop.f32.mrf.mxu0
      %1858 = vmatprep.mubr.bf16.mxu0 0
      %1859 = vmatmul.mubr.bf16.gmra.mxu0 %v647
      %v1860 = vpop.f32.mrf.mxu0
      %v1861 = vadd.f32 0.0, %v1860
      %v1862 = vpop.f32.mrf.mxu0
      %v1863 = vpop.f32.mrf.mxu0
      %v1864 = vadd.f32 0.0, %v1863
      %v1865 = vpop.f32.mrf.mxu0
      %1866 = vmatprep.mubr.bf16.mxu0 0
      %1867 = vmatmul.mubr.bf16.gmra.mxu0 %v648
      %v1868 = vpop.f32.mrf.mxu0
      %v1869 = vadd.f32 0.0, %v1868
      %v1870 = vpop.f32.mrf.mxu0
      %v1871 = vpop.f32.mrf.mxu0
      %v1872 = vadd.f32 0.0, %v1871
      %v1873 = vpop.f32.mrf.mxu0
      %1874 = vmatprep.mubr.bf16.mxu0 0
      %1875 = vmatmul.mubr.bf16.gmra.mxu0 %v649
      %v1876 = vpop.f32.mrf.mxu0
      %v1877 = vadd.f32 0.0, %v1876
      %v1878 = vpop.f32.mrf.mxu0
      %v1879 = vpop.f32.mrf.mxu0
      %v1880 = vadd.f32 0.0, %v1879
      %v1881 = vpop.f32.mrf.mxu0
      %1882 = vmatprep.mubr.bf16.mxu0 0
      %1883 = vmatmul.mubr.bf16.gmra.mxu0 %v650
      %v1884 = vpop.f32.mrf.mxu0
      %v1885 = vadd.f32 0.0, %v1884
      %v1886 = vpop.f32.mrf.mxu0
      %v1887 = vpop.f32.mrf.mxu0
      %v1888 = vadd.f32 0.0, %v1887
      %v1889 = vpop.f32.mrf.mxu0
      %1890 = vdwg.mxu0
      %v1891 = vadd.f32 %v1713, %v1829
      %v1892 = vadd.f32 %v1714, %v1832
      %v1893 = vadd.f32 %v1715, %v1837
      %v1894 = vadd.f32 %v1716, %v1840
      %v1895 = vadd.f32 %v1717, %v1845
      %v1896 = vadd.f32 %v1718, %v1848
      %v1897 = vadd.f32 %v1719, %v1853
      %v1898 = vadd.f32 %v1720, %v1856
      %v1899 = vadd.f32 %v1721, %v1861
      %v1900 = vadd.f32 %v1722, %v1864
      %v1901 = vadd.f32 %v1723, %v1869
      %v1902 = vadd.f32 %v1724, %v1872
      %v1903 = vadd.f32 %v1725, %v1877
      %v1904 = vadd.f32 %v1726, %v1880
      %v1905 = vadd.f32 %v1727, %v1885
      %v1906 = vadd.f32 %v1728, %v1888
      %s1907 = scalar_lea.vmem %s3, 448
      %v1908 = vld [vmem:[%s1907] sm:$0xf]
      %v1909 = vld [vmem:[%s1907 + $0x4] sm:$0xf]
      %v1910 = vld [vmem:[%s1907 + $0x8] sm:$0xf]
      %v1911 = vld [vmem:[%s1907 + $0xc] sm:$0xf]
      %v1912 = vld [vmem:[%s1907 + $0x10] sm:$0xf]
      %v1913 = vld [vmem:[%s1907 + $0x14] sm:$0xf]
      %v1914 = vld [vmem:[%s1907 + $0x18] sm:$0xf]
      %v1915 = vld [vmem:[%s1907 + $0x1c] sm:$0xf]
      %v1916 = vld [vmem:[%s1907 + $0x20] sm:$0xf]
      %v1917 = vld [vmem:[%s1907 + $0x24] sm:$0xf]
      %v1918 = vld [vmem:[%s1907 + $0x28] sm:$0xf]
      %v1919 = vld [vmem:[%s1907 + $0x2c] sm:$0xf]
      %v1920 = vld [vmem:[%s1907 + $0x30] sm:$0xf]
      %v1921 = vld [vmem:[%s1907 + $0x34] sm:$0xf]
      %v1922 = vld [vmem:[%s1907 + $0x38] sm:$0xf]
      %v1923 = vld [vmem:[%s1907 + $0x3c] sm:$0xf]
      %v1940 = vunpack.c.l.b16 %v1908
      %v1941 = vunpack.c.l.b16 %v1909
      %v1942 = vunpack.c.l.b16 %v1910
      %v1943 = vunpack.c.l.b16 %v1911
      %v1944 = vunpack.c.l.b16 %v1912
      %v1945 = vunpack.c.l.b16 %v1913
      %v1946 = vunpack.c.l.b16 %v1914
      %v1947 = vunpack.c.l.b16 %v1915
      %v1948 = vunpack.c.l.b16 %v1916
      %v1949 = vunpack.c.l.b16 %v1917
      %v1950 = vunpack.c.l.b16 %v1918
      %v1951 = vunpack.c.l.b16 %v1919
      %v1952 = vunpack.c.l.b16 %v1920
      %v1953 = vunpack.c.l.b16 %v1921
      %v1954 = vunpack.c.l.b16 %v1922
      %v1955 = vunpack.c.l.b16 %v1923
      %v1956 = vpack.c.b16 %v1941, %v1940
      %v1957 = vpack.c.b16 %v1943, %v1942
      %v1958 = vpack.c.b16 %v1945, %v1944
      %v1959 = vpack.c.b16 %v1947, %v1946
      %v1960 = vpack.c.b16 %v1949, %v1948
      %v1961 = vpack.c.b16 %v1951, %v1950
      %v1962 = vpack.c.b16 %v1953, %v1952
      %v1963 = vpack.c.b16 %v1955, %v1954
      %1972 = vmatprep.subr.bf16.mxu0 0
      %1973 = vmatpush1.bf16.msra.mxu0 %v1963
      %1974 = vmatprep.subr.bf16.mxu0 0
      %1975 = vmatpush1.bf16.msra.mxu0 %v1962
      %1976 = vmatprep.subr.bf16.mxu0 0
      %1977 = vmatpush1.bf16.msra.mxu0 %v1961
      %1978 = vmatprep.subr.bf16.mxu0 0
      %1979 = vmatpush1.bf16.msra.mxu0 %v1960
      %1980 = vmatprep.subr.bf16.mxu0 0
      %1981 = vmatpush1.bf16.msra.mxu0 %v1959
      %1982 = vmatprep.subr.bf16.mxu0 0
      %1983 = vmatpush1.bf16.msra.mxu0 %v1958
      %1984 = vmatprep.subr.bf16.mxu0 0
      %1985 = vmatpush1.bf16.msra.mxu0 %v1957
      %1986 = vmatprep.subr.bf16.mxu0 0
      %1987 = vmatpush1.bf16.msra.mxu0 %v1956
      %1988 = vmatprep.subr.bf16.mxu0 0
      %1989 = vmatpush2.bf16.msra.mxu0 0
      %1990 = vmatprep.subr.bf16.mxu0 0
      %1991 = vmatpush2.bf16.msra.mxu0 0
      %1992 = vmatprep.subr.bf16.mxu0 0
      %1993 = vmatpush2.bf16.msra.mxu0 0
      %1994 = vmatprep.subr.bf16.mxu0 0
      %1995 = vmatpush2.bf16.msra.mxu0 0
      %1996 = vmatprep.subr.bf16.mxu0 0
      %1997 = vmatpush2.bf16.msra.mxu0 0
      %1998 = vmatprep.subr.bf16.mxu0 0
      %1999 = vmatpush2.bf16.msra.mxu0 0
      %2000 = vmatprep.subr.bf16.mxu0 0
      %2001 = vmatpush2.bf16.msra.mxu0 0
      %2002 = vmatprep.subr.bf16.mxu0 0
      %2003 = vmatpush2.bf16.msra.mxu0 0
      %2004 = vmatprep.mubr.bf16.mxu0 0
      %2005 = vmatmul.mubr.bf16.gmra.mxu0 %v550
      %v2006 = vpop.f32.mrf.mxu0
      %v2007 = vadd.f32 0.0, %v2006
      %v2008 = vpop.f32.mrf.mxu0
      %v2009 = vpop.f32.mrf.mxu0
      %v2010 = vadd.f32 0.0, %v2009
      %v2011 = vpop.f32.mrf.mxu0
      %2012 = vmatprep.mubr.bf16.mxu0 0
      %2013 = vmatmul.mubr.bf16.gmra.mxu0 %v551
      %v2014 = vpop.f32.mrf.mxu0
      %v2015 = vadd.f32 0.0, %v2014
      %v2016 = vpop.f32.mrf.mxu0
      %v2017 = vpop.f32.mrf.mxu0
      %v2018 = vadd.f32 0.0, %v2017
      %v2019 = vpop.f32.mrf.mxu0
      %2020 = vmatprep.mubr.bf16.mxu0 0
      %2021 = vmatmul.mubr.bf16.gmra.mxu0 %v552
      %v2022 = vpop.f32.mrf.mxu0
      %v2023 = vadd.f32 0.0, %v2022
      %v2024 = vpop.f32.mrf.mxu0
      %v2025 = vpop.f32.mrf.mxu0
      %v2026 = vadd.f32 0.0, %v2025
      %v2027 = vpop.f32.mrf.mxu0
      %2028 = vmatprep.mubr.bf16.mxu0 0
      %2029 = vmatmul.mubr.bf16.gmra.mxu0 %v553
      %v2030 = vpop.f32.mrf.mxu0
      %v2031 = vadd.f32 0.0, %v2030
      %v2032 = vpop.f32.mrf.mxu0
      %v2033 = vpop.f32.mrf.mxu0
      %v2034 = vadd.f32 0.0, %v2033
      %v2035 = vpop.f32.mrf.mxu0
      %2036 = vmatprep.mubr.bf16.mxu0 0
      %2037 = vmatmul.mubr.bf16.gmra.mxu0 %v554
      %v2038 = vpop.f32.mrf.mxu0
      %v2039 = vadd.f32 0.0, %v2038
      %v2040 = vpop.f32.mrf.mxu0
      %v2041 = vpop.f32.mrf.mxu0
      %v2042 = vadd.f32 0.0, %v2041
      %v2043 = vpop.f32.mrf.mxu0
      %2044 = vmatprep.mubr.bf16.mxu0 0
      %2045 = vmatmul.mubr.bf16.gmra.mxu0 %v555
      %v2046 = vpop.f32.mrf.mxu0
      %v2047 = vadd.f32 0.0, %v2046
      %v2048 = vpop.f32.mrf.mxu0
      %v2049 = vpop.f32.mrf.mxu0
      %v2050 = vadd.f32 0.0, %v2049
      %v2051 = vpop.f32.mrf.mxu0
      %2052 = vmatprep.mubr.bf16.mxu0 0
      %2053 = vmatmul.mubr.bf16.gmra.mxu0 %v556
      %v2054 = vpop.f32.mrf.mxu0
      %v2055 = vadd.f32 0.0, %v2054
      %v2056 = vpop.f32.mrf.mxu0
      %v2057 = vpop.f32.mrf.mxu0
      %v2058 = vadd.f32 0.0, %v2057
      %v2059 = vpop.f32.mrf.mxu0
      %2060 = vmatprep.mubr.bf16.mxu0 0
      %2061 = vmatmul.mubr.bf16.gmra.mxu0 %v557
      %v2062 = vpop.f32.mrf.mxu0
      %v2063 = vadd.f32 0.0, %v2062
      %v2064 = vpop.f32.mrf.mxu0
      %v2065 = vpop.f32.mrf.mxu0
      %v2066 = vadd.f32 0.0, %v2065
      %v2067 = vpop.f32.mrf.mxu0
      %2068 = vdwg.mxu0
      %v2069 = vadd.f32 %v1891, %v2007
      %v2070 = vadd.f32 %v1892, %v2010
      %v2071 = vadd.f32 %v1893, %v2015
      %v2072 = vadd.f32 %v1894, %v2018
      %v2073 = vadd.f32 %v1895, %v2023
      %v2074 = vadd.f32 %v1896, %v2026
      %v2075 = vadd.f32 %v1897, %v2031
      %v2076 = vadd.f32 %v1898, %v2034
      %v2077 = vadd.f32 %v1899, %v2039
      %v2078 = vadd.f32 %v1900, %v2042
      %v2079 = vadd.f32 %v1901, %v2047
      %v2080 = vadd.f32 %v1902, %v2050
      %v2081 = vadd.f32 %v1903, %v2055
      %v2082 = vadd.f32 %v1904, %v2058
      %v2083 = vadd.f32 %v1905, %v2063
      %v2084 = vadd.f32 %v1906, %v2066
      %s2085 = scalar_lea.vmem %s3, 512
      %v2086 = vld [vmem:[%s2085] sm:$0xf]
      %v2087 = vld [vmem:[%s2085 + $0x4] sm:$0xf]
      %v2088 = vld [vmem:[%s2085 + $0x8] sm:$0xf]
      %v2089 = vld [vmem:[%s2085 + $0xc] sm:$0xf]
      %v2090 = vld [vmem:[%s2085 + $0x10] sm:$0xf]
      %v2091 = vld [vmem:[%s2085 + $0x14] sm:$0xf]
      %v2092 = vld [vmem:[%s2085 + $0x18] sm:$0xf]
      %v2093 = vld [vmem:[%s2085 + $0x1c] sm:$0xf]
      %v2094 = vld [vmem:[%s2085 + $0x20] sm:$0xf]
      %v2095 = vld [vmem:[%s2085 + $0x24] sm:$0xf]
      %v2096 = vld [vmem:[%s2085 + $0x28] sm:$0xf]
      %v2097 = vld [vmem:[%s2085 + $0x2c] sm:$0xf]
      %v2098 = vld [vmem:[%s2085 + $0x30] sm:$0xf]
      %v2099 = vld [vmem:[%s2085 + $0x34] sm:$0xf]
      %v2100 = vld [vmem:[%s2085 + $0x38] sm:$0xf]
      %v2101 = vld [vmem:[%s2085 + $0x3c] sm:$0xf]
      %v2118 = vunpack.c.l.b16 %v2086
      %v2119 = vunpack.c.l.b16 %v2087
      %v2120 = vunpack.c.l.b16 %v2088
      %v2121 = vunpack.c.l.b16 %v2089
      %v2122 = vunpack.c.l.b16 %v2090
      %v2123 = vunpack.c.l.b16 %v2091
      %v2124 = vunpack.c.l.b16 %v2092
      %v2125 = vunpack.c.l.b16 %v2093
      %v2126 = vunpack.c.l.b16 %v2094
      %v2127 = vunpack.c.l.b16 %v2095
      %v2128 = vunpack.c.l.b16 %v2096
      %v2129 = vunpack.c.l.b16 %v2097
      %v2130 = vunpack.c.l.b16 %v2098
      %v2131 = vunpack.c.l.b16 %v2099
      %v2132 = vunpack.c.l.b16 %v2100
      %v2133 = vunpack.c.l.b16 %v2101
      %v2134 = vpack.c.b16 %v2119, %v2118
      %v2135 = vpack.c.b16 %v2121, %v2120
      %v2136 = vpack.c.b16 %v2123, %v2122
      %v2137 = vpack.c.b16 %v2125, %v2124
      %v2138 = vpack.c.b16 %v2127, %v2126
      %v2139 = vpack.c.b16 %v2129, %v2128
      %v2140 = vpack.c.b16 %v2131, %v2130
      %v2141 = vpack.c.b16 %v2133, %v2132
      %2150 = vmatprep.subr.bf16.mxu0 0
      %2151 = vmatpush1.bf16.msra.mxu0 %v2141
      %2152 = vmatprep.subr.bf16.mxu0 0
      %2153 = vmatpush1.bf16.msra.mxu0 %v2140
      %2154 = vmatprep.subr.bf16.mxu0 0
      %2155 = vmatpush1.bf16.msra.mxu0 %v2139
      %2156 = vmatprep.subr.bf16.mxu0 0
      %2157 = vmatpush1.bf16.msra.mxu0 %v2138
      %2158 = vmatprep.subr.bf16.mxu0 0
      %2159 = vmatpush1.bf16.msra.mxu0 %v2137
      %2160 = vmatprep.subr.bf16.mxu0 0
      %2161 = vmatpush1.bf16.msra.mxu0 %v2136
      %2162 = vmatprep.subr.bf16.mxu0 0
      %2163 = vmatpush1.bf16.msra.mxu0 %v2135
      %2164 = vmatprep.subr.bf16.mxu0 0
      %2165 = vmatpush1.bf16.msra.mxu0 %v2134
      %2166 = vmatprep.subr.bf16.mxu0 0
      %2167 = vmatpush2.bf16.msra.mxu0 0
      %2168 = vmatprep.subr.bf16.mxu0 0
      %2169 = vmatpush2.bf16.msra.mxu0 0
      %2170 = vmatprep.subr.bf16.mxu0 0
      %2171 = vmatpush2.bf16.msra.mxu0 0
      %2172 = vmatprep.subr.bf16.mxu0 0
      %2173 = vmatpush2.bf16.msra.mxu0 0
      %2174 = vmatprep.subr.bf16.mxu0 0
      %2175 = vmatpush2.bf16.msra.mxu0 0
      %2176 = vmatprep.subr.bf16.mxu0 0
      %2177 = vmatpush2.bf16.msra.mxu0 0
      %2178 = vmatprep.subr.bf16.mxu0 0
      %2179 = vmatpush2.bf16.msra.mxu0 0
      %2180 = vmatprep.subr.bf16.mxu0 0
      %2181 = vmatpush2.bf16.msra.mxu0 0
      %2182 = vmatprep.mubr.bf16.mxu0 0
      %2183 = vmatmul.mubr.bf16.gmra.mxu0 %v686
      %v2184 = vpop.f32.mrf.mxu0
      %v2185 = vadd.f32 0.0, %v2184
      %v2186 = vpop.f32.mrf.mxu0
      %v2187 = vpop.f32.mrf.mxu0
      %v2188 = vadd.f32 0.0, %v2187
      %v2189 = vpop.f32.mrf.mxu0
      %2190 = vmatprep.mubr.bf16.mxu0 0
      %2191 = vmatmul.mubr.bf16.gmra.mxu0 %v687
      %v2192 = vpop.f32.mrf.mxu0
      %v2193 = vadd.f32 0.0, %v2192
      %v2194 = vpop.f32.mrf.mxu0
      %v2195 = vpop.f32.mrf.mxu0
      %v2196 = vadd.f32 0.0, %v2195
      %v2197 = vpop.f32.mrf.mxu0
      %2198 = vmatprep.mubr.bf16.mxu0 0
      %2199 = vmatmul.mubr.bf16.gmra.mxu0 %v688
      %v2200 = vpop.f32.mrf.mxu0
      %v2201 = vadd.f32 0.0, %v2200
      %v2202 = vpop.f32.mrf.mxu0
      %v2203 = vpop.f32.mrf.mxu0
      %v2204 = vadd.f32 0.0, %v2203
      %v2205 = vpop.f32.mrf.mxu0
      %2206 = vmatprep.mubr.bf16.mxu0 0
      %2207 = vmatmul.mubr.bf16.gmra.mxu0 %v689
      %v2208 = vpop.f32.mrf.mxu0
      %v2209 = vadd.f32 0.0, %v2208
      %v2210 = vpop.f32.mrf.mxu0
      %v2211 = vpop.f32.mrf.mxu0
      %v2212 = vadd.f32 0.0, %v2211
      %v2213 = vpop.f32.mrf.mxu0
      %2214 = vmatprep.mubr.bf16.mxu0 0
      %2215 = vmatmul.mubr.bf16.gmra.mxu0 %v690
      %v2216 = vpop.f32.mrf.mxu0
      %v2217 = vadd.f32 0.0, %v2216
      %v2218 = vpop.f32.mrf.mxu0
      %v2219 = vpop.f32.mrf.mxu0
      %v2220 = vadd.f32 0.0, %v2219
      %v2221 = vpop.f32.mrf.mxu0
      %2222 = vmatprep.mubr.bf16.mxu0 0
      %2223 = vmatmul.mubr.bf16.gmra.mxu0 %v691
      %v2224 = vpop.f32.mrf.mxu0
      %v2225 = vadd.f32 0.0, %v2224
      %v2226 = vpop.f32.mrf.mxu0
      %v2227 = vpop.f32.mrf.mxu0
      %v2228 = vadd.f32 0.0, %v2227
      %v2229 = vpop.f32.mrf.mxu0
      %2230 = vmatprep.mubr.bf16.mxu0 0
      %2231 = vmatmul.mubr.bf16.gmra.mxu0 %v692
      %v2232 = vpop.f32.mrf.mxu0
      %v2233 = vadd.f32 0.0, %v2232
      %v2234 = vpop.f32.mrf.mxu0
      %v2235 = vpop.f32.mrf.mxu0
      %v2236 = vadd.f32 0.0, %v2235
      %v2237 = vpop.f32.mrf.mxu0
      %2238 = vmatprep.mubr.bf16.mxu0 0
      %2239 = vmatmul.mubr.bf16.gmra.mxu0 %v693
      %v2240 = vpop.f32.mrf.mxu0
      %v2241 = vadd.f32 0.0, %v2240
      %v2242 = vpop.f32.mrf.mxu0
      %v2243 = vpop.f32.mrf.mxu0
      %v2244 = vadd.f32 0.0, %v2243
      %v2245 = vpop.f32.mrf.mxu0
      %2246 = vdwg.mxu0
      %v2247 = vadd.f32 %v2069, %v2185
      %v2248 = vadd.f32 %v2070, %v2188
      %v2249 = vadd.f32 %v2071, %v2193
      %v2250 = vadd.f32 %v2072, %v2196
      %v2251 = vadd.f32 %v2073, %v2201
      %v2252 = vadd.f32 %v2074, %v2204
      %v2253 = vadd.f32 %v2075, %v2209
      %v2254 = vadd.f32 %v2076, %v2212
      %v2255 = vadd.f32 %v2077, %v2217
      %v2256 = vadd.f32 %v2078, %v2220
      %v2257 = vadd.f32 %v2079, %v2225
      %v2258 = vadd.f32 %v2080, %v2228
      %v2259 = vadd.f32 %v2081, %v2233
      %v2260 = vadd.f32 %v2082, %v2236
      %v2261 = vadd.f32 %v2083, %v2241
      %v2262 = vadd.f32 %v2084, %v2244
      %v2263 = vld [vmem:[%s4] sm:$0x1]
      %v2265 = vlaneseq
      %v2266 = vshrl.u32 %v2265, 7
      %v2267 = vsub.s32 0, %v2266
      %v2268 = vrot.slane %v2263, %v2267
      %v2270 = vadd.f32 %v2247, %v2268
      %v2271 = vadd.f32 %v2248, %v2268
      %v2272 = vadd.f32 %v2249, %v2268
      %v2273 = vadd.f32 %v2250, %v2268
      %v2274 = vadd.f32 %v2251, %v2268
      %v2275 = vadd.f32 %v2252, %v2268
      %v2276 = vadd.f32 %v2253, %v2268
      %v2277 = vadd.f32 %v2254, %v2268
      %v2278 = vadd.f32 %v2255, %v2268
      %v2279 = vadd.f32 %v2256, %v2268
      %v2280 = vadd.f32 %v2257, %v2268
      %v2281 = vadd.f32 %v2258, %v2268
      %v2282 = vadd.f32 %v2259, %v2268
      %v2283 = vadd.f32 %v2260, %v2268
      %v2284 = vadd.f32 %v2261, %v2268
      %v2285 = vadd.f32 %v2262, %v2268
      %v2286 = vmax.f32 %v2270, 0.0
      %v2287 = vmax.f32 %v2271, 0.0
      %v2288 = vmax.f32 %v2272, 0.0
      %v2289 = vmax.f32 %v2273, 0.0
      %v2290 = vmax.f32 %v2274, 0.0
      %v2291 = vmax.f32 %v2275, 0.0
      %v2292 = vmax.f32 %v2276, 0.0
      %v2293 = vmax.f32 %v2277, 0.0
      %v2294 = vmax.f32 %v2278, 0.0
      %v2295 = vmax.f32 %v2279, 0.0
      %v2296 = vmax.f32 %v2280, 0.0
      %v2297 = vmax.f32 %v2281, 0.0
      %v2298 = vmax.f32 %v2282, 0.0
      %v2299 = vmax.f32 %v2283, 0.0
      %v2300 = vmax.f32 %v2284, 0.0
      %v2301 = vmax.f32 %v2285, 0.0
      %v2302 = vpack.c.bf16 %v2287, %v2286
      %v2303 = vpack.c.bf16 %v2289, %v2288
      %v2304 = vpack.c.bf16 %v2291, %v2290
      %v2305 = vpack.c.bf16 %v2293, %v2292
      %v2306 = vpack.c.bf16 %v2295, %v2294
      %v2307 = vpack.c.bf16 %v2297, %v2296
      %v2308 = vpack.c.bf16 %v2299, %v2298
      %v2309 = vpack.c.bf16 %v2301, %v2300
      %v2318 = vunpack.c.l.b16 %v2302
      %v2319 = vunpack.c.h.b16 %v2302
      %v2320 = vunpack.c.l.b16 %v2303
      %v2321 = vunpack.c.h.b16 %v2303
      %v2322 = vunpack.c.l.b16 %v2304
      %v2323 = vunpack.c.h.b16 %v2304
      %v2324 = vunpack.c.l.b16 %v2305
      %v2325 = vunpack.c.h.b16 %v2305
      %v2326 = vunpack.c.l.b16 %v2306
      %v2327 = vunpack.c.h.b16 %v2306
      %v2328 = vunpack.c.l.b16 %v2307
      %v2329 = vunpack.c.h.b16 %v2307
      %v2330 = vunpack.c.l.b16 %v2308
      %v2331 = vunpack.c.h.b16 %v2308
      %v2332 = vunpack.c.l.b16 %v2309
      %v2333 = vunpack.c.h.b16 %v2309
      %v2334 = vpack.c.b16 %v2318, %v2318
      %v2335 = vpack.c.b16 %v2319, %v2319
      %v2336 = vpack.c.b16 %v2320, %v2320
      %v2337 = vpack.c.b16 %v2321, %v2321
      %v2338 = vpack.c.b16 %v2322, %v2322
      %v2339 = vpack.c.b16 %v2323, %v2323
      %v2340 = vpack.c.b16 %v2324, %v2324
      %v2341 = vpack.c.b16 %v2325, %v2325
      %v2342 = vpack.c.b16 %v2326, %v2326
      %v2343 = vpack.c.b16 %v2327, %v2327
      %v2344 = vpack.c.b16 %v2328, %v2328
      %v2345 = vpack.c.b16 %v2329, %v2329
      %v2346 = vpack.c.b16 %v2330, %v2330
      %v2347 = vpack.c.b16 %v2331, %v2331
      %v2348 = vpack.c.b16 %v2332, %v2332
      %v2349 = vpack.c.b16 %v2333, %v2333
      %2366 = vst [vmem:[%s308] sm:$0xf] %v2334
      %2367 = vst [vmem:[%s308 + $0x4] sm:$0xf] %v2335
      %2368 = vst [vmem:[%s308 + $0x8] sm:$0xf] %v2336
      %2369 = vst [vmem:[%s308 + $0xc] sm:$0xf] %v2337
      %2370 = vst [vmem:[%s308 + $0x10] sm:$0xf] %v2338
      %2371 = vst [vmem:[%s308 + $0x14] sm:$0xf] %v2339
      %2372 = vst [vmem:[%s308 + $0x18] sm:$0xf] %v2340
      %2373 = vst [vmem:[%s308 + $0x1c] sm:$0xf] %v2341
      %2374 = vst [vmem:[%s308 + $0x20] sm:$0xf] %v2342
      %2375 = vst [vmem:[%s308 + $0x24] sm:$0xf] %v2343
      %2376 = vst [vmem:[%s308 + $0x28] sm:$0xf] %v2344
      %2377 = vst [vmem:[%s308 + $0x2c] sm:$0xf] %v2345
      %2378 = vst [vmem:[%s308 + $0x30] sm:$0xf] %v2346
      %2379 = vst [vmem:[%s308 + $0x34] sm:$0xf] %v2347
      %2380 = vst [vmem:[%s308 + $0x38] sm:$0xf] %v2348
      %2381 = vst [vmem:[%s308 + $0x3c] sm:$0xf] %v2349
      %v2382 = vadd.f32 %v2286, %v2287
      %v2383 = vadd.f32 %v2382, %v2288
      %v2384 = vadd.f32 %v2383, %v2289
      %v2385 = vadd.f32 %v2384, %v2290
      %v2386 = vadd.f32 %v2385, %v2291
      %v2387 = vadd.f32 %v2386, %v2292
      %v2388 = vadd.f32 %v2387, %v2293
      %v2389 = vadd.f32 %v2388, %v2294
      %v2390 = vadd.f32 %v2389, %v2295
      %v2391 = vadd.f32 %v2390, %v2296
      %v2392 = vadd.f32 %v2391, %v2297
      %v2393 = vadd.f32 %v2392, %v2298
      %v2394 = vadd.f32 %v2393, %v2299
      %v2395 = vadd.f32 %v2394, %v2300
      %v2396 = vadd.f32 %v2395, %v2301
      %v2397 = vrot.slane %v2396, 4
      %v2398 = vadd.f32 %v2396, %v2397
      %v2399 = vrot.slane %v2398, 2
      %v2400 = vadd.f32 %v2398, %v2399
      %v2401 = vrot.slane %v2400, 1
      %v2402 = vadd.f32 %v2400, %v2401
      %2403 = vst [vmem:[%s317] sm:$0x1] %v2402
      %v2404 = vmul.f32 %v2286, %v2286
      %v2405 = vmul.f32 %v2287, %v2287
      %v2406 = vmul.f32 %v2288, %v2288
      %v2407 = vmul.f32 %v2289, %v2289
      %v2408 = vmul.f32 %v2290, %v2290
      %v2409 = vmul.f32 %v2291, %v2291
      %v2410 = vmul.f32 %v2292, %v2292
      %v2411 = vmul.f32 %v2293, %v2293
      %v2412 = vmul.f32 %v2294, %v2294
      %v2413 = vmul.f32 %v2295, %v2295
      %v2414 = vmul.f32 %v2296, %v2296
      %v2415 = vmul.f32 %v2297, %v2297
      %v2416 = vmul.f32 %v2298, %v2298
      %v2417 = vmul.f32 %v2299, %v2299
      %v2418 = vmul.f32 %v2300, %v2300
      %v2419 = vmul.f32 %v2301, %v2301
      %v2420 = vadd.f32 %v2404, %v2405
      %v2421 = vadd.f32 %v2420, %v2406
      %v2422 = vadd.f32 %v2421, %v2407
      %v2423 = vadd.f32 %v2422, %v2408
      %v2424 = vadd.f32 %v2423, %v2409
      %v2425 = vadd.f32 %v2424, %v2410
      %v2426 = vadd.f32 %v2425, %v2411
      %v2427 = vadd.f32 %v2426, %v2412
      %v2428 = vadd.f32 %v2427, %v2413
      %v2429 = vadd.f32 %v2428, %v2414
      %v2430 = vadd.f32 %v2429, %v2415
      %v2431 = vadd.f32 %v2430, %v2416
      %v2432 = vadd.f32 %v2431, %v2417
      %v2433 = vadd.f32 %v2432, %v2418
      %v2434 = vadd.f32 %v2433, %v2419
      %v2435 = vrot.slane %v2434, 4
      %v2436 = vadd.f32 %v2434, %v2435
      %v2437 = vrot.slane %v2436, 2
      %v2438 = vadd.f32 %v2436, %v2437
      %v2439 = vrot.slane %v2438, 1
      %v2440 = vadd.f32 %v2438, %v2439
      %2441 = vst [vmem:[%s317 + $0x1] sm:$0x1] %v2440
      %s2442 = smul.u32 8, %s24
      %p2443 = scmp.lt.s32.totalorder %s23, 1
      %s2444 = scalar_select %p2443, %s23, 1
      %p2445 = scmp.lt.s32.totalorder %s2442, 15
      %s2446 = scalar_select %p2445, %s2442, 15
      %s2447 = smul.addr %s2446, 2
      %s2448 = smul.addr %s2444, 32
      %s2449 = sadd.s32 %s2447, %s2448
      %s2450 = smul.addr %s2449, 4
      %s2451 = scalar_lea.vmem %s6, %s2450
      %p2452 = scmp.lt.s32.totalorder %s23, 1
      %s2453 = scalar_select %p2452, %s23, 1
      %p2454 = scmp.lt.s32.totalorder %s24, 1
      %s2455 = scalar_select %p2454, %s24, 1
      %s2456 = smul.addr %s2453, 2
      %s2457 = sadd.s32 %s2455, %s2456
      %s2458 = smul.addr %s2457, 2
      %s2459 = scalar_lea.vmem %s7, %s2458
      // Predicated region
      $region125: #{mynet_forward.5} parent=39 // pred_check
        %p2460 = pneg %p163
      $region126: #{mynet_forward.5} parent=39 // pred_check_branch
        %2462 = sbr.rel (%p2460) target = $region128
      $region127: #{mynet_forward.5} parent=39 // pred_region
        %s2463 = smul.u32 8, %s24
      $region128: #{mynet_forward.5} parent=39 // pred_fallthru
        _
      // Predicated region
      $region129: #{mynet_forward.5} parent=39 // pred_check
        %p2464 = pneg %p191
      $region130: #{mynet_forward.5} parent=39 // pred_check_branch
        %2466 = sbr.rel (%p2464) target = $region132
      $region131: #{mynet_forward.5} parent=39 // pred_region
        _
      $region132: #{mynet_forward.5} parent=39 // pred_fallthru
        _
    $region40: #{mynet_forward.5} parent=5 // pred_fallthru
      _
    %p2467 = scmp.le.s32.totalorder 2, %s14
    // Predicated region
    $region133: #{mynet_forward.5} parent=5 // pred_check
      %p2468 = pneg %p2467
    $region134: #{mynet_forward.5} parent=5 // pred_check_branch
      %2470 = sbr.rel (%p2468) target = $region136
    $region135: #{mynet_forward.5} parent=5 // pred_region
      %s2471 = ssub.s32 %s14, 2
      // Predicated region
      $region137: #{mynet_forward.5} parent=135 // pred_check
        %p2472 = pneg %p169
      $region138: #{mynet_forward.5} parent=135 // pred_check_branch
        %2474 = sbr.rel (%p2472) target = $region140
      $region139: #{mynet_forward.5} parent=135 // pred_region
        %s2475 = smul.u32 8, %s26
        %p2476 = scmp.lt.s32.totalorder %s25, 1
        %s2477 = scalar_select %p2476, %s25, 1
        %p2478 = scmp.lt.s32.totalorder %s2475, 15
        %s2479 = scalar_select %p2478, %s2475, 15
        %s2480 = smul.addr %s2479, 2
        %s2481 = smul.addr %s2477, 32
        %s2482 = sadd.s32 %s2480, %s2481
        %s2483 = smul.addr %s2482, 4
        %s2484 = scalar_lea.vmem %s6, %s2483
      $region140: #{mynet_forward.5} parent=135 // pred_fallthru
        _
      // Predicated region
      $region141: #{mynet_forward.5} parent=135 // pred_check
        %p2485 = pneg %p197
      $region142: #{mynet_forward.5} parent=135 // pred_check_branch
        %2487 = sbr.rel (%p2485) target = $region144
      $region143: #{mynet_forward.5} parent=135 // pred_region
        %p2488 = scmp.lt.s32.totalorder %s25, 1
        %s2489 = scalar_select %p2488, %s25, 1
        %p2490 = scmp.lt.s32.totalorder %s26, 1
        %s2491 = scalar_select %p2490, %s26, 1
        %s2492 = smul.addr %s2489, 2
        %s2493 = sadd.s32 %s2491, %s2492
        %s2494 = smul.addr %s2493, 2
        %s2495 = scalar_lea.vmem %s7, %s2494
      $region144: #{mynet_forward.5} parent=135 // pred_fallthru
        _
    $region136: #{mynet_forward.5} parent=5 // pred_fallthru
      _
  $region6: #{mynet_forward.5} parent=0 // loop_footer
    %s18 = sadd.s32 1, %s14
  $region7: #{mynet_forward.5} parent=0 // loop_footer_branch
    %13 = sbr.rel target = $region3
  $region8: #{mynet_forward.5} parent=0 // loop_exit
    _
  %2496 = vsyncmov [#allocation4]
  %s2497 = vpop.sfrf %2496
  %p2498 = scmp.eq.s32.totalorder %s2497, 0
  %p2499 = pneg %p2498
  %2501 = shalt.err (%p2499)
  %s2502 = scalar_lea.sflag [#allocation4], 1
  %2503 = vsyncmov %s2502
  %s2504 = vpop.sfrf %2503
  %p2505 = scmp.eq.s32.totalorder %s2504, 0
  %p2506 = pneg %p2505
  %2508 = shalt.err (%p2506)

</llo_original>
